<compile_context>
chip_gen: v7x
topology: tpu7x:2x2x1
jax: 0.10.0
libtpu: 0.0.40
codegen_flags: <defaults>
</compile_context>

<pallas_src>
import jax
import jax.numpy as jnp
from jax import lax
from jax.experimental import pallas as pl
from jax.experimental.pallas import tpu as pltpu

C_PAD = 128           # lane-dense channel width carried through the encoder
_REAL_COUT = (64, 80, 96, 128)
_BF16 = 2
_F32 = 4
_BIG_BYTES = 4 << 20  # "large operand" threshold for the alternate code paths


def _build_encoder_call(n, h0, w0, k1):
    """Build the fused 4-layer encoder pallas_call for batch n, input h0 x w0."""
    h1, w1 = h0, w0
    h2, w2 = h1 // 2, w1 // 2
    h3, w3 = h2 // 2, w2 // 2
    h4, w4 = h3 // 2, w3 // 2
    wp2, wp3, wp4 = w2 + 2, w3 + 2, w4 + 2
    m1 = h1 * w1                                 # layer-1 rows (compact im2col)
    m2, m3, m4 = h2 * wp2, h3 * wp3, h4 * wp4    # padded-flat conv-output rows
    rows2 = (h2 + 2) * wp2 + 2                   # padded-flat conv-input rows
    rows3 = (h3 + 2) * wp3 + 2
    rows4 = (h4 + 2) * wp4 + 2

    # ---------------- in-kernel helpers ----------------

    def conv_bn_relu(p_scr, w_ref, sc_ref, bi_ref, layer, h, w):
        # 3x3 conv (padding=1) from a zero-padded, row-flattened (h+2)*(w+2)
        # scratch.  For output row o = y*(w+2) + x, tap (dy, dx) is row
        # o + dy*(w+2) + dx, so the 9 taps are 9 contiguous row slices.
        # Output columns x in {w, w+1} are garbage and are never read later.
        wp = w + 2
        m = h * wp

        def tap(t):
            dy, dx = divmod(t, 3)
            # per-tap bf16 cast: no (m, 9*128) f32 transient is ever built.
            return p_scr[pl.ds(dy * wp + dx, m), :].astype(jnp.bfloat16)

        if m * 9 * C_PAD * _BF16 <= _BIG_BYTES:
            # Small: stage one (m, 9*128) bf16 block -> single long-K MXU matmul.
            patches = jnp.concatenate([tap(t) for t in range(9)], axis=-1)
            acc = jnp.dot(patches, w_ref[...], preferred_element_type=jnp.float32)
        else:
            # Large: avoid the (m, 9*128) transient entirely (review item 5b):
            # 9 accumulated K=128 dots reading taps directly from scratch.
            acc = jnp.zeros((m, C_PAD), jnp.float32)
            for t in range(9):
                acc = acc + jnp.dot(tap(t), w_ref[t * C_PAD:(t + 1) * C_PAD, :],
                                    preferred_element_type=jnp.float32)
        return jnp.maximum(acc * sc_ref[layer:layer + 1, :]
                           + bi_ref[layer:layer + 1, :], 0.0)

    def zero_pad_border(p_scr, hn, wn):
        # Zero ONLY the padding border (+ DMA-overrun rows) of the padded,
        # row-flattened scratch; the interior (rows py=1..hn, cols px=1..wn)
        # is fully rewritten by pool_into on every grid step.
        wp = wn + 2
        # top padded row + left border of interior row 1
        p_scr[pl.ds(0, wp + 1), :] = jnp.zeros((wp + 1, C_PAD), jnp.float32)
        # right border of interior row hn + bottom padded row + 2 overrun rows
        p_scr[pl.ds((hn + 1) * wp - 1, wp + 3), :] = (
            jnp.zeros((wp + 3, C_PAD), jnp.float32))
        # right border of row py / left border of row py+1 (2 adjacent rows)
        z2 = jnp.zeros((2, C_PAD), jnp.float32)
        if hn <= 17:
            for py in range(1, hn):
                p_scr[pl.ds(py * wp + wn + 1, 2), :] = z2
        else:
            def body(py, carry):
                p_scr[pl.ds(py * wp + wn + 1, 2), :] = z2
                return carry
            lax.fori_loop(1, hn, body, 0, unroll=4)

    def pool_into(y_scr, idx_ref, p_next, h, w, row_stride, wp_next):
        # 2x2 stride-2 max pool with PyTorch-style indices (h_in * W_in + w_in).
        # y_scr holds the conv output row-flattened: row = y*row_stride + x.
        ho, wo = h // 2, w // 2
        # Hoisted full-width index broadcast (JAX does not CSE broadcast_in_dim).
        col2 = 2 * lax.broadcasted_iota(jnp.int32, (wo, C_PAD), 0)   # 2*x_out

        def one_row(r):
            if row_stride == w:
                # Layer 1: rows 2r and 2r+1 are contiguous -> two long stride-2
                # loads instead of four short ones.
                ev = y_scr[pl.ds(2 * r * w, 2 * wo, stride=2), :]
                od = y_scr[pl.ds(2 * r * w + 1, 2 * wo, stride=2), :]
                a, c = ev[:wo], ev[wo:]          # (2r, 2c), (2r+1, 2c)
                b, d = od[:wo], od[wo:]          # (2r, 2c+1), (2r+1, 2c+1)
            else:
                r0 = (2 * r) * row_stride
                r1 = r0 + row_stride
                a = y_scr[pl.ds(r0, wo, stride=2), :]
                b = y_scr[pl.ds(r0 + 1, wo, stride=2), :]
                c = y_scr[pl.ds(r1, wo, stride=2), :]
                d = y_scr[pl.ds(r1 + 1, wo, stride=2), :]
            ia = (2 * r) * w + col2
            ic = (2 * r + 1) * w + col2
            m_ab = jnp.maximum(a, b)
            i_ab = jnp.where(a >= b, ia, ia + 1)
            m_cd = jnp.maximum(c, d)
            i_cd = jnp.where(c >= d, ic, ic + 1)
            idx_ref[0, pl.ds(r * wo, wo), :] = jnp.where(m_ab >= m_cd, i_ab, i_cd)
            # pooled values go to the interior of the next layer's padded,
            # flattened scratch: row = (r+1)*wp_next + (c+1)
            p_next[pl.ds((r + 1) * wp_next + 1, wo), :] = jnp.maximum(m_ab, m_cd)

        if ho <= 32:
            for r in range(ho):
                one_row(r)
        else:
            def body(r, carry):
                one_row(r)
                return carry
            lax.fori_loop(0, ho, body, 0, unroll=4)

    # ---------------- the fused kernel ----------------

    def kernel(p1_ref, w1_ref, w2_ref, w3_ref, w4_ref, sc_ref, bi_ref,
               out_ref, idx1_ref, idx2_ref, idx3_ref,
               y_scr, p2_scr, p3_scr, p4_scr):
        # Border-only zeroing (interiors rewritten by pool_into below).
        zero_pad_border(p2_scr, h2, w2)
        zero_pad_border(p3_scr, h3, w3)
        zero_pad_border(p4_scr, h4, w4)

        # Layer 1: single (H*W, 9*Cin) x (9*Cin, 128) bf16 MXU matmul.
        acc1 = jnp.dot(p1_ref[0], w1_ref[...], preferred_element_type=jnp.float32)
        y_scr[...] = jnp.maximum(acc1 * sc_ref[0:1, :] + bi_ref[0:1, :], 0.0)
        pool_into(y_scr, idx1_ref, p2_scr, h1, w1, row_stride=w1, wp_next=wp2)

        # Layer 2.
        y_scr[pl.ds(0, m2), :] = conv_bn_relu(p2_scr, w2_ref, sc_ref, bi_ref, 1, h2, w2)
        pool_into(y_scr, idx2_ref, p3_scr, h2, w2, row_stride=wp2, wp_next=wp3)

        # Layer 3.
        y_scr[pl.ds(0, m3), :] = conv_bn_relu(p3_scr, w3_ref, sc_ref, bi_ref, 2, h3, w3)
        pool_into(y_scr, idx3_ref, p4_scr, h3, w3, row_stride=wp3, wp_next=wp4)

        # Layer 4 (no pool): padded-flat output; wrapper drops garbage columns.
        out_ref[0] = conv_bn_relu(p4_scr, w4_ref, sc_ref, bi_ref, 3, h4, w4)

    # ---------------- specs, VMEM budget, cost estimate ----------------

    def lane_pad(c):
        return -(-c // C_PAD) * C_PAD

    p1_bytes = m1 * lane_pad(k1) * _BF16            # lane-padded in VMEM
    idx1_bytes = h2 * w2 * C_PAD * _F32
    out_bytes = m4 * C_PAD * _F32
    idx23_bytes = (h3 * w3 + h4 * w4) * C_PAD * _F32
    p1_single = p1_bytes > _BIG_BYTES                # single-buffer huge operands
    idx1_single = idx1_bytes > _BIG_BYTES

    def batch_spec(shape, single_buffer=False):
        if single_buffer:
            return pl.BlockSpec((1,) + shape, lambda i: (i, 0, 0),
                                pipeline_mode=pl.Buffered(1))
        return pl.BlockSpec((1,) + shape, lambda i: (i, 0, 0))

    def fixed_spec(shape):
        return pl.BlockSpec(shape, lambda i: (0,) * len(shape))

    scratch_bytes = (m1 + rows2 + rows3 + rows4) * C_PAD * _F32
    weight_bytes = (lane_pad(k1) * C_PAD + 3 * 9 * C_PAD * C_PAD) * _BF16 \
        + 2 * 4 * C_PAD * _F32
    io_bytes = ((1 if p1_single else 2) * p1_bytes
                + (1 if idx1_single else 2) * idx1_bytes
                + 2 * (out_bytes + idx23_bytes))
    patches_bytes = m2 * 9 * C_PAD * _BF16
    if patches_bytes > _BIG_BYTES:
        patches_bytes = 2 * m2 * C_PAD * _F32        # accumulator copies instead
    transient_bytes = patches_bytes + 2 * m1 * C_PAD * _F32
    est = scratch_bytes + weight_bytes + io_bytes + transient_bytes
    vmem_limit = int(min(64 << 20, max(32 << 20, (est * 3) // 2)))

    flops = 2 * n * (m1 * k1 * C_PAD + (m2 + m3 + m4) * 9 * C_PAD * C_PAD)
    bytes_accessed = (n * (m1 * k1 * _BF16 + out_bytes + idx1_bytes + idx23_bytes)
                      + (k1 * C_PAD + 3 * 9 * C_PAD * C_PAD) * _BF16
                      + 2 * 4 * C_PAD * _F32)
    cost = pl.CostEstimate(flops=flops, transcendentals=0,
                           bytes_accessed=bytes_accessed)

    return pl.pallas_call(
        kernel,
        out_shape=(
            jax.ShapeDtypeStruct((n, m4, C_PAD), jnp.float32),       # conv4 (padded-flat)
            jax.ShapeDtypeStruct((n, h2 * w2, C_PAD), jnp.int32),    # idx1
            jax.ShapeDtypeStruct((n, h3 * w3, C_PAD), jnp.int32),    # idx2
            jax.ShapeDtypeStruct((n, h4 * w4, C_PAD), jnp.int32),    # idx3
        ),
        grid=(n,),
        in_specs=[
            batch_spec((m1, k1), single_buffer=p1_single),   # layer-1 im2col (bf16)
            fixed_spec((k1, C_PAD)),                         # w1  (9*Cin, 128) bf16
            fixed_spec((9 * C_PAD, C_PAD)),                  # w2  (1152, 128) bf16
            fixed_spec((9 * C_PAD, C_PAD)),                  # w3
            fixed_spec((9 * C_PAD, C_PAD)),                  # w4
            fixed_spec((4, C_PAD)),                          # folded BN scale (f32)
            fixed_spec((4, C_PAD)),                          # folded BN bias  (f32)
        ],
        out_specs=(
            batch_spec((m4, C_PAD)),
            batch_spec((h2 * w2, C_PAD), single_buffer=idx1_single),
            batch_spec((h3 * w3, C_PAD)),
            batch_spec((h4 * w4, C_PAD)),
        ),
        scratch_shapes=[
            pltpu.VMEM((m1, C_PAD), jnp.float32),     # conv-output / pool-input buffer
            pltpu.VMEM((rows2, C_PAD), jnp.float32),  # padded layer-2 input
            pltpu.VMEM((rows3, C_PAD), jnp.float32),  # padded layer-3 input
            pltpu.VMEM((rows4, C_PAD), jnp.float32),  # padded layer-4 input
        ],
        compiler_params=pltpu.CompilerParams(
            dimension_semantics=("parallel",),
            vmem_limit_bytes=vmem_limit),
        cost_estimate=cost,
    )


def init_params(n_channels=3, seed=0, eps=1e-5):
    """Deterministic parameters with eval-mode BatchNorm folded into scale/bias.

    Weights are laid out as (9*Cin_pad, 128) bf16 matrices matching the
    in-kernel im2col ordering; input/output channels are zero-padded to 128.
    """
    key = jax.random.PRNGKey(seed)
    keys = jax.random.split(key, 4)
    chans = [(n_channels, 64), (64, 80), (80, 96), (96, 128)]
    weights, scales, biases = [], [], []
    for li, (k, (ci, co)) in enumerate(zip(keys, chans)):
        k_w, k_b, k_g, k_be = jax.random.split(k, 4)
        w = jax.random.normal(k_w, (co, ci, 3, 3), jnp.float32) / jnp.sqrt(9.0 * ci)
        conv_b = 0.1 * jax.random.normal(k_b, (co,), jnp.float32)
        gamma = 1.0 + 0.1 * jax.random.normal(k_g, (co,), jnp.float32)
        beta = 0.1 * jax.random.normal(k_be, (co,), jnp.float32)
        running_mean = jnp.zeros((co,), jnp.float32)
        running_var = jnp.ones((co,), jnp.float32)
        s = gamma / jnp.sqrt(running_var + eps)          # folded BN scale
        b = (conv_b - running_mean) * s + beta           # folded BN bias (+conv bias)
        cin_pad = ci if li == 0 else C_PAD               # layer 1 keeps K = 9*n_channels
        w_t = jnp.transpose(w, (2, 3, 1, 0))             # (ky, kx, cin, cout)
        w_t = jnp.pad(w_t, ((0, 0), (0, 0), (0, cin_pad - ci), (0, C_PAD - co)))
        weights.append(w_t.reshape(9 * cin_pad, C_PAD).astype(jnp.bfloat16))
        scales.append(jnp.pad(s, (0, C_PAD - co)))
        biases.append(jnp.pad(b, (0, C_PAD - co)))
    scale_all = jnp.stack(scales).astype(jnp.float32)    # (4, 128)
    bias_all = jnp.stack(biases).astype(jnp.float32)     # (4, 128)
    return tuple(weights) + (scale_all, bias_all)


def segnet_basic_encoder(x_nchw, params):
    """Matches SegNetBasicEncoder.forward: NCHW in -> (x, (idx1,idx2,idx3), sizes)."""
    wt1, wt2, wt3, wt4, scale_all, bias_all = params
    n, cin, h0, w0 = x_nchw.shape
    assert h0 % 8 == 0 and w0 % 8 == 0, "three 2x2 pools need H, W divisible by 8"

    # NCHW -> NHWC, then layer-1 im2col in the wrapper (tiny: H*W x 9*Cin).
    x = jnp.transpose(x_nchw, (0, 2, 3, 1)).astype(jnp.float32)
    xp = jnp.pad(x, ((0, 0), (1, 1), (1, 1), (0, 0)))
    taps = [xp[:, dy:dy + h0, dx:dx + w0, :] for dy in range(3) for dx in range(3)]
    p1 = jnp.concatenate(taps, axis=-1).reshape(n, h0 * w0, 9 * cin)
    p1 = p1.astype(jnp.bfloat16)

    out_flat, idx1f, idx2f, idx3f = _build_encoder_call(n, h0, w0, 9 * cin)(
        p1, wt1, wt2, wt3, wt4, scale_all, bias_all)

    h2, wd2 = h0 // 2, w0 // 2
    h3, wd3 = h2 // 2, wd2 // 2
    h4, wd4 = h3 // 2, wd3 // 2

    def to_nchw(t):
        return jnp.transpose(t, (0, 3, 1, 2))

    out = out_flat.reshape(n, h4, wd4 + 2, C_PAD)[:, :, :wd4, :_REAL_COUT[3]]
    idx1 = idx1f.reshape(n, h2, wd2, C_PAD)[..., :_REAL_COUT[0]]
    idx2 = idx2f.reshape(n, h3, wd3, C_PAD)[..., :_REAL_COUT[1]]
    idx3 = idx3f.reshape(n, h4, wd4, C_PAD)[..., :_REAL_COUT[2]]

    size1 = (n, _REAL_COUT[0], h2, wd2)
    size2 = (n, _REAL_COUT[1], h3, wd3)
    size3 = (n, _REAL_COUT[2], h4, wd4)
    return (to_nchw(out),
            (to_nchw(idx1), to_nchw(idx2), to_nchw(idx3)),
            (size1, size2, size3))


if __name__ == "__main__":
    key = jax.random.PRNGKey(0)
    x = jax.random.normal(key, (2, 3, 16, 16), jnp.float32)   # NCHW, like PyTorch

    params = init_params(n_channels=3, seed=0)
    out, (idx1, idx2, idx3), (size1, size2, size3) = segnet_basic_encoder(x, params)
    jax.block_until_ready((out, idx1, idx2, idx3))

    assert out.shape == (2, 128, 2, 2)
    assert idx1.shape == (2, 64, 8, 8) and idx1.dtype == jnp.int32
    assert idx2.shape == (2, 80, 4, 4)
    assert idx3.shape == (2, 96, 2, 2)
    assert size1 == (2, 64, 8, 8) and size2 == (2, 80, 4, 4) and size3 == (2, 96, 2, 2)
    assert bool(jnp.all(jnp.isfinite(out)))
    assert bool(jnp.all((idx1 >= 0) & (idx1 < 16 * 16)))
    assert bool(jnp.all((idx2 >= 0) & (idx2 < 8 * 8)))
    assert bool(jnp.all((idx3 >= 0) & (idx3 < 4 * 4)))

    print("KERNEL_OK")
</pallas_src>

<mosaic_0001>
module attributes {stable_mosaic.version = 11 : i64} {
  func.func @kernel(%arg0: i32, %arg1: memref<1x256x27xbf16, #tpu.memory_space<vmem>>, %arg2: memref<27x128xbf16, #tpu.memory_space<vmem>>, %arg3: memref<1152x128xbf16, #tpu.memory_space<vmem>>, %arg4: memref<1152x128xbf16, #tpu.memory_space<vmem>>, %arg5: memref<1152x128xbf16, #tpu.memory_space<vmem>>, %arg6: memref<4x128xf32, #tpu.memory_space<vmem>>, %arg7: memref<4x128xf32, #tpu.memory_space<vmem>>, %arg8: memref<1x8x128xf32, #tpu.memory_space<vmem>>, %arg9: memref<1x64x128xi32, #tpu.memory_space<vmem>>, %arg10: memref<1x16x128xi32, #tpu.memory_space<vmem>>, %arg11: memref<1x4x128xi32, #tpu.memory_space<vmem>>, %arg12: memref<256x128xf32, #tpu.memory_space<vmem>>, %arg13: memref<102x128xf32, #tpu.memory_space<vmem>>, %arg14: memref<38x128xf32, #tpu.memory_space<vmem>>, %arg15: memref<18x128xf32, #tpu.memory_space<vmem>>) attributes {dimension_semantics = [#tpu.dimension_semantics<parallel>], iteration_bounds = array<i64: 2>, scalar_prefetch = 0 : i64, scratch_operands = 4 : i64, tpu.core_type = #tpu.core_type<tc>, window_params = [{transform_indices = @transform_0, window_bounds = array<i64: 1, 256, 27>}, {pipeline_mode = #tpu.pipeline_mode<synchronous>, transform_indices = @transform_1, window_bounds = array<i64: 27, 128>}, {pipeline_mode = #tpu.pipeline_mode<synchronous>, transform_indices = @transform_2, window_bounds = array<i64: 1152, 128>}, {pipeline_mode = #tpu.pipeline_mode<synchronous>, transform_indices = @transform_3, window_bounds = array<i64: 1152, 128>}, {pipeline_mode = #tpu.pipeline_mode<synchronous>, transform_indices = @transform_4, window_bounds = array<i64: 1152, 128>}, {pipeline_mode = #tpu.pipeline_mode<synchronous>, transform_indices = @transform_5, window_bounds = array<i64: 4, 128>}, {pipeline_mode = #tpu.pipeline_mode<synchronous>, transform_indices = @transform_6, window_bounds = array<i64: 4, 128>}, {transform_indices = @transform_7, window_bounds = array<i64: 1, 8, 128>}, {transform_indices = @transform_8, window_bounds = array<i64: 1, 64, 128>}, {transform_indices = @transform_9, window_bounds = array<i64: 1, 16, 128>}, {transform_indices = @transform_10, window_bounds = array<i64: 1, 4, 128>}]} {
    %cst = arith.constant 0.000000e+00 : f32
    %0 = vector.broadcast %cst : f32 to vector<11x128xf32>
    %c0 = arith.constant 0 : index
    %c0_0 = arith.constant 0 : index
    %1 = vector.load %arg13[%c0, %c0_0] : memref<102x128xf32, #tpu.memory_space<vmem>>, vector<11x128xf32>
    tpu.vector_store %arg13[%c0, %c0_0], %0 {strides = array<i32>} : memref<102x128xf32, #tpu.memory_space<vmem>>, vector<11x128xf32>,
    %cst_1 = arith.constant 0.000000e+00 : f32
    %2 = vector.broadcast %cst_1 : f32 to vector<13x128xf32>
    %c89 = arith.constant 89 : index
    %c0_2 = arith.constant 0 : index
    %3 = vector.load %arg13[%c89, %c0_2] : memref<102x128xf32, #tpu.memory_space<vmem>>, vector<13x128xf32>
    tpu.vector_store %arg13[%c89, %c0_2], %2 {strides = array<i32>} : memref<102x128xf32, #tpu.memory_space<vmem>>, vector<13x128xf32>,
    %cst_3 = arith.constant 0.000000e+00 : f32
    %4 = vector.broadcast %cst_3 : f32 to vector<2x128xf32>
    %c19 = arith.constant 19 : index
    %c0_4 = arith.constant 0 : index
    %5 = vector.load %arg13[%c19, %c0_4] : memref<102x128xf32, #tpu.memory_space<vmem>>, vector<2x128xf32>
    tpu.vector_store %arg13[%c19, %c0_4], %4 {strides = array<i32>} : memref<102x128xf32, #tpu.memory_space<vmem>>, vector<2x128xf32>,
    %c29 = arith.constant 29 : index
    %c0_5 = arith.constant 0 : index
    %6 = vector.load %arg13[%c29, %c0_5] : memref<102x128xf32, #tpu.memory_space<vmem>>, vector<2x128xf32>
    tpu.vector_store %arg13[%c29, %c0_5], %4 {strides = array<i32>} : memref<102x128xf32, #tpu.memory_space<vmem>>, vector<2x128xf32>,
    %c39 = arith.constant 39 : index
    %c0_6 = arith.constant 0 : index
    %7 = vector.load %arg13[%c39, %c0_6] : memref<102x128xf32, #tpu.memory_space<vmem>>, vector<2x128xf32>
    tpu.vector_store %arg13[%c39, %c0_6], %4 {strides = array<i32>} : memref<102x128xf32, #tpu.memory_space<vmem>>, vector<2x128xf32>,
    %c49 = arith.constant 49 : index
    %c0_7 = arith.constant 0 : index
    %8 = vector.load %arg13[%c49, %c0_7] : memref<102x128xf32, #tpu.memory_space<vmem>>, vector<2x128xf32>
    tpu.vector_store %arg13[%c49, %c0_7], %4 {strides = array<i32>} : memref<102x128xf32, #tpu.memory_space<vmem>>, vector<2x128xf32>,
    %c59 = arith.constant 59 : index
    %c0_8 = arith.constant 0 : index
    %9 = vector.load %arg13[%c59, %c0_8] : memref<102x128xf32, #tpu.memory_space<vmem>>, vector<2x128xf32>
    tpu.vector_store %arg13[%c59, %c0_8], %4 {strides = array<i32>} : memref<102x128xf32, #tpu.memory_space<vmem>>, vector<2x128xf32>,
    %c69 = arith.constant 69 : index
    %c0_9 = arith.constant 0 : index
    %10 = vector.load %arg13[%c69, %c0_9] : memref<102x128xf32, #tpu.memory_space<vmem>>, vector<2x128xf32>
    tpu.vector_store %arg13[%c69, %c0_9], %4 {strides = array<i32>} : memref<102x128xf32, #tpu.memory_space<vmem>>, vector<2x128xf32>,
    %c79 = arith.constant 79 : index
    %c0_10 = arith.constant 0 : index
    %11 = vector.load %arg13[%c79, %c0_10] : memref<102x128xf32, #tpu.memory_space<vmem>>, vector<2x128xf32>
    tpu.vector_store %arg13[%c79, %c0_10], %4 {strides = array<i32>} : memref<102x128xf32, #tpu.memory_space<vmem>>, vector<2x128xf32>,
    %cst_11 = arith.constant 0.000000e+00 : f32
    %12 = vector.broadcast %cst_11 : f32 to vector<7x128xf32>
    %c0_12 = arith.constant 0 : index
    %c0_13 = arith.constant 0 : index
    %13 = vector.load %arg14[%c0_12, %c0_13] : memref<38x128xf32, #tpu.memory_space<vmem>>, vector<7x128xf32>
    tpu.vector_store %arg14[%c0_12, %c0_13], %12 {strides = array<i32>} : memref<38x128xf32, #tpu.memory_space<vmem>>, vector<7x128xf32>,
    %cst_14 = arith.constant 0.000000e+00 : f32
    %14 = vector.broadcast %cst_14 : f32 to vector<9x128xf32>
    %c29_15 = arith.constant 29 : index
    %c0_16 = arith.constant 0 : index
    %15 = vector.load %arg14[%c29_15, %c0_16] : memref<38x128xf32, #tpu.memory_space<vmem>>, vector<9x128xf32>
    tpu.vector_store %arg14[%c29_15, %c0_16], %14 {strides = array<i32>} : memref<38x128xf32, #tpu.memory_space<vmem>>, vector<9x128xf32>,
    %cst_17 = arith.constant 0.000000e+00 : f32
    %16 = vector.broadcast %cst_17 : f32 to vector<2x128xf32>
    %c11 = arith.constant 11 : index
    %c0_18 = arith.constant 0 : index
    %17 = vector.load %arg14[%c11, %c0_18] : memref<38x128xf32, #tpu.memory_space<vmem>>, vector<2x128xf32>
    tpu.vector_store %arg14[%c11, %c0_18], %16 {strides = array<i32>} : memref<38x128xf32, #tpu.memory_space<vmem>>, vector<2x128xf32>,
    %c17 = arith.constant 17 : index
    %c0_19 = arith.constant 0 : index
    %18 = vector.load %arg14[%c17, %c0_19] : memref<38x128xf32, #tpu.memory_space<vmem>>, vector<2x128xf32>
    tpu.vector_store %arg14[%c17, %c0_19], %16 {strides = array<i32>} : memref<38x128xf32, #tpu.memory_space<vmem>>, vector<2x128xf32>,
    %c23 = arith.constant 23 : index
    %c0_20 = arith.constant 0 : index
    %19 = vector.load %arg14[%c23, %c0_20] : memref<38x128xf32, #tpu.memory_space<vmem>>, vector<2x128xf32>
    tpu.vector_store %arg14[%c23, %c0_20], %16 {strides = array<i32>} : memref<38x128xf32, #tpu.memory_space<vmem>>, vector<2x128xf32>,
    %cst_21 = arith.constant 0.000000e+00 : f32
    %20 = vector.broadcast %cst_21 : f32 to vector<5x128xf32>
    %c0_22 = arith.constant 0 : index
    %c0_23 = arith.constant 0 : index
    %21 = vector.load %arg15[%c0_22, %c0_23] : memref<18x128xf32, #tpu.memory_space<vmem>>, vector<5x128xf32>
    tpu.vector_store %arg15[%c0_22, %c0_23], %20 {strides = array<i32>} : memref<18x128xf32, #tpu.memory_space<vmem>>, vector<5x128xf32>,
    %cst_24 = arith.constant 0.000000e+00 : f32
    %22 = vector.broadcast %cst_24 : f32 to vector<7x128xf32>
    %c11_25 = arith.constant 11 : index
    %c0_26 = arith.constant 0 : index
    %23 = vector.load %arg15[%c11_25, %c0_26] : memref<18x128xf32, #tpu.memory_space<vmem>>, vector<7x128xf32>
    tpu.vector_store %arg15[%c11_25, %c0_26], %22 {strides = array<i32>} : memref<18x128xf32, #tpu.memory_space<vmem>>, vector<7x128xf32>,
    %cst_27 = arith.constant 0.000000e+00 : f32
    %24 = vector.broadcast %cst_27 : f32 to vector<2x128xf32>
    %c7 = arith.constant 7 : index
    %c0_28 = arith.constant 0 : index
    %25 = vector.load %arg15[%c7, %c0_28] : memref<18x128xf32, #tpu.memory_space<vmem>>, vector<2x128xf32>
    tpu.vector_store %arg15[%c7, %c0_28], %24 {strides = array<i32>} : memref<18x128xf32, #tpu.memory_space<vmem>>, vector<2x128xf32>,
    %c0_29 = arith.constant 0 : index
    %c0_30 = arith.constant 0 : index
    %c0_31 = arith.constant 0 : index
    %26 = vector.load %arg1[%c0_29, %c0_30, %c0_31] : memref<1x256x27xbf16, #tpu.memory_space<vmem>>, vector<1x256x27xbf16>
    %27 = vector.shape_cast %26 : vector<1x256x27xbf16> to vector<256x27xbf16>
    %c0_32 = arith.constant 0 : index
    %c0_33 = arith.constant 0 : index
    %28 = vector.load %arg2[%c0_32, %c0_33] : memref<27x128xbf16, #tpu.memory_space<vmem>>, vector<27x128xbf16>
    %cst_34 = arith.constant dense<0.000000e+00> : vector<256x128xf32>
    %29 = tpu.matmul %27, %28, %cst_34 {dimension_numbers = #tpu.dot_dimension_numbers<[1], [0], [0], [1], [0, 0, 1, 1], [], []>} : vector<256x27xbf16>, vector<27x128xbf16>, vector<256x128xf32> -> vector<256x128xf32>
    %c0_35 = arith.constant 0 : index
    %c0_36 = arith.constant 0 : index
    %30 = vector.load %arg6[%c0_35, %c0_36] : memref<4x128xf32, #tpu.memory_space<vmem>>, vector<1x128xf32>
    %31 = vector.broadcast %30 : vector<1x128xf32> to vector<256x128xf32>
    %32 = arith.mulf %29, %31 : vector<256x128xf32>
    %c0_37 = arith.constant 0 : index
    %c0_38 = arith.constant 0 : index
    %33 = vector.load %arg7[%c0_37, %c0_38] : memref<4x128xf32, #tpu.memory_space<vmem>>, vector<1x128xf32>
    %34 = vector.broadcast %33 : vector<1x128xf32> to vector<256x128xf32>
    %35 = arith.addf %32, %34 : vector<256x128xf32>
    %cst_39 = arith.constant 0.000000e+00 : f32
    %36 = vector.broadcast %cst_39 : f32 to vector<256x128xf32>
    %37 = arith.maximumf %35, %36 : vector<256x128xf32>
    %c0_40 = arith.constant 0 : index
    %c0_41 = arith.constant 0 : index
    %38 = vector.load %arg12[%c0_40, %c0_41] : memref<256x128xf32, #tpu.memory_space<vmem>>, vector<256x128xf32>
    tpu.vector_store %arg12[%c0_40, %c0_41], %37 {strides = array<i32>} : memref<256x128xf32, #tpu.memory_space<vmem>>, vector<256x128xf32>,
    %39 = tpu.iota {dimensions = array<i32: 0>} : vector<8x128xi32>
    %c2_i32 = arith.constant 2 : i32
    %40 = vector.broadcast %c2_i32 : i32 to vector<8x128xi32>
    %41 = arith.muli %40, %39 : vector<8x128xi32>
    %c0_42 = arith.constant 0 : index
    %c0_43 = arith.constant 0 : index
    %42 = tpu.strided_load %arg12[%c0_42, %c0_43] {strides = array<i32: 2, 1>} : memref<256x128xf32, #tpu.memory_space<vmem>>, vector<16x128xf32>
    %c1 = arith.constant 1 : index
    %c0_44 = arith.constant 0 : index
    %43 = tpu.strided_load %arg12[%c1, %c0_44] {strides = array<i32: 2, 1>} : memref<256x128xf32, #tpu.memory_space<vmem>>, vector<16x128xf32>
    %44 = vector.extract_strided_slice %42 {offsets = [0, 0], sizes = [8, 128], strides = [1, 1]} : vector<16x128xf32> to vector<8x128xf32>
    %45 = vector.extract_strided_slice %42 {offsets = [8, 0], sizes = [8, 128], strides = [1, 1]} : vector<16x128xf32> to vector<8x128xf32>
    %46 = vector.extract_strided_slice %43 {offsets = [0, 0], sizes = [8, 128], strides = [1, 1]} : vector<16x128xf32> to vector<8x128xf32>
    %47 = vector.extract_strided_slice %43 {offsets = [8, 0], sizes = [8, 128], strides = [1, 1]} : vector<16x128xf32> to vector<8x128xf32>
    %c0_i32 = arith.constant 0 : i32
    %48 = vector.broadcast %c0_i32 : i32 to vector<8x128xi32>
    %49 = arith.addi %48, %41 : vector<8x128xi32>
    %c16_i32 = arith.constant 16 : i32
    %50 = vector.broadcast %c16_i32 : i32 to vector<8x128xi32>
    %51 = arith.addi %50, %41 : vector<8x128xi32>
    %52 = arith.maximumf %44, %46 : vector<8x128xf32>
    %53 = arith.cmpf oge, %44, %46 : vector<8x128xf32>
    %c1_i32 = arith.constant 1 : i32
    %54 = vector.broadcast %c1_i32 : i32 to vector<8x128xi32>
    %55 = arith.addi %49, %54 : vector<8x128xi32>
    %56 = arith.select %53, %49, %55 : vector<8x128xi1>, vector<8x128xi32>
    %57 = arith.maximumf %45, %47 : vector<8x128xf32>
    %58 = arith.cmpf oge, %45, %47 : vector<8x128xf32>
    %c1_i32_45 = arith.constant 1 : i32
    %59 = vector.broadcast %c1_i32_45 : i32 to vector<8x128xi32>
    %60 = arith.addi %51, %59 : vector<8x128xi32>
    %61 = arith.select %58, %51, %60 : vector<8x128xi1>, vector<8x128xi32>
    %62 = arith.cmpf oge, %52, %57 : vector<8x128xf32>
    %63 = arith.select %62, %56, %61 : vector<8x128xi1>, vector<8x128xi32>
    %c0_46 = arith.constant 0 : index
    %c0_47 = arith.constant 0 : index
    %c0_48 = arith.constant 0 : index
    %64 = vector.load %arg9[%c0_46, %c0_47, %c0_48] : memref<1x64x128xi32, #tpu.memory_space<vmem>>, vector<1x8x128xi32>
    %65 = vector.shape_cast %64 : vector<1x8x128xi32> to vector<8x128xi32>
    %66 = vector.shape_cast %63 : vector<8x128xi32> to vector<1x8x128xi32>
    tpu.vector_store %arg9[%c0_46, %c0_47, %c0_48], %66 {strides = array<i32>} : memref<1x64x128xi32, #tpu.memory_space<vmem>>, vector<1x8x128xi32>,
    %67 = arith.maximumf %52, %57 : vector<8x128xf32>
    %c11_49 = arith.constant 11 : index
    %c0_50 = arith.constant 0 : index
    %68 = vector.load %arg13[%c11_49, %c0_50] : memref<102x128xf32, #tpu.memory_space<vmem>>, vector<8x128xf32>
    tpu.vector_store %arg13[%c11_49, %c0_50], %67 {strides = array<i32>} : memref<102x128xf32, #tpu.memory_space<vmem>>, vector<8x128xf32>,
    %c32 = arith.constant 32 : index
    %c0_51 = arith.constant 0 : index
    %69 = tpu.strided_load %arg12[%c32, %c0_51] {strides = array<i32: 2, 1>} : memref<256x128xf32, #tpu.memory_space<vmem>>, vector<16x128xf32>
    %c33 = arith.constant 33 : index
    %c0_52 = arith.constant 0 : index
    %70 = tpu.strided_load %arg12[%c33, %c0_52] {strides = array<i32: 2, 1>} : memref<256x128xf32, #tpu.memory_space<vmem>>, vector<16x128xf32>
    %71 = vector.extract_strided_slice %69 {offsets = [0, 0], sizes = [8, 128], strides = [1, 1]} : vector<16x128xf32> to vector<8x128xf32>
    %72 = vector.extract_strided_slice %69 {offsets = [8, 0], sizes = [8, 128], strides = [1, 1]} : vector<16x128xf32> to vector<8x128xf32>
    %73 = vector.extract_strided_slice %70 {offsets = [0, 0], sizes = [8, 128], strides = [1, 1]} : vector<16x128xf32> to vector<8x128xf32>
    %74 = vector.extract_strided_slice %70 {offsets = [8, 0], sizes = [8, 128], strides = [1, 1]} : vector<16x128xf32> to vector<8x128xf32>
    %c32_i32 = arith.constant 32 : i32
    %75 = vector.broadcast %c32_i32 : i32 to vector<8x128xi32>
    %76 = arith.addi %75, %41 : vector<8x128xi32>
    %c48_i32 = arith.constant 48 : i32
    %77 = vector.broadcast %c48_i32 : i32 to vector<8x128xi32>
    %78 = arith.addi %77, %41 : vector<8x128xi32>
    %79 = arith.maximumf %71, %73 : vector<8x128xf32>
    %80 = arith.cmpf oge, %71, %73 : vector<8x128xf32>
    %c1_i32_53 = arith.constant 1 : i32
    %81 = vector.broadcast %c1_i32_53 : i32 to vector<8x128xi32>
    %82 = arith.addi %76, %81 : vector<8x128xi32>
    %83 = arith.select %80, %76, %82 : vector<8x128xi1>, vector<8x128xi32>
    %84 = arith.maximumf %72, %74 : vector<8x128xf32>
    %85 = arith.cmpf oge, %72, %74 : vector<8x128xf32>
    %c1_i32_54 = arith.constant 1 : i32
    %86 = vector.broadcast %c1_i32_54 : i32 to vector<8x128xi32>
    %87 = arith.addi %78, %86 : vector<8x128xi32>
    %88 = arith.select %85, %78, %87 : vector<8x128xi1>, vector<8x128xi32>
    %89 = arith.cmpf oge, %79, %84 : vector<8x128xf32>
    %90 = arith.select %89, %83, %88 : vector<8x128xi1>, vector<8x128xi32>
    %c0_55 = arith.constant 0 : index
    %c8 = arith.constant 8 : index
    %c0_56 = arith.constant 0 : index
    %91 = vector.load %arg9[%c0_55, %c8, %c0_56] : memref<1x64x128xi32, #tpu.memory_space<vmem>>, vector<1x8x128xi32>
    %92 = vector.shape_cast %91 : vector<1x8x128xi32> to vector<8x128xi32>
    %93 = vector.shape_cast %90 : vector<8x128xi32> to vector<1x8x128xi32>
    tpu.vector_store %arg9[%c0_55, %c8, %c0_56], %93 {strides = array<i32>} : memref<1x64x128xi32, #tpu.memory_space<vmem>>, vector<1x8x128xi32>,
    %94 = arith.maximumf %79, %84 : vector<8x128xf32>
    %c21 = arith.constant 21 : index
    %c0_57 = arith.constant 0 : index
    %95 = vector.load %arg13[%c21, %c0_57] : memref<102x128xf32, #tpu.memory_space<vmem>>, vector<8x128xf32>
    tpu.vector_store %arg13[%c21, %c0_57], %94 {strides = array<i32>} : memref<102x128xf32, #tpu.memory_space<vmem>>, vector<8x128xf32>,
    %c64 = arith.constant 64 : index
    %c0_58 = arith.constant 0 : index
    %96 = tpu.strided_load %arg12[%c64, %c0_58] {strides = array<i32: 2, 1>} : memref<256x128xf32, #tpu.memory_space<vmem>>, vector<16x128xf32>
    %c65 = arith.constant 65 : index
    %c0_59 = arith.constant 0 : index
    %97 = tpu.strided_load %arg12[%c65, %c0_59] {strides = array<i32: 2, 1>} : memref<256x128xf32, #tpu.memory_space<vmem>>, vector<16x128xf32>
    %98 = vector.extract_strided_slice %96 {offsets = [0, 0], sizes = [8, 128], strides = [1, 1]} : vector<16x128xf32> to vector<8x128xf32>
    %99 = vector.extract_strided_slice %96 {offsets = [8, 0], sizes = [8, 128], strides = [1, 1]} : vector<16x128xf32> to vector<8x128xf32>
    %100 = vector.extract_strided_slice %97 {offsets = [0, 0], sizes = [8, 128], strides = [1, 1]} : vector<16x128xf32> to vector<8x128xf32>
    %101 = vector.extract_strided_slice %97 {offsets = [8, 0], sizes = [8, 128], strides = [1, 1]} : vector<16x128xf32> to vector<8x128xf32>
    %c64_i32 = arith.constant 64 : i32
    %102 = vector.broadcast %c64_i32 : i32 to vector<8x128xi32>
    %103 = arith.addi %102, %41 : vector<8x128xi32>
    %c80_i32 = arith.constant 80 : i32
    %104 = vector.broadcast %c80_i32 : i32 to vector<8x128xi32>
    %105 = arith.addi %104, %41 : vector<8x128xi32>
    %106 = arith.maximumf %98, %100 : vector<8x128xf32>
    %107 = arith.cmpf oge, %98, %100 : vector<8x128xf32>
    %c1_i32_60 = arith.constant 1 : i32
    %108 = vector.broadcast %c1_i32_60 : i32 to vector<8x128xi32>
    %109 = arith.addi %103, %108 : vector<8x128xi32>
    %110 = arith.select %107, %103, %109 : vector<8x128xi1>, vector<8x128xi32>
    %111 = arith.maximumf %99, %101 : vector<8x128xf32>
    %112 = arith.cmpf oge, %99, %101 : vector<8x128xf32>
    %c1_i32_61 = arith.constant 1 : i32
    %113 = vector.broadcast %c1_i32_61 : i32 to vector<8x128xi32>
    %114 = arith.addi %105, %113 : vector<8x128xi32>
    %115 = arith.select %112, %105, %114 : vector<8x128xi1>, vector<8x128xi32>
    %116 = arith.cmpf oge, %106, %111 : vector<8x128xf32>
    %117 = arith.select %116, %110, %115 : vector<8x128xi1>, vector<8x128xi32>
    %c0_62 = arith.constant 0 : index
    %c16 = arith.constant 16 : index
    %c0_63 = arith.constant 0 : index
    %118 = vector.load %arg9[%c0_62, %c16, %c0_63] : memref<1x64x128xi32, #tpu.memory_space<vmem>>, vector<1x8x128xi32>
    %119 = vector.shape_cast %118 : vector<1x8x128xi32> to vector<8x128xi32>
    %120 = vector.shape_cast %117 : vector<8x128xi32> to vector<1x8x128xi32>
    tpu.vector_store %arg9[%c0_62, %c16, %c0_63], %120 {strides = array<i32>} : memref<1x64x128xi32, #tpu.memory_space<vmem>>, vector<1x8x128xi32>,
    %121 = arith.maximumf %106, %111 : vector<8x128xf32>
    %c31 = arith.constant 31 : index
    %c0_64 = arith.constant 0 : index
    %122 = vector.load %arg13[%c31, %c0_64] : memref<102x128xf32, #tpu.memory_space<vmem>>, vector<8x128xf32>
    tpu.vector_store %arg13[%c31, %c0_64], %121 {strides = array<i32>} : memref<102x128xf32, #tpu.memory_space<vmem>>, vector<8x128xf32>,
    %c96 = arith.constant 96 : index
    %c0_65 = arith.constant 0 : index
    %123 = tpu.strided_load %arg12[%c96, %c0_65] {strides = array<i32: 2, 1>} : memref<256x128xf32, #tpu.memory_space<vmem>>, vector<16x128xf32>
    %c97 = arith.constant 97 : index
    %c0_66 = arith.constant 0 : index
    %124 = tpu.strided_load %arg12[%c97, %c0_66] {strides = array<i32: 2, 1>} : memref<256x128xf32, #tpu.memory_space<vmem>>, vector<16x128xf32>
    %125 = vector.extract_strided_slice %123 {offsets = [0, 0], sizes = [8, 128], strides = [1, 1]} : vector<16x128xf32> to vector<8x128xf32>
    %126 = vector.extract_strided_slice %123 {offsets = [8, 0], sizes = [8, 128], strides = [1, 1]} : vector<16x128xf32> to vector<8x128xf32>
    %127 = vector.extract_strided_slice %124 {offsets = [0, 0], sizes = [8, 128], strides = [1, 1]} : vector<16x128xf32> to vector<8x128xf32>
    %128 = vector.extract_strided_slice %124 {offsets = [8, 0], sizes = [8, 128], strides = [1, 1]} : vector<16x128xf32> to vector<8x128xf32>
    %c96_i32 = arith.constant 96 : i32
    %129 = vector.broadcast %c96_i32 : i32 to vector<8x128xi32>
    %130 = arith.addi %129, %41 : vector<8x128xi32>
    %c112_i32 = arith.constant 112 : i32
    %131 = vector.broadcast %c112_i32 : i32 to vector<8x128xi32>
    %132 = arith.addi %131, %41 : vector<8x128xi32>
    %133 = arith.maximumf %125, %127 : vector<8x128xf32>
    %134 = arith.cmpf oge, %125, %127 : vector<8x128xf32>
    %c1_i32_67 = arith.constant 1 : i32
    %135 = vector.broadcast %c1_i32_67 : i32 to vector<8x128xi32>
    %136 = arith.addi %130, %135 : vector<8x128xi32>
    %137 = arith.select %134, %130, %136 : vector<8x128xi1>, vector<8x128xi32>
    %138 = arith.maximumf %126, %128 : vector<8x128xf32>
    %139 = arith.cmpf oge, %126, %128 : vector<8x128xf32>
    %c1_i32_68 = arith.constant 1 : i32
    %140 = vector.broadcast %c1_i32_68 : i32 to vector<8x128xi32>
    %141 = arith.addi %132, %140 : vector<8x128xi32>
    %142 = arith.select %139, %132, %141 : vector<8x128xi1>, vector<8x128xi32>
    %143 = arith.cmpf oge, %133, %138 : vector<8x128xf32>
    %144 = arith.select %143, %137, %142 : vector<8x128xi1>, vector<8x128xi32>
    %c0_69 = arith.constant 0 : index
    %c24 = arith.constant 24 : index
    %c0_70 = arith.constant 0 : index
    %145 = vector.load %arg9[%c0_69, %c24, %c0_70] : memref<1x64x128xi32, #tpu.memory_space<vmem>>, vector<1x8x128xi32>
    %146 = vector.shape_cast %145 : vector<1x8x128xi32> to vector<8x128xi32>
    %147 = vector.shape_cast %144 : vector<8x128xi32> to vector<1x8x128xi32>
    tpu.vector_store %arg9[%c0_69, %c24, %c0_70], %147 {strides = array<i32>} : memref<1x64x128xi32, #tpu.memory_space<vmem>>, vector<1x8x128xi32>,
    %148 = arith.maximumf %133, %138 : vector<8x128xf32>
    %c41 = arith.constant 41 : index
    %c0_71 = arith.constant 0 : index
    %149 = vector.load %arg13[%c41, %c0_71] : memref<102x128xf32, #tpu.memory_space<vmem>>, vector<8x128xf32>
    tpu.vector_store %arg13[%c41, %c0_71], %148 {strides = array<i32>} : memref<102x128xf32, #tpu.memory_space<vmem>>, vector<8x128xf32>,
    %c128 = arith.constant 128 : index
    %c0_72 = arith.constant 0 : index
    %150 = tpu.strided_load %arg12[%c128, %c0_72] {strides = array<i32: 2, 1>} : memref<256x128xf32, #tpu.memory_space<vmem>>, vector<16x128xf32>
    %c129 = arith.constant 129 : index
    %c0_73 = arith.constant 0 : index
    %151 = tpu.strided_load %arg12[%c129, %c0_73] {strides = array<i32: 2, 1>} : memref<256x128xf32, #tpu.memory_space<vmem>>, vector<16x128xf32>
    %152 = vector.extract_strided_slice %150 {offsets = [0, 0], sizes = [8, 128], strides = [1, 1]} : vector<16x128xf32> to vector<8x128xf32>
    %153 = vector.extract_strided_slice %150 {offsets = [8, 0], sizes = [8, 128], strides = [1, 1]} : vector<16x128xf32> to vector<8x128xf32>
    %154 = vector.extract_strided_slice %151 {offsets = [0, 0], sizes = [8, 128], strides = [1, 1]} : vector<16x128xf32> to vector<8x128xf32>
    %155 = vector.extract_strided_slice %151 {offsets = [8, 0], sizes = [8, 128], strides = [1, 1]} : vector<16x128xf32> to vector<8x128xf32>
    %c128_i32 = arith.constant 128 : i32
    %156 = vector.broadcast %c128_i32 : i32 to vector<8x128xi32>
    %157 = arith.addi %156, %41 : vector<8x128xi32>
    %c144_i32 = arith.constant 144 : i32
    %158 = vector.broadcast %c144_i32 : i32 to vector<8x128xi32>
    %159 = arith.addi %158, %41 : vector<8x128xi32>
    %160 = arith.maximumf %152, %154 : vector<8x128xf32>
    %161 = arith.cmpf oge, %152, %154 : vector<8x128xf32>
    %c1_i32_74 = arith.constant 1 : i32
    %162 = vector.broadcast %c1_i32_74 : i32 to vector<8x128xi32>
    %163 = arith.addi %157, %162 : vector<8x128xi32>
    %164 = arith.select %161, %157, %163 : vector<8x128xi1>, vector<8x128xi32>
    %165 = arith.maximumf %153, %155 : vector<8x128xf32>
    %166 = arith.cmpf oge, %153, %155 : vector<8x128xf32>
    %c1_i32_75 = arith.constant 1 : i32
    %167 = vector.broadcast %c1_i32_75 : i32 to vector<8x128xi32>
    %168 = arith.addi %159, %167 : vector<8x128xi32>
    %169 = arith.select %166, %159, %168 : vector<8x128xi1>, vector<8x128xi32>
    %170 = arith.cmpf oge, %160, %165 : vector<8x128xf32>
    %171 = arith.select %170, %164, %169 : vector<8x128xi1>, vector<8x128xi32>
    %c0_76 = arith.constant 0 : index
    %c32_77 = arith.constant 32 : index
    %c0_78 = arith.constant 0 : index
    %172 = vector.load %arg9[%c0_76, %c32_77, %c0_78] : memref<1x64x128xi32, #tpu.memory_space<vmem>>, vector<1x8x128xi32>
    %173 = vector.shape_cast %172 : vector<1x8x128xi32> to vector<8x128xi32>
    %174 = vector.shape_cast %171 : vector<8x128xi32> to vector<1x8x128xi32>
    tpu.vector_store %arg9[%c0_76, %c32_77, %c0_78], %174 {strides = array<i32>} : memref<1x64x128xi32, #tpu.memory_space<vmem>>, vector<1x8x128xi32>,
    %175 = arith.maximumf %160, %165 : vector<8x128xf32>
    %c51 = arith.constant 51 : index
    %c0_79 = arith.constant 0 : index
    %176 = vector.load %arg13[%c51, %c0_79] : memref<102x128xf32, #tpu.memory_space<vmem>>, vector<8x128xf32>
    tpu.vector_store %arg13[%c51, %c0_79], %175 {strides = array<i32>} : memref<102x128xf32, #tpu.memory_space<vmem>>, vector<8x128xf32>,
    %c160 = arith.constant 160 : index
    %c0_80 = arith.constant 0 : index
    %177 = tpu.strided_load %arg12[%c160, %c0_80] {strides = array<i32: 2, 1>} : memref<256x128xf32, #tpu.memory_space<vmem>>, vector<16x128xf32>
    %c161 = arith.constant 161 : index
    %c0_81 = arith.constant 0 : index
    %178 = tpu.strided_load %arg12[%c161, %c0_81] {strides = array<i32: 2, 1>} : memref<256x128xf32, #tpu.memory_space<vmem>>, vector<16x128xf32>
    %179 = vector.extract_strided_slice %177 {offsets = [0, 0], sizes = [8, 128], strides = [1, 1]} : vector<16x128xf32> to vector<8x128xf32>
    %180 = vector.extract_strided_slice %177 {offsets = [8, 0], sizes = [8, 128], strides = [1, 1]} : vector<16x128xf32> to vector<8x128xf32>
    %181 = vector.extract_strided_slice %178 {offsets = [0, 0], sizes = [8, 128], strides = [1, 1]} : vector<16x128xf32> to vector<8x128xf32>
    %182 = vector.extract_strided_slice %178 {offsets = [8, 0], sizes = [8, 128], strides = [1, 1]} : vector<16x128xf32> to vector<8x128xf32>
    %c160_i32 = arith.constant 160 : i32
    %183 = vector.broadcast %c160_i32 : i32 to vector<8x128xi32>
    %184 = arith.addi %183, %41 : vector<8x128xi32>
    %c176_i32 = arith.constant 176 : i32
    %185 = vector.broadcast %c176_i32 : i32 to vector<8x128xi32>
    %186 = arith.addi %185, %41 : vector<8x128xi32>
    %187 = arith.maximumf %179, %181 : vector<8x128xf32>
    %188 = arith.cmpf oge, %179, %181 : vector<8x128xf32>
    %c1_i32_82 = arith.constant 1 : i32
    %189 = vector.broadcast %c1_i32_82 : i32 to vector<8x128xi32>
    %190 = arith.addi %184, %189 : vector<8x128xi32>
    %191 = arith.select %188, %184, %190 : vector<8x128xi1>, vector<8x128xi32>
    %192 = arith.maximumf %180, %182 : vector<8x128xf32>
    %193 = arith.cmpf oge, %180, %182 : vector<8x128xf32>
    %c1_i32_83 = arith.constant 1 : i32
    %194 = vector.broadcast %c1_i32_83 : i32 to vector<8x128xi32>
    %195 = arith.addi %186, %194 : vector<8x128xi32>
    %196 = arith.select %193, %186, %195 : vector<8x128xi1>, vector<8x128xi32>
    %197 = arith.cmpf oge, %187, %192 : vector<8x128xf32>
    %198 = arith.select %197, %191, %196 : vector<8x128xi1>, vector<8x128xi32>
    %c0_84 = arith.constant 0 : index
    %c40 = arith.constant 40 : index
    %c0_85 = arith.constant 0 : index
    %199 = vector.load %arg9[%c0_84, %c40, %c0_85] : memref<1x64x128xi32, #tpu.memory_space<vmem>>, vector<1x8x128xi32>
    %200 = vector.shape_cast %199 : vector<1x8x128xi32> to vector<8x128xi32>
    %201 = vector.shape_cast %198 : vector<8x128xi32> to vector<1x8x128xi32>
    tpu.vector_store %arg9[%c0_84, %c40, %c0_85], %201 {strides = array<i32>} : memref<1x64x128xi32, #tpu.memory_space<vmem>>, vector<1x8x128xi32>,
    %202 = arith.maximumf %187, %192 : vector<8x128xf32>
    %c61 = arith.constant 61 : index
    %c0_86 = arith.constant 0 : index
    %203 = vector.load %arg13[%c61, %c0_86] : memref<102x128xf32, #tpu.memory_space<vmem>>, vector<8x128xf32>
    tpu.vector_store %arg13[%c61, %c0_86], %202 {strides = array<i32>} : memref<102x128xf32, #tpu.memory_space<vmem>>, vector<8x128xf32>,
    %c192 = arith.constant 192 : index
    %c0_87 = arith.constant 0 : index
    %204 = tpu.strided_load %arg12[%c192, %c0_87] {strides = array<i32: 2, 1>} : memref<256x128xf32, #tpu.memory_space<vmem>>, vector<16x128xf32>
    %c193 = arith.constant 193 : index
    %c0_88 = arith.constant 0 : index
    %205 = tpu.strided_load %arg12[%c193, %c0_88] {strides = array<i32: 2, 1>} : memref<256x128xf32, #tpu.memory_space<vmem>>, vector<16x128xf32>
    %206 = vector.extract_strided_slice %204 {offsets = [0, 0], sizes = [8, 128], strides = [1, 1]} : vector<16x128xf32> to vector<8x128xf32>
    %207 = vector.extract_strided_slice %204 {offsets = [8, 0], sizes = [8, 128], strides = [1, 1]} : vector<16x128xf32> to vector<8x128xf32>
    %208 = vector.extract_strided_slice %205 {offsets = [0, 0], sizes = [8, 128], strides = [1, 1]} : vector<16x128xf32> to vector<8x128xf32>
    %209 = vector.extract_strided_slice %205 {offsets = [8, 0], sizes = [8, 128], strides = [1, 1]} : vector<16x128xf32> to vector<8x128xf32>
    %c192_i32 = arith.constant 192 : i32
    %210 = vector.broadcast %c192_i32 : i32 to vector<8x128xi32>
    %211 = arith.addi %210, %41 : vector<8x128xi32>
    %c208_i32 = arith.constant 208 : i32
    %212 = vector.broadcast %c208_i32 : i32 to vector<8x128xi32>
    %213 = arith.addi %212, %41 : vector<8x128xi32>
    %214 = arith.maximumf %206, %208 : vector<8x128xf32>
    %215 = arith.cmpf oge, %206, %208 : vector<8x128xf32>
    %c1_i32_89 = arith.constant 1 : i32
    %216 = vector.broadcast %c1_i32_89 : i32 to vector<8x128xi32>
    %217 = arith.addi %211, %216 : vector<8x128xi32>
    %218 = arith.select %215, %211, %217 : vector<8x128xi1>, vector<8x128xi32>
    %219 = arith.maximumf %207, %209 : vector<8x128xf32>
    %220 = arith.cmpf oge, %207, %209 : vector<8x128xf32>
    %c1_i32_90 = arith.constant 1 : i32
    %221 = vector.broadcast %c1_i32_90 : i32 to vector<8x128xi32>
    %222 = arith.addi %213, %221 : vector<8x128xi32>
    %223 = arith.select %220, %213, %222 : vector<8x128xi1>, vector<8x128xi32>
    %224 = arith.cmpf oge, %214, %219 : vector<8x128xf32>
    %225 = arith.select %224, %218, %223 : vector<8x128xi1>, vector<8x128xi32>
    %c0_91 = arith.constant 0 : index
    %c48 = arith.constant 48 : index
    %c0_92 = arith.constant 0 : index
    %226 = vector.load %arg9[%c0_91, %c48, %c0_92] : memref<1x64x128xi32, #tpu.memory_space<vmem>>, vector<1x8x128xi32>
    %227 = vector.shape_cast %226 : vector<1x8x128xi32> to vector<8x128xi32>
    %228 = vector.shape_cast %225 : vector<8x128xi32> to vector<1x8x128xi32>
    tpu.vector_store %arg9[%c0_91, %c48, %c0_92], %228 {strides = array<i32>} : memref<1x64x128xi32, #tpu.memory_space<vmem>>, vector<1x8x128xi32>,
    %229 = arith.maximumf %214, %219 : vector<8x128xf32>
    %c71 = arith.constant 71 : index
    %c0_93 = arith.constant 0 : index
    %230 = vector.load %arg13[%c71, %c0_93] : memref<102x128xf32, #tpu.memory_space<vmem>>, vector<8x128xf32>
    tpu.vector_store %arg13[%c71, %c0_93], %229 {strides = array<i32>} : memref<102x128xf32, #tpu.memory_space<vmem>>, vector<8x128xf32>,
    %c224 = arith.constant 224 : index
    %c0_94 = arith.constant 0 : index
    %231 = tpu.strided_load %arg12[%c224, %c0_94] {strides = array<i32: 2, 1>} : memref<256x128xf32, #tpu.memory_space<vmem>>, vector<16x128xf32>
    %c225 = arith.constant 225 : index
    %c0_95 = arith.constant 0 : index
    %232 = tpu.strided_load %arg12[%c225, %c0_95] {strides = array<i32: 2, 1>} : memref<256x128xf32, #tpu.memory_space<vmem>>, vector<16x128xf32>
    %233 = vector.extract_strided_slice %231 {offsets = [0, 0], sizes = [8, 128], strides = [1, 1]} : vector<16x128xf32> to vector<8x128xf32>
    %234 = vector.extract_strided_slice %231 {offsets = [8, 0], sizes = [8, 128], strides = [1, 1]} : vector<16x128xf32> to vector<8x128xf32>
    %235 = vector.extract_strided_slice %232 {offsets = [0, 0], sizes = [8, 128], strides = [1, 1]} : vector<16x128xf32> to vector<8x128xf32>
    %236 = vector.extract_strided_slice %232 {offsets = [8, 0], sizes = [8, 128], strides = [1, 1]} : vector<16x128xf32> to vector<8x128xf32>
    %c224_i32 = arith.constant 224 : i32
    %237 = vector.broadcast %c224_i32 : i32 to vector<8x128xi32>
    %238 = arith.addi %237, %41 : vector<8x128xi32>
    %c240_i32 = arith.constant 240 : i32
    %239 = vector.broadcast %c240_i32 : i32 to vector<8x128xi32>
    %240 = arith.addi %239, %41 : vector<8x128xi32>
    %241 = arith.maximumf %233, %235 : vector<8x128xf32>
    %242 = arith.cmpf oge, %233, %235 : vector<8x128xf32>
    %c1_i32_96 = arith.constant 1 : i32
    %243 = vector.broadcast %c1_i32_96 : i32 to vector<8x128xi32>
    %244 = arith.addi %238, %243 : vector<8x128xi32>
    %245 = arith.select %242, %238, %244 : vector<8x128xi1>, vector<8x128xi32>
    %246 = arith.maximumf %234, %236 : vector<8x128xf32>
    %247 = arith.cmpf oge, %234, %236 : vector<8x128xf32>
    %c1_i32_97 = arith.constant 1 : i32
    %248 = vector.broadcast %c1_i32_97 : i32 to vector<8x128xi32>
    %249 = arith.addi %240, %248 : vector<8x128xi32>
    %250 = arith.select %247, %240, %249 : vector<8x128xi1>, vector<8x128xi32>
    %251 = arith.cmpf oge, %241, %246 : vector<8x128xf32>
    %252 = arith.select %251, %245, %250 : vector<8x128xi1>, vector<8x128xi32>
    %c0_98 = arith.constant 0 : index
    %c56 = arith.constant 56 : index
    %c0_99 = arith.constant 0 : index
    %253 = vector.load %arg9[%c0_98, %c56, %c0_99] : memref<1x64x128xi32, #tpu.memory_space<vmem>>, vector<1x8x128xi32>
    %254 = vector.shape_cast %253 : vector<1x8x128xi32> to vector<8x128xi32>
    %255 = vector.shape_cast %252 : vector<8x128xi32> to vector<1x8x128xi32>
    tpu.vector_store %arg9[%c0_98, %c56, %c0_99], %255 {strides = array<i32>} : memref<1x64x128xi32, #tpu.memory_space<vmem>>, vector<1x8x128xi32>,
    %256 = arith.maximumf %241, %246 : vector<8x128xf32>
    %c81 = arith.constant 81 : index
    %c0_100 = arith.constant 0 : index
    %257 = vector.load %arg13[%c81, %c0_100] : memref<102x128xf32, #tpu.memory_space<vmem>>, vector<8x128xf32>
    tpu.vector_store %arg13[%c81, %c0_100], %256 {strides = array<i32>} : memref<102x128xf32, #tpu.memory_space<vmem>>, vector<8x128xf32>,
    %c0_101 = arith.constant 0 : index
    %c0_102 = arith.constant 0 : index
    %258 = vector.load %arg13[%c0_101, %c0_102] : memref<102x128xf32, #tpu.memory_space<vmem>>, vector<80x128xf32>
    %259 = arith.truncf %258 : vector<80x128xf32> to vector<80x128xbf16>
    %c1_103 = arith.constant 1 : index
    %c0_104 = arith.constant 0 : index
    %260 = vector.load %arg13[%c1_103, %c0_104] : memref<102x128xf32, #tpu.memory_space<vmem>>, vector<80x128xf32>
    %261 = arith.truncf %260 : vector<80x128xf32> to vector<80x128xbf16>
    %c2 = arith.constant 2 : index
    %c0_105 = arith.constant 0 : index
    %262 = vector.load %arg13[%c2, %c0_105] : memref<102x128xf32, #tpu.memory_space<vmem>>, vector<80x128xf32>
    %263 = arith.truncf %262 : vector<80x128xf32> to vector<80x128xbf16>
    %c10 = arith.constant 10 : index
    %c0_106 = arith.constant 0 : index
    %264 = vector.load %arg13[%c10, %c0_106] : memref<102x128xf32, #tpu.memory_space<vmem>>, vector<80x128xf32>
    %265 = arith.truncf %264 : vector<80x128xf32> to vector<80x128xbf16>
    %c11_107 = arith.constant 11 : index
    %c0_108 = arith.constant 0 : index
    %266 = vector.load %arg13[%c11_107, %c0_108] : memref<102x128xf32, #tpu.memory_space<vmem>>, vector<80x128xf32>
    %267 = arith.truncf %266 : vector<80x128xf32> to vector<80x128xbf16>
    %c12 = arith.constant 12 : index
    %c0_109 = arith.constant 0 : index
    %268 = vector.load %arg13[%c12, %c0_109] : memref<102x128xf32, #tpu.memory_space<vmem>>, vector<80x128xf32>
    %269 = arith.truncf %268 : vector<80x128xf32> to vector<80x128xbf16>
    %c20 = arith.constant 20 : index
    %c0_110 = arith.constant 0 : index
    %270 = vector.load %arg13[%c20, %c0_110] : memref<102x128xf32, #tpu.memory_space<vmem>>, vector<80x128xf32>
    %271 = arith.truncf %270 : vector<80x128xf32> to vector<80x128xbf16>
    %c21_111 = arith.constant 21 : index
    %c0_112 = arith.constant 0 : index
    %272 = vector.load %arg13[%c21_111, %c0_112] : memref<102x128xf32, #tpu.memory_space<vmem>>, vector<80x128xf32>
    %273 = arith.truncf %272 : vector<80x128xf32> to vector<80x128xbf16>
    %c22 = arith.constant 22 : index
    %c0_113 = arith.constant 0 : index
    %274 = vector.load %arg13[%c22, %c0_113] : memref<102x128xf32, #tpu.memory_space<vmem>>, vector<80x128xf32>
    %275 = arith.truncf %274 : vector<80x128xf32> to vector<80x128xbf16>
    %276 = tpu.concatenate %259, %261, %263, %265, %267, %269, %271, %273, %275 in 1 : vector<80x128xbf16>, vector<80x128xbf16>, vector<80x128xbf16>, vector<80x128xbf16>, vector<80x128xbf16>, vector<80x128xbf16>, vector<80x128xbf16>, vector<80x128xbf16>, vector<80x128xbf16> -> vector<80x1152xbf16>
    %c0_114 = arith.constant 0 : index
    %c0_115 = arith.constant 0 : index
    %277 = vector.load %arg3[%c0_114, %c0_115] : memref<1152x128xbf16, #tpu.memory_space<vmem>>, vector<1152x128xbf16>
    %cst_116 = arith.constant dense<0.000000e+00> : vector<80x128xf32>
    %278 = tpu.matmul %276, %277, %cst_116 {dimension_numbers = #tpu.dot_dimension_numbers<[1], [0], [0], [1], [0, 0, 1, 1], [], []>} : vector<80x1152xbf16>, vector<1152x128xbf16>, vector<80x128xf32> -> vector<80x128xf32>
    %c1_117 = arith.constant 1 : index
    %c0_118 = arith.constant 0 : index
    %279 = vector.load %arg6[%c1_117, %c0_118] : memref<4x128xf32, #tpu.memory_space<vmem>>, vector<1x128xf32>
    %280 = vector.broadcast %279 : vector<1x128xf32> to vector<80x128xf32>
    %281 = arith.mulf %278, %280 : vector<80x128xf32>
    %c1_119 = arith.constant 1 : index
    %c0_120 = arith.constant 0 : index
    %282 = vector.load %arg7[%c1_119, %c0_120] : memref<4x128xf32, #tpu.memory_space<vmem>>, vector<1x128xf32>
    %283 = vector.broadcast %282 : vector<1x128xf32> to vector<80x128xf32>
    %284 = arith.addf %281, %283 : vector<80x128xf32>
    %cst_121 = arith.constant 0.000000e+00 : f32
    %285 = vector.broadcast %cst_121 : f32 to vector<80x128xf32>
    %286 = arith.maximumf %284, %285 : vector<80x128xf32>
    %c0_122 = arith.constant 0 : index
    %c0_123 = arith.constant 0 : index
    %287 = vector.load %arg12[%c0_122, %c0_123] : memref<256x128xf32, #tpu.memory_space<vmem>>, vector<80x128xf32>
    tpu.vector_store %arg12[%c0_122, %c0_123], %286 {strides = array<i32>} : memref<256x128xf32, #tpu.memory_space<vmem>>, vector<80x128xf32>,
    %288 = tpu.iota {dimensions = array<i32: 0>} : vector<4x128xi32>
    %c2_i32_124 = arith.constant 2 : i32
    %289 = vector.broadcast %c2_i32_124 : i32 to vector<4x128xi32>
    %290 = arith.muli %289, %288 : vector<4x128xi32>
    %c0_125 = arith.constant 0 : index
    %c0_126 = arith.constant 0 : index
    %291 = tpu.strided_load %arg12[%c0_125, %c0_126] {strides = array<i32: 2, 1>} : memref<256x128xf32, #tpu.memory_space<vmem>>, vector<4x128xf32>
    %c1_127 = arith.constant 1 : index
    %c0_128 = arith.constant 0 : index
    %292 = tpu.strided_load %arg12[%c1_127, %c0_128] {strides = array<i32: 2, 1>} : memref<256x128xf32, #tpu.memory_space<vmem>>, vector<4x128xf32>
    %c10_129 = arith.constant 10 : index
    %c0_130 = arith.constant 0 : index
    %293 = tpu.strided_load %arg12[%c10_129, %c0_130] {strides = array<i32: 2, 1>} : memref<256x128xf32, #tpu.memory_space<vmem>>, vector<4x128xf32>
    %c11_131 = arith.constant 11 : index
    %c0_132 = arith.constant 0 : index
    %294 = tpu.strided_load %arg12[%c11_131, %c0_132] {strides = array<i32: 2, 1>} : memref<256x128xf32, #tpu.memory_space<vmem>>, vector<4x128xf32>
    %c0_i32_133 = arith.constant 0 : i32
    %295 = vector.broadcast %c0_i32_133 : i32 to vector<4x128xi32>
    %296 = arith.addi %295, %290 : vector<4x128xi32>
    %c8_i32 = arith.constant 8 : i32
    %297 = vector.broadcast %c8_i32 : i32 to vector<4x128xi32>
    %298 = arith.addi %297, %290 : vector<4x128xi32>
    %299 = arith.maximumf %291, %292 : vector<4x128xf32>
    %300 = arith.cmpf oge, %291, %292 : vector<4x128xf32>
    %c1_i32_134 = arith.constant 1 : i32
    %301 = vector.broadcast %c1_i32_134 : i32 to vector<4x128xi32>
    %302 = arith.addi %296, %301 : vector<4x128xi32>
    %303 = arith.select %300, %296, %302 : vector<4x128xi1>, vector<4x128xi32>
    %304 = arith.maximumf %293, %294 : vector<4x128xf32>
    %305 = arith.cmpf oge, %293, %294 : vector<4x128xf32>
    %c1_i32_135 = arith.constant 1 : i32
    %306 = vector.broadcast %c1_i32_135 : i32 to vector<4x128xi32>
    %307 = arith.addi %298, %306 : vector<4x128xi32>
    %308 = arith.select %305, %298, %307 : vector<4x128xi1>, vector<4x128xi32>
    %309 = arith.cmpf oge, %299, %304 : vector<4x128xf32>
    %310 = arith.select %309, %303, %308 : vector<4x128xi1>, vector<4x128xi32>
    %c0_136 = arith.constant 0 : index
    %c0_137 = arith.constant 0 : index
    %c0_138 = arith.constant 0 : index
    %311 = vector.load %arg10[%c0_136, %c0_137, %c0_138] : memref<1x16x128xi32, #tpu.memory_space<vmem>>, vector<1x4x128xi32>
    %312 = vector.shape_cast %311 : vector<1x4x128xi32> to vector<4x128xi32>
    %313 = vector.shape_cast %310 : vector<4x128xi32> to vector<1x4x128xi32>
    tpu.vector_store %arg10[%c0_136, %c0_137, %c0_138], %313 {strides = array<i32>} : memref<1x16x128xi32, #tpu.memory_space<vmem>>, vector<1x4x128xi32>,
    %314 = arith.maximumf %299, %304 : vector<4x128xf32>
    %c7_139 = arith.constant 7 : index
    %c0_140 = arith.constant 0 : index
    %315 = vector.load %arg14[%c7_139, %c0_140] : memref<38x128xf32, #tpu.memory_space<vmem>>, vector<4x128xf32>
    tpu.vector_store %arg14[%c7_139, %c0_140], %314 {strides = array<i32>} : memref<38x128xf32, #tpu.memory_space<vmem>>, vector<4x128xf32>,
    %c20_141 = arith.constant 20 : index
    %c0_142 = arith.constant 0 : index
    %316 = tpu.strided_load %arg12[%c20_141, %c0_142] {strides = array<i32: 2, 1>} : memref<256x128xf32, #tpu.memory_space<vmem>>, vector<4x128xf32>
    %c21_143 = arith.constant 21 : index
    %c0_144 = arith.constant 0 : index
    %317 = tpu.strided_load %arg12[%c21_143, %c0_144] {strides = array<i32: 2, 1>} : memref<256x128xf32, #tpu.memory_space<vmem>>, vector<4x128xf32>
    %c30 = arith.constant 30 : index
    %c0_145 = arith.constant 0 : index
    %318 = tpu.strided_load %arg12[%c30, %c0_145] {strides = array<i32: 2, 1>} : memref<256x128xf32, #tpu.memory_space<vmem>>, vector<4x128xf32>
    %c31_146 = arith.constant 31 : index
    %c0_147 = arith.constant 0 : index
    %319 = tpu.strided_load %arg12[%c31_146, %c0_147] {strides = array<i32: 2, 1>} : memref<256x128xf32, #tpu.memory_space<vmem>>, vector<4x128xf32>
    %c16_i32_148 = arith.constant 16 : i32
    %320 = vector.broadcast %c16_i32_148 : i32 to vector<4x128xi32>
    %321 = arith.addi %320, %290 : vector<4x128xi32>
    %c24_i32 = arith.constant 24 : i32
    %322 = vector.broadcast %c24_i32 : i32 to vector<4x128xi32>
    %323 = arith.addi %322, %290 : vector<4x128xi32>
    %324 = arith.maximumf %316, %317 : vector<4x128xf32>
    %325 = arith.cmpf oge, %316, %317 : vector<4x128xf32>
    %c1_i32_149 = arith.constant 1 : i32
    %326 = vector.broadcast %c1_i32_149 : i32 to vector<4x128xi32>
    %327 = arith.addi %321, %326 : vector<4x128xi32>
    %328 = arith.select %325, %321, %327 : vector<4x128xi1>, vector<4x128xi32>
    %329 = arith.maximumf %318, %319 : vector<4x128xf32>
    %330 = arith.cmpf oge, %318, %319 : vector<4x128xf32>
    %c1_i32_150 = arith.constant 1 : i32
    %331 = vector.broadcast %c1_i32_150 : i32 to vector<4x128xi32>
    %332 = arith.addi %323, %331 : vector<4x128xi32>
    %333 = arith.select %330, %323, %332 : vector<4x128xi1>, vector<4x128xi32>
    %334 = arith.cmpf oge, %324, %329 : vector<4x128xf32>
    %335 = arith.select %334, %328, %333 : vector<4x128xi1>, vector<4x128xi32>
    %c0_151 = arith.constant 0 : index
    %c4 = arith.constant 4 : index
    %c0_152 = arith.constant 0 : index
    %336 = vector.load %arg10[%c0_151, %c4, %c0_152] : memref<1x16x128xi32, #tpu.memory_space<vmem>>, vector<1x4x128xi32>
    %337 = vector.shape_cast %336 : vector<1x4x128xi32> to vector<4x128xi32>
    %338 = vector.shape_cast %335 : vector<4x128xi32> to vector<1x4x128xi32>
    tpu.vector_store %arg10[%c0_151, %c4, %c0_152], %338 {strides = array<i32>} : memref<1x16x128xi32, #tpu.memory_space<vmem>>, vector<1x4x128xi32>,
    %339 = arith.maximumf %324, %329 : vector<4x128xf32>
    %c13 = arith.constant 13 : index
    %c0_153 = arith.constant 0 : index
    %340 = vector.load %arg14[%c13, %c0_153] : memref<38x128xf32, #tpu.memory_space<vmem>>, vector<4x128xf32>
    tpu.vector_store %arg14[%c13, %c0_153], %339 {strides = array<i32>} : memref<38x128xf32, #tpu.memory_space<vmem>>, vector<4x128xf32>,
    %c40_154 = arith.constant 40 : index
    %c0_155 = arith.constant 0 : index
    %341 = tpu.strided_load %arg12[%c40_154, %c0_155] {strides = array<i32: 2, 1>} : memref<256x128xf32, #tpu.memory_space<vmem>>, vector<4x128xf32>
    %c41_156 = arith.constant 41 : index
    %c0_157 = arith.constant 0 : index
    %342 = tpu.strided_load %arg12[%c41_156, %c0_157] {strides = array<i32: 2, 1>} : memref<256x128xf32, #tpu.memory_space<vmem>>, vector<4x128xf32>
    %c50 = arith.constant 50 : index
    %c0_158 = arith.constant 0 : index
    %343 = tpu.strided_load %arg12[%c50, %c0_158] {strides = array<i32: 2, 1>} : memref<256x128xf32, #tpu.memory_space<vmem>>, vector<4x128xf32>
    %c51_159 = arith.constant 51 : index
    %c0_160 = arith.constant 0 : index
    %344 = tpu.strided_load %arg12[%c51_159, %c0_160] {strides = array<i32: 2, 1>} : memref<256x128xf32, #tpu.memory_space<vmem>>, vector<4x128xf32>
    %c32_i32_161 = arith.constant 32 : i32
    %345 = vector.broadcast %c32_i32_161 : i32 to vector<4x128xi32>
    %346 = arith.addi %345, %290 : vector<4x128xi32>
    %c40_i32 = arith.constant 40 : i32
    %347 = vector.broadcast %c40_i32 : i32 to vector<4x128xi32>
    %348 = arith.addi %347, %290 : vector<4x128xi32>
    %349 = arith.maximumf %341, %342 : vector<4x128xf32>
    %350 = arith.cmpf oge, %341, %342 : vector<4x128xf32>
    %c1_i32_162 = arith.constant 1 : i32
    %351 = vector.broadcast %c1_i32_162 : i32 to vector<4x128xi32>
    %352 = arith.addi %346, %351 : vector<4x128xi32>
    %353 = arith.select %350, %346, %352 : vector<4x128xi1>, vector<4x128xi32>
    %354 = arith.maximumf %343, %344 : vector<4x128xf32>
    %355 = arith.cmpf oge, %343, %344 : vector<4x128xf32>
    %c1_i32_163 = arith.constant 1 : i32
    %356 = vector.broadcast %c1_i32_163 : i32 to vector<4x128xi32>
    %357 = arith.addi %348, %356 : vector<4x128xi32>
    %358 = arith.select %355, %348, %357 : vector<4x128xi1>, vector<4x128xi32>
    %359 = arith.cmpf oge, %349, %354 : vector<4x128xf32>
    %360 = arith.select %359, %353, %358 : vector<4x128xi1>, vector<4x128xi32>
    %c0_164 = arith.constant 0 : index
    %c8_165 = arith.constant 8 : index
    %c0_166 = arith.constant 0 : index
    %361 = vector.load %arg10[%c0_164, %c8_165, %c0_166] : memref<1x16x128xi32, #tpu.memory_space<vmem>>, vector<1x4x128xi32>
    %362 = vector.shape_cast %361 : vector<1x4x128xi32> to vector<4x128xi32>
    %363 = vector.shape_cast %360 : vector<4x128xi32> to vector<1x4x128xi32>
    tpu.vector_store %arg10[%c0_164, %c8_165, %c0_166], %363 {strides = array<i32>} : memref<1x16x128xi32, #tpu.memory_space<vmem>>, vector<1x4x128xi32>,
    %364 = arith.maximumf %349, %354 : vector<4x128xf32>
    %c19_167 = arith.constant 19 : index
    %c0_168 = arith.constant 0 : index
    %365 = vector.load %arg14[%c19_167, %c0_168] : memref<38x128xf32, #tpu.memory_space<vmem>>, vector<4x128xf32>
    tpu.vector_store %arg14[%c19_167, %c0_168], %364 {strides = array<i32>} : memref<38x128xf32, #tpu.memory_space<vmem>>, vector<4x128xf32>,
    %c60 = arith.constant 60 : index
    %c0_169 = arith.constant 0 : index
    %366 = tpu.strided_load %arg12[%c60, %c0_169] {strides = array<i32: 2, 1>} : memref<256x128xf32, #tpu.memory_space<vmem>>, vector<4x128xf32>
    %c61_170 = arith.constant 61 : index
    %c0_171 = arith.constant 0 : index
    %367 = tpu.strided_load %arg12[%c61_170, %c0_171] {strides = array<i32: 2, 1>} : memref<256x128xf32, #tpu.memory_space<vmem>>, vector<4x128xf32>
    %c70 = arith.constant 70 : index
    %c0_172 = arith.constant 0 : index
    %368 = tpu.strided_load %arg12[%c70, %c0_172] {strides = array<i32: 2, 1>} : memref<256x128xf32, #tpu.memory_space<vmem>>, vector<4x128xf32>
    %c71_173 = arith.constant 71 : index
    %c0_174 = arith.constant 0 : index
    %369 = tpu.strided_load %arg12[%c71_173, %c0_174] {strides = array<i32: 2, 1>} : memref<256x128xf32, #tpu.memory_space<vmem>>, vector<4x128xf32>
    %c48_i32_175 = arith.constant 48 : i32
    %370 = vector.broadcast %c48_i32_175 : i32 to vector<4x128xi32>
    %371 = arith.addi %370, %290 : vector<4x128xi32>
    %c56_i32 = arith.constant 56 : i32
    %372 = vector.broadcast %c56_i32 : i32 to vector<4x128xi32>
    %373 = arith.addi %372, %290 : vector<4x128xi32>
    %374 = arith.maximumf %366, %367 : vector<4x128xf32>
    %375 = arith.cmpf oge, %366, %367 : vector<4x128xf32>
    %c1_i32_176 = arith.constant 1 : i32
    %376 = vector.broadcast %c1_i32_176 : i32 to vector<4x128xi32>
    %377 = arith.addi %371, %376 : vector<4x128xi32>
    %378 = arith.select %375, %371, %377 : vector<4x128xi1>, vector<4x128xi32>
    %379 = arith.maximumf %368, %369 : vector<4x128xf32>
    %380 = arith.cmpf oge, %368, %369 : vector<4x128xf32>
    %c1_i32_177 = arith.constant 1 : i32
    %381 = vector.broadcast %c1_i32_177 : i32 to vector<4x128xi32>
    %382 = arith.addi %373, %381 : vector<4x128xi32>
    %383 = arith.select %380, %373, %382 : vector<4x128xi1>, vector<4x128xi32>
    %384 = arith.cmpf oge, %374, %379 : vector<4x128xf32>
    %385 = arith.select %384, %378, %383 : vector<4x128xi1>, vector<4x128xi32>
    %c0_178 = arith.constant 0 : index
    %c12_179 = arith.constant 12 : index
    %c0_180 = arith.constant 0 : index
    %386 = vector.load %arg10[%c0_178, %c12_179, %c0_180] : memref<1x16x128xi32, #tpu.memory_space<vmem>>, vector<1x4x128xi32>
    %387 = vector.shape_cast %386 : vector<1x4x128xi32> to vector<4x128xi32>
    %388 = vector.shape_cast %385 : vector<4x128xi32> to vector<1x4x128xi32>
    tpu.vector_store %arg10[%c0_178, %c12_179, %c0_180], %388 {strides = array<i32>} : memref<1x16x128xi32, #tpu.memory_space<vmem>>, vector<1x4x128xi32>,
    %389 = arith.maximumf %374, %379 : vector<4x128xf32>
    %c25 = arith.constant 25 : index
    %c0_181 = arith.constant 0 : index
    %390 = vector.load %arg14[%c25, %c0_181] : memref<38x128xf32, #tpu.memory_space<vmem>>, vector<4x128xf32>
    tpu.vector_store %arg14[%c25, %c0_181], %389 {strides = array<i32>} : memref<38x128xf32, #tpu.memory_space<vmem>>, vector<4x128xf32>,
    %c0_182 = arith.constant 0 : index
    %c0_183 = arith.constant 0 : index
    %391 = vector.load %arg14[%c0_182, %c0_183] : memref<38x128xf32, #tpu.memory_space<vmem>>, vector<24x128xf32>
    %392 = arith.truncf %391 : vector<24x128xf32> to vector<24x128xbf16>
    %c1_184 = arith.constant 1 : index
    %c0_185 = arith.constant 0 : index
    %393 = vector.load %arg14[%c1_184, %c0_185] : memref<38x128xf32, #tpu.memory_space<vmem>>, vector<24x128xf32>
    %394 = arith.truncf %393 : vector<24x128xf32> to vector<24x128xbf16>
    %c2_186 = arith.constant 2 : index
    %c0_187 = arith.constant 0 : index
    %395 = vector.load %arg14[%c2_186, %c0_187] : memref<38x128xf32, #tpu.memory_space<vmem>>, vector<24x128xf32>
    %396 = arith.truncf %395 : vector<24x128xf32> to vector<24x128xbf16>
    %c6 = arith.constant 6 : index
    %c0_188 = arith.constant 0 : index
    %397 = vector.load %arg14[%c6, %c0_188] : memref<38x128xf32, #tpu.memory_space<vmem>>, vector<24x128xf32>
    %398 = arith.truncf %397 : vector<24x128xf32> to vector<24x128xbf16>
    %c7_189 = arith.constant 7 : index
    %c0_190 = arith.constant 0 : index
    %399 = vector.load %arg14[%c7_189, %c0_190] : memref<38x128xf32, #tpu.memory_space<vmem>>, vector<24x128xf32>
    %400 = arith.truncf %399 : vector<24x128xf32> to vector<24x128xbf16>
    %c8_191 = arith.constant 8 : index
    %c0_192 = arith.constant 0 : index
    %401 = vector.load %arg14[%c8_191, %c0_192] : memref<38x128xf32, #tpu.memory_space<vmem>>, vector<24x128xf32>
    %402 = arith.truncf %401 : vector<24x128xf32> to vector<24x128xbf16>
    %c12_193 = arith.constant 12 : index
    %c0_194 = arith.constant 0 : index
    %403 = vector.load %arg14[%c12_193, %c0_194] : memref<38x128xf32, #tpu.memory_space<vmem>>, vector<24x128xf32>
    %404 = arith.truncf %403 : vector<24x128xf32> to vector<24x128xbf16>
    %c13_195 = arith.constant 13 : index
    %c0_196 = arith.constant 0 : index
    %405 = vector.load %arg14[%c13_195, %c0_196] : memref<38x128xf32, #tpu.memory_space<vmem>>, vector<24x128xf32>
    %406 = arith.truncf %405 : vector<24x128xf32> to vector<24x128xbf16>
    %c14 = arith.constant 14 : index
    %c0_197 = arith.constant 0 : index
    %407 = vector.load %arg14[%c14, %c0_197] : memref<38x128xf32, #tpu.memory_space<vmem>>, vector<24x128xf32>
    %408 = arith.truncf %407 : vector<24x128xf32> to vector<24x128xbf16>
    %409 = tpu.concatenate %392, %394, %396, %398, %400, %402, %404, %406, %408 in 1 : vector<24x128xbf16>, vector<24x128xbf16>, vector<24x128xbf16>, vector<24x128xbf16>, vector<24x128xbf16>, vector<24x128xbf16>, vector<24x128xbf16>, vector<24x128xbf16>, vector<24x128xbf16> -> vector<24x1152xbf16>
    %c0_198 = arith.constant 0 : index
    %c0_199 = arith.constant 0 : index
    %410 = vector.load %arg4[%c0_198, %c0_199] : memref<1152x128xbf16, #tpu.memory_space<vmem>>, vector<1152x128xbf16>
    %cst_200 = arith.constant dense<0.000000e+00> : vector<24x128xf32>
    %411 = tpu.matmul %409, %410, %cst_200 {dimension_numbers = #tpu.dot_dimension_numbers<[1], [0], [0], [1], [0, 0, 1, 1], [], []>} : vector<24x1152xbf16>, vector<1152x128xbf16>, vector<24x128xf32> -> vector<24x128xf32>
    %c2_201 = arith.constant 2 : index
    %c0_202 = arith.constant 0 : index
    %412 = vector.load %arg6[%c2_201, %c0_202] : memref<4x128xf32, #tpu.memory_space<vmem>>, vector<1x128xf32>
    %413 = vector.broadcast %412 : vector<1x128xf32> to vector<24x128xf32>
    %414 = arith.mulf %411, %413 : vector<24x128xf32>
    %c2_203 = arith.constant 2 : index
    %c0_204 = arith.constant 0 : index
    %415 = vector.load %arg7[%c2_203, %c0_204] : memref<4x128xf32, #tpu.memory_space<vmem>>, vector<1x128xf32>
    %416 = vector.broadcast %415 : vector<1x128xf32> to vector<24x128xf32>
    %417 = arith.addf %414, %416 : vector<24x128xf32>
    %cst_205 = arith.constant 0.000000e+00 : f32
    %418 = vector.broadcast %cst_205 : f32 to vector<24x128xf32>
    %419 = arith.maximumf %417, %418 : vector<24x128xf32>
    %c0_206 = arith.constant 0 : index
    %c0_207 = arith.constant 0 : index
    %420 = vector.load %arg12[%c0_206, %c0_207] : memref<256x128xf32, #tpu.memory_space<vmem>>, vector<24x128xf32>
    tpu.vector_store %arg12[%c0_206, %c0_207], %419 {strides = array<i32>} : memref<256x128xf32, #tpu.memory_space<vmem>>, vector<24x128xf32>,
    %421 = tpu.iota {dimensions = array<i32: 0>} : vector<2x128xi32>
    %c2_i32_208 = arith.constant 2 : i32
    %422 = vector.broadcast %c2_i32_208 : i32 to vector<2x128xi32>
    %423 = arith.muli %422, %421 : vector<2x128xi32>
    %c0_209 = arith.constant 0 : index
    %c0_210 = arith.constant 0 : index
    %424 = tpu.strided_load %arg12[%c0_209, %c0_210] {strides = array<i32: 2, 1>} : memref<256x128xf32, #tpu.memory_space<vmem>>, vector<2x128xf32>
    %c1_211 = arith.constant 1 : index
    %c0_212 = arith.constant 0 : index
    %425 = tpu.strided_load %arg12[%c1_211, %c0_212] {strides = array<i32: 2, 1>} : memref<256x128xf32, #tpu.memory_space<vmem>>, vector<2x128xf32>
    %c6_213 = arith.constant 6 : index
    %c0_214 = arith.constant 0 : index
    %426 = tpu.strided_load %arg12[%c6_213, %c0_214] {strides = array<i32: 2, 1>} : memref<256x128xf32, #tpu.memory_space<vmem>>, vector<2x128xf32>
    %c7_215 = arith.constant 7 : index
    %c0_216 = arith.constant 0 : index
    %427 = tpu.strided_load %arg12[%c7_215, %c0_216] {strides = array<i32: 2, 1>} : memref<256x128xf32, #tpu.memory_space<vmem>>, vector<2x128xf32>
    %c0_i32_217 = arith.constant 0 : i32
    %428 = vector.broadcast %c0_i32_217 : i32 to vector<2x128xi32>
    %429 = arith.addi %428, %423 : vector<2x128xi32>
    %c4_i32 = arith.constant 4 : i32
    %430 = vector.broadcast %c4_i32 : i32 to vector<2x128xi32>
    %431 = arith.addi %430, %423 : vector<2x128xi32>
    %432 = arith.maximumf %424, %425 : vector<2x128xf32>
    %433 = arith.cmpf oge, %424, %425 : vector<2x128xf32>
    %c1_i32_218 = arith.constant 1 : i32
    %434 = vector.broadcast %c1_i32_218 : i32 to vector<2x128xi32>
    %435 = arith.addi %429, %434 : vector<2x128xi32>
    %436 = arith.select %433, %429, %435 : vector<2x128xi1>, vector<2x128xi32>
    %437 = arith.maximumf %426, %427 : vector<2x128xf32>
    %438 = arith.cmpf oge, %426, %427 : vector<2x128xf32>
    %c1_i32_219 = arith.constant 1 : i32
    %439 = vector.broadcast %c1_i32_219 : i32 to vector<2x128xi32>
    %440 = arith.addi %431, %439 : vector<2x128xi32>
    %441 = arith.select %438, %431, %440 : vector<2x128xi1>, vector<2x128xi32>
    %442 = arith.cmpf oge, %432, %437 : vector<2x128xf32>
    %443 = arith.select %442, %436, %441 : vector<2x128xi1>, vector<2x128xi32>
    %c0_220 = arith.constant 0 : index
    %c0_221 = arith.constant 0 : index
    %c0_222 = arith.constant 0 : index
    %444 = vector.load %arg11[%c0_220, %c0_221, %c0_222] : memref<1x4x128xi32, #tpu.memory_space<vmem>>, vector<1x2x128xi32>
    %445 = vector.shape_cast %444 : vector<1x2x128xi32> to vector<2x128xi32>
    %446 = vector.shape_cast %443 : vector<2x128xi32> to vector<1x2x128xi32>
    tpu.vector_store %arg11[%c0_220, %c0_221, %c0_222], %446 {strides = array<i32>} : memref<1x4x128xi32, #tpu.memory_space<vmem>>, vector<1x2x128xi32>,
    %447 = arith.maximumf %432, %437 : vector<2x128xf32>
    %c5 = arith.constant 5 : index
    %c0_223 = arith.constant 0 : index
    %448 = vector.load %arg15[%c5, %c0_223] : memref<18x128xf32, #tpu.memory_space<vmem>>, vector<2x128xf32>
    tpu.vector_store %arg15[%c5, %c0_223], %447 {strides = array<i32>} : memref<18x128xf32, #tpu.memory_space<vmem>>, vector<2x128xf32>,
    %c12_224 = arith.constant 12 : index
    %c0_225 = arith.constant 0 : index
    %449 = tpu.strided_load %arg12[%c12_224, %c0_225] {strides = array<i32: 2, 1>} : memref<256x128xf32, #tpu.memory_space<vmem>>, vector<2x128xf32>
    %c13_226 = arith.constant 13 : index
    %c0_227 = arith.constant 0 : index
    %450 = tpu.strided_load %arg12[%c13_226, %c0_227] {strides = array<i32: 2, 1>} : memref<256x128xf32, #tpu.memory_space<vmem>>, vector<2x128xf32>
    %c18 = arith.constant 18 : index
    %c0_228 = arith.constant 0 : index
    %451 = tpu.strided_load %arg12[%c18, %c0_228] {strides = array<i32: 2, 1>} : memref<256x128xf32, #tpu.memory_space<vmem>>, vector<2x128xf32>
    %c19_229 = arith.constant 19 : index
    %c0_230 = arith.constant 0 : index
    %452 = tpu.strided_load %arg12[%c19_229, %c0_230] {strides = array<i32: 2, 1>} : memref<256x128xf32, #tpu.memory_space<vmem>>, vector<2x128xf32>
    %c8_i32_231 = arith.constant 8 : i32
    %453 = vector.broadcast %c8_i32_231 : i32 to vector<2x128xi32>
    %454 = arith.addi %453, %423 : vector<2x128xi32>
    %c12_i32 = arith.constant 12 : i32
    %455 = vector.broadcast %c12_i32 : i32 to vector<2x128xi32>
    %456 = arith.addi %455, %423 : vector<2x128xi32>
    %457 = arith.maximumf %449, %450 : vector<2x128xf32>
    %458 = arith.cmpf oge, %449, %450 : vector<2x128xf32>
    %c1_i32_232 = arith.constant 1 : i32
    %459 = vector.broadcast %c1_i32_232 : i32 to vector<2x128xi32>
    %460 = arith.addi %454, %459 : vector<2x128xi32>
    %461 = arith.select %458, %454, %460 : vector<2x128xi1>, vector<2x128xi32>
    %462 = arith.maximumf %451, %452 : vector<2x128xf32>
    %463 = arith.cmpf oge, %451, %452 : vector<2x128xf32>
    %c1_i32_233 = arith.constant 1 : i32
    %464 = vector.broadcast %c1_i32_233 : i32 to vector<2x128xi32>
    %465 = arith.addi %456, %464 : vector<2x128xi32>
    %466 = arith.select %463, %456, %465 : vector<2x128xi1>, vector<2x128xi32>
    %467 = arith.cmpf oge, %457, %462 : vector<2x128xf32>
    %468 = arith.select %467, %461, %466 : vector<2x128xi1>, vector<2x128xi32>
    %c0_234 = arith.constant 0 : index
    %c2_235 = arith.constant 2 : index
    %c0_236 = arith.constant 0 : index
    %469 = vector.load %arg11[%c0_234, %c2_235, %c0_236] : memref<1x4x128xi32, #tpu.memory_space<vmem>>, vector<1x2x128xi32>
    %470 = vector.shape_cast %469 : vector<1x2x128xi32> to vector<2x128xi32>
    %471 = vector.shape_cast %468 : vector<2x128xi32> to vector<1x2x128xi32>
    tpu.vector_store %arg11[%c0_234, %c2_235, %c0_236], %471 {strides = array<i32>} : memref<1x4x128xi32, #tpu.memory_space<vmem>>, vector<1x2x128xi32>,
    %472 = arith.maximumf %457, %462 : vector<2x128xf32>
    %c9 = arith.constant 9 : index
    %c0_237 = arith.constant 0 : index
    %473 = vector.load %arg15[%c9, %c0_237] : memref<18x128xf32, #tpu.memory_space<vmem>>, vector<2x128xf32>
    tpu.vector_store %arg15[%c9, %c0_237], %472 {strides = array<i32>} : memref<18x128xf32, #tpu.memory_space<vmem>>, vector<2x128xf32>,
    %c0_238 = arith.constant 0 : index
    %c0_239 = arith.constant 0 : index
    %474 = vector.load %arg15[%c0_238, %c0_239] : memref<18x128xf32, #tpu.memory_space<vmem>>, vector<8x128xf32>
    %475 = arith.truncf %474 : vector<8x128xf32> to vector<8x128xbf16>
    %c1_240 = arith.constant 1 : index
    %c0_241 = arith.constant 0 : index
    %476 = vector.load %arg15[%c1_240, %c0_241] : memref<18x128xf32, #tpu.memory_space<vmem>>, vector<8x128xf32>
    %477 = arith.truncf %476 : vector<8x128xf32> to vector<8x128xbf16>
    %c2_242 = arith.constant 2 : index
    %c0_243 = arith.constant 0 : index
    %478 = vector.load %arg15[%c2_242, %c0_243] : memref<18x128xf32, #tpu.memory_space<vmem>>, vector<8x128xf32>
    %479 = arith.truncf %478 : vector<8x128xf32> to vector<8x128xbf16>
    %c4_244 = arith.constant 4 : index
    %c0_245 = arith.constant 0 : index
    %480 = vector.load %arg15[%c4_244, %c0_245] : memref<18x128xf32, #tpu.memory_space<vmem>>, vector<8x128xf32>
    %481 = arith.truncf %480 : vector<8x128xf32> to vector<8x128xbf16>
    %c5_246 = arith.constant 5 : index
    %c0_247 = arith.constant 0 : index
    %482 = vector.load %arg15[%c5_246, %c0_247] : memref<18x128xf32, #tpu.memory_space<vmem>>, vector<8x128xf32>
    %483 = arith.truncf %482 : vector<8x128xf32> to vector<8x128xbf16>
    %c6_248 = arith.constant 6 : index
    %c0_249 = arith.constant 0 : index
    %484 = vector.load %arg15[%c6_248, %c0_249] : memref<18x128xf32, #tpu.memory_space<vmem>>, vector<8x128xf32>
    %485 = arith.truncf %484 : vector<8x128xf32> to vector<8x128xbf16>
    %c8_250 = arith.constant 8 : index
    %c0_251 = arith.constant 0 : index
    %486 = vector.load %arg15[%c8_250, %c0_251] : memref<18x128xf32, #tpu.memory_space<vmem>>, vector<8x128xf32>
    %487 = arith.truncf %486 : vector<8x128xf32> to vector<8x128xbf16>
    %c9_252 = arith.constant 9 : index
    %c0_253 = arith.constant 0 : index
    %488 = vector.load %arg15[%c9_252, %c0_253] : memref<18x128xf32, #tpu.memory_space<vmem>>, vector<8x128xf32>
    %489 = arith.truncf %488 : vector<8x128xf32> to vector<8x128xbf16>
    %c10_254 = arith.constant 10 : index
    %c0_255 = arith.constant 0 : index
    %490 = vector.load %arg15[%c10_254, %c0_255] : memref<18x128xf32, #tpu.memory_space<vmem>>, vector<8x128xf32>
    %491 = arith.truncf %490 : vector<8x128xf32> to vector<8x128xbf16>
    %492 = tpu.concatenate %475, %477, %479, %481, %483, %485, %487, %489, %491 in 1 : vector<8x128xbf16>, vector<8x128xbf16>, vector<8x128xbf16>, vector<8x128xbf16>, vector<8x128xbf16>, vector<8x128xbf16>, vector<8x128xbf16>, vector<8x128xbf16>, vector<8x128xbf16> -> vector<8x1152xbf16>
    %c0_256 = arith.constant 0 : index
    %c0_257 = arith.constant 0 : index
    %493 = vector.load %arg5[%c0_256, %c0_257] : memref<1152x128xbf16, #tpu.memory_space<vmem>>, vector<1152x128xbf16>
    %cst_258 = arith.constant dense<0.000000e+00> : vector<8x128xf32>
    %494 = tpu.matmul %492, %493, %cst_258 {dimension_numbers = #tpu.dot_dimension_numbers<[1], [0], [0], [1], [0, 0, 1, 1], [], []>} : vector<8x1152xbf16>, vector<1152x128xbf16>, vector<8x128xf32> -> vector<8x128xf32>
    %c3 = arith.constant 3 : index
    %c0_259 = arith.constant 0 : index
    %495 = vector.load %arg6[%c3, %c0_259] : memref<4x128xf32, #tpu.memory_space<vmem>>, vector<1x128xf32>
    %496 = vector.broadcast %495 : vector<1x128xf32> to vector<8x128xf32>
    %497 = arith.mulf %494, %496 : vector<8x128xf32>
    %c3_260 = arith.constant 3 : index
    %c0_261 = arith.constant 0 : index
    %498 = vector.load %arg7[%c3_260, %c0_261] : memref<4x128xf32, #tpu.memory_space<vmem>>, vector<1x128xf32>
    %499 = vector.broadcast %498 : vector<1x128xf32> to vector<8x128xf32>
    %500 = arith.addf %497, %499 : vector<8x128xf32>
    %cst_262 = arith.constant 0.000000e+00 : f32
    %501 = vector.broadcast %cst_262 : f32 to vector<8x128xf32>
    %502 = arith.maximumf %500, %501 : vector<8x128xf32>
    %c0_263 = arith.constant 0 : index
    %c0_264 = arith.constant 0 : index
    %c0_265 = arith.constant 0 : index
    %503 = vector.load %arg8[%c0_263, %c0_264, %c0_265] : memref<1x8x128xf32, #tpu.memory_space<vmem>>, vector<1x8x128xf32>
    %504 = vector.shape_cast %503 : vector<1x8x128xf32> to vector<8x128xf32>
    %505 = vector.shape_cast %502 : vector<8x128xf32> to vector<1x8x128xf32>
    tpu.vector_store %arg8[%c0_263, %c0_264, %c0_265], %505 {strides = array<i32>} : memref<1x8x128xf32, #tpu.memory_space<vmem>>, vector<1x8x128xf32>,
    return
  }
  func.func @transform_0(%arg0: i32) -> (i32, i32, i32) {
    %c0_i32 = arith.constant 0 : i32
    %c0_i32_0 = arith.constant 0 : i32
    %c0_i32_1 = arith.constant 0 : i32
    return %arg0, %c0_i32, %c0_i32_0 : i32, i32, i32
  }
  func.func @transform_1(%arg0: i32) -> (i32, i32) {
    %c0_i32 = arith.constant 0 : i32
    %c0_i32_0 = arith.constant 0 : i32
    %c0_i32_1 = arith.constant 0 : i32
    return %c0_i32, %c0_i32_0 : i32, i32
  }
  func.func @transform_2(%arg0: i32) -> (i32, i32) {
    %c0_i32 = arith.constant 0 : i32
    %c0_i32_0 = arith.constant 0 : i32
    %c0_i32_1 = arith.constant 0 : i32
    return %c0_i32, %c0_i32_0 : i32, i32
  }
  func.func @transform_3(%arg0: i32) -> (i32, i32) {
    %c0_i32 = arith.constant 0 : i32
    %c0_i32_0 = arith.constant 0 : i32
    %c0_i32_1 = arith.constant 0 : i32
    return %c0_i32, %c0_i32_0 : i32, i32
  }
  func.func @transform_4(%arg0: i32) -> (i32, i32) {
    %c0_i32 = arith.constant 0 : i32
    %c0_i32_0 = arith.constant 0 : i32
    %c0_i32_1 = arith.constant 0 : i32
    return %c0_i32, %c0_i32_0 : i32, i32
  }
  func.func @transform_5(%arg0: i32) -> (i32, i32) {
    %c0_i32 = arith.constant 0 : i32
    %c0_i32_0 = arith.constant 0 : i32
    %c0_i32_1 = arith.constant 0 : i32
    return %c0_i32, %c0_i32_0 : i32, i32
  }
  func.func @transform_6(%arg0: i32) -> (i32, i32) {
    %c0_i32 = arith.constant 0 : i32
    %c0_i32_0 = arith.constant 0 : i32
    %c0_i32_1 = arith.constant 0 : i32
    return %c0_i32, %c0_i32_0 : i32, i32
  }
  func.func @transform_7(%arg0: i32) -> (i32, i32, i32) {
    %c0_i32 = arith.constant 0 : i32
    %c0_i32_0 = arith.constant 0 : i32
    %c0_i32_1 = arith.constant 0 : i32
    return %arg0, %c0_i32, %c0_i32_0 : i32, i32, i32
  }
  func.func @transform_8(%arg0: i32) -> (i32, i32, i32) {
    %c0_i32 = arith.constant 0 : i32
    %c0_i32_0 = arith.constant 0 : i32
    %c0_i32_1 = arith.constant 0 : i32
    return %arg0, %c0_i32, %c0_i32_0 : i32, i32, i32
  }
  func.func @transform_9(%arg0: i32) -> (i32, i32, i32) {
    %c0_i32 = arith.constant 0 : i32
    %c0_i32_0 = arith.constant 0 : i32
    %c0_i32_1 = arith.constant 0 : i32
    return %arg0, %c0_i32, %c0_i32_0 : i32, i32, i32
  }
  func.func @transform_10(%arg0: i32) -> (i32, i32, i32) {
    %c0_i32 = arith.constant 0 : i32
    %c0_i32_0 = arith.constant 0 : i32
    %c0_i32_1 = arith.constant 0 : i32
    return %arg0, %c0_i32, %c0_i32_0 : i32, i32, i32
  }
}

</mosaic_0001>

<llo_original>
// kernel: tpu_custom_call.1
$region0: #{tpu_custom_call.1}
  #allocation0 [shape = 'u32[]', space=smem, size = 0x4, offset = 0x4, fixed_abs, tag = 'smem constant byte address 0x4 - core index']
  #allocation1 [shape = 'u32[144,128]{1,0:T(1,128)}', space=vmem, size = 0x12000, scoped, tag = 'internal scratch']
  #allocation2 [shape = 'f32[256,128]{1,0:T(8,128)}', space=vmem, size = 0x20000, scoped, tag = 'scratch operand']
  #allocation3 [shape = 'f32[102,128]{1,0:T(8,128)}', space=vmem, size = 0xd000, scoped, tag = 'scratch operand']
  #allocation4 [shape = 'f32[38,128]{1,0:T(8,128)}', space=vmem, size = 0x5000, scoped, tag = 'scratch operand']
  #allocation5 [shape = 'f32[18,128]{1,0:T(8,128)}', space=vmem, size = 0x3000, scoped, tag = 'scratch operand']
  %s0 = inlined_call_operand.vmem [shape: bf16[2,256,27], index: 0, kind: input, shape index: {}]
  %s1 = inlined_call_operand.vmem [shape: bf16[27,128], index: 1, kind: input, shape index: {}]
  %s2 = inlined_call_operand.hbm [shape: bf16[1152,128], index: 2, kind: input, shape index: {}]
  %s3 = inlined_call_operand.hbm [shape: bf16[1152,128], index: 3, kind: input, shape index: {}]
  %s4 = inlined_call_operand.hbm [shape: bf16[1152,128], index: 4, kind: input, shape index: {}]
  %s5 = inlined_call_operand.vmem [shape: f32[4,128], index: 5, kind: input, shape index: {}]
  %s6 = inlined_call_operand.vmem [shape: f32[4,128], index: 6, kind: input, shape index: {}]
  %s7 = inlined_call_operand.hbm [shape: f32[2,8,128], index: 7, kind: output, shape index: {0}]
  %s8 = inlined_call_operand.hbm [shape: s32[2,64,128], index: 8, kind: output, shape index: {1}]
  %s9 = inlined_call_operand.hbm [shape: s32[2,16,128], index: 9, kind: output, shape index: {2}]
  %s10 = inlined_call_operand.hbm [shape: s32[2,4,128], index: 10, kind: output, shape index: {3}]
  %11 = xla_tuple %s7, %s8, %s9, %s10
  %s12 = sld [smem:[#allocation0]]
  $region97: #{tpu_custom_call.1} parent=0
    _
  %s14 = ssub.s32 1, %s12
  %s15 = scalar_select 0, %s14, %s12
  $region1: #{tpu_custom_call.1} parent=0
    #allocation6 [shape = 'u8[294912]{0}', space=vmem, size = 0x48000, scoped, tag = 'input window, operand 2, single buffered']
    #allocation7 [shape = 's32[2]{0}', space=sflag, size = 0x8, scoped, tag = 'scoped memory for tpu_custom_call.1']
    #allocation8 [shape = 's32[2]{0}', space=sflag, size = 0x8, scoped, tag = 'scoped memory for tpu_custom_call.1']
    #allocation9 [shape = 'u8[294912]{0}', space=vmem, size = 0x48000, scoped, tag = 'input window, operand 3, single buffered']
    #allocation10 [shape = 's32[1]{0}', space=sflag, size = 0x4, scoped, tag = 'scoped memory for tpu_custom_call.1']
    #allocation11 [shape = 'u8[294912]{0}', space=vmem, size = 0x48000, scoped, tag = 'input window, operand 4, single buffered']
    #allocation12 [shape = 'u8[8192]{0}', space=vmem, size = 0x2000, scoped, tag = 'output window, operand 0']
    #allocation13 [shape = 'u8[65536]{0}', space=vmem, size = 0x10000, scoped, tag = 'output window, operand 1']
    #allocation14 [shape = 's32[2]{0}', space=sflag, size = 0x8, scoped, tag = 'scoped memory for tpu_custom_call.1']
    #allocation15 [shape = 'u8[16384]{0}', space=vmem, size = 0x4000, scoped, tag = 'output window, operand 2']
    #allocation16 [shape = 'u8[4096]{0}', space=vmem, size = 0x1000, scoped, tag = 'output window, operand 3']
    #allocation17 [shape = 's32[2]{0}', space=sflag, size = 0x8, scoped, tag = 'scoped memory for tpu_custom_call.1']
    %16 = vsyncpa [#allocation7], 0
    %17 = vsyncpa [#allocation10], 0
    %18 = vsyncpa [#allocation8], 0
    %s19 = scalar_lea.sflag [#allocation8], 1
    %20 = vsyncpa %s19, 0
    %21 = vsyncpa [#allocation14], 0
    %s22 = scalar_lea.sflag [#allocation14], 1
    %23 = vsyncpa %s22, 0
    %24 = vsyncpa [#allocation17], 0
    %s25 = scalar_lea.sflag [#allocation17], 1
    %26 = vsyncpa %s25, 0
    loop: start=0, step=1, limit=4
    $region2: #{tpu_custom_call.1} parent=1 // loop_pre_header
      _
    $region3: #{tpu_custom_call.1} parent=1 // loop_header
      %s28 = sphi 0, %s32
      %p29 = scmp.ge.s32.totalorder %s28, 4
      %s38 = sphi 0, %s40
      %s41 = sphi 0, %s38
      %s42 = sphi 0, %s41
      %s58 = sphi 0, %s42
      %s62 = sphi 0, %s62
      %s64 = sphi 0, %s62
      %s65 = sphi 0, %s64
      %s79 = sphi 0, %s65
      %s83 = sphi 0, %s83
      %s85 = sphi 0, %s83
      %s86 = sphi 0, %s85
      %s100 = sphi 0, %s86
      %s104 = sphi 0, %s104
      %s106 = sphi 0, %s104
      %s107 = sphi 0, %s106
      %s121 = sphi 0, %s107
      %s125 = sphi 0, %s125
      %s127 = sphi 0, %s125
      %s128 = sphi 0, %s127
      %s142 = sphi 0, %s128
      %s146 = sphi 0, %s146
      %s148 = sphi 0, %s146
      %s149 = sphi 0, %s148
      %s163 = sphi 0, %s149
      %s167 = sphi 0, %s167
      %s169 = sphi 0, %s167
      %s170 = sphi 0, %s169
      %s184 = sphi 0, %s170
      %s190 = sphi 0, %s192
      %s193 = sphi 0, %s190
      %s194 = sphi 0, %s193
      %s210 = sphi 0, %s194
      %s216 = sphi 0, %s218
      %s219 = sphi 0, %s216
      %s220 = sphi 0, %s219
      %s236 = sphi 0, %s220
      %s242 = sphi 0, %s244
      %s245 = sphi 0, %s242
      %s246 = sphi 0, %s245
      %s262 = sphi 0, %s246
      %s268 = sphi 0, %s270
      %s271 = sphi 0, %s268
      %s272 = sphi 0, %s271
      %s288 = sphi 0, %s272
    $region4: #{tpu_custom_call.1} parent=1 // loop_header_branch
      %31 = sbr.rel (%p29) target = $region8
    $region5: #{tpu_custom_call.1} parent=1 // loop_body
      %s33 = ssub.s32 %s28, 1
      %s34 = ssub.s32 %s28, 2
      %s35 = sadd.s32 %s28, 1
      %s36 = ssub.s32 %s28, %s35
      %p37 = scmp.eq.s32.totalorder %s36, 0
      %s39 = sadd.s32 %s38, 1
      %s40 = scalar_select %p37, %s38, %s39
      %p43 = pneg %p37
      %p44 = scmp.eq.s32.totalorder %s28, 1
      %p45 = por %p43, %p44
      %p46 = scmp.ne.s32.totalorder %s38, %s41
      %p47 = scmp.eq.s32.totalorder %s28, 0
      %p48 = por %p46, %p47
      %p49 = scmp.ne.s32.totalorder %s38, %s41
      %p50 = scmp.eq.s32.totalorder %s33, 1
      %p51 = por %p49, %p50
      %p52 = scmp.ne.s32.totalorder %s41, %s42
      %p53 = scmp.eq.s32.totalorder %s33, 0
      %p54 = por %p52, %p53
      %p55 = scmp.ne.s32.totalorder %s41, %s42
      %p56 = scmp.eq.s32.totalorder %s34, 1
      %p57 = por %p55, %p56
      %p59 = scmp.ne.s32.totalorder %s42, %s58
      %p60 = scmp.eq.s32.totalorder %s34, 0
      %p61 = por %p59, %p60
      %s63 = sadd.s32 %s62, 1
      %p66 = scmp.eq.s32.totalorder %s28, 1
      %p67 = scmp.ne.s32.totalorder %s62, %s64
      %p68 = scmp.eq.s32.totalorder %s28, 0
      %p69 = por %p67, %p68
      %p70 = scmp.ne.s32.totalorder %s62, %s64
      %p71 = scmp.eq.s32.totalorder %s33, 1
      %p72 = por %p70, %p71
      %p73 = scmp.ne.s32.totalorder %s64, %s65
      %p74 = scmp.eq.s32.totalorder %s33, 0
      %p75 = por %p73, %p74
      %p76 = scmp.ne.s32.totalorder %s64, %s65
      %p77 = scmp.eq.s32.totalorder %s34, 1
      %p78 = por %p76, %p77
      %p80 = scmp.ne.s32.totalorder %s65, %s79
      %p81 = scmp.eq.s32.totalorder %s34, 0
      %p82 = por %p80, %p81
      %s84 = sadd.s32 %s83, 1
      %p87 = scmp.eq.s32.totalorder %s28, 1
      %p88 = scmp.ne.s32.totalorder %s83, %s85
      %p89 = scmp.eq.s32.totalorder %s28, 0
      %p90 = por %p88, %p89
      %p91 = scmp.ne.s32.totalorder %s83, %s85
      %p92 = scmp.eq.s32.totalorder %s33, 1
      %p93 = por %p91, %p92
      %p94 = scmp.ne.s32.totalorder %s85, %s86
      %p95 = scmp.eq.s32.totalorder %s33, 0
      %p96 = por %p94, %p95
      %p97 = scmp.ne.s32.totalorder %s85, %s86
      %p98 = scmp.eq.s32.totalorder %s34, 1
      %p99 = por %p97, %p98
      %p101 = scmp.ne.s32.totalorder %s86, %s100
      %p102 = scmp.eq.s32.totalorder %s34, 0
      %p103 = por %p101, %p102
      %s105 = sadd.s32 %s104, 1
      %p108 = scmp.eq.s32.totalorder %s28, 1
      %p109 = scmp.ne.s32.totalorder %s104, %s106
      %p110 = scmp.eq.s32.totalorder %s28, 0
      %p111 = por %p109, %p110
      %p112 = scmp.ne.s32.totalorder %s104, %s106
      %p113 = scmp.eq.s32.totalorder %s33, 1
      %p114 = por %p112, %p113
      %p115 = scmp.ne.s32.totalorder %s106, %s107
      %p116 = scmp.eq.s32.totalorder %s33, 0
      %p117 = por %p115, %p116
      %p118 = scmp.ne.s32.totalorder %s106, %s107
      %p119 = scmp.eq.s32.totalorder %s34, 1
      %p120 = por %p118, %p119
      %p122 = scmp.ne.s32.totalorder %s107, %s121
      %p123 = scmp.eq.s32.totalorder %s34, 0
      %p124 = por %p122, %p123
      %s126 = sadd.s32 %s125, 1
      %p129 = scmp.eq.s32.totalorder %s28, 1
      %p130 = scmp.ne.s32.totalorder %s125, %s127
      %p131 = scmp.eq.s32.totalorder %s28, 0
      %p132 = por %p130, %p131
      %p133 = scmp.ne.s32.totalorder %s125, %s127
      %p134 = scmp.eq.s32.totalorder %s33, 1
      %p135 = por %p133, %p134
      %p136 = scmp.ne.s32.totalorder %s127, %s128
      %p137 = scmp.eq.s32.totalorder %s33, 0
      %p138 = por %p136, %p137
      %p139 = scmp.ne.s32.totalorder %s127, %s128
      %p140 = scmp.eq.s32.totalorder %s34, 1
      %p141 = por %p139, %p140
      %p143 = scmp.ne.s32.totalorder %s128, %s142
      %p144 = scmp.eq.s32.totalorder %s34, 0
      %p145 = por %p143, %p144
      %s147 = sadd.s32 %s146, 1
      %p150 = scmp.eq.s32.totalorder %s28, 1
      %p151 = scmp.ne.s32.totalorder %s146, %s148
      %p152 = scmp.eq.s32.totalorder %s28, 0
      %p153 = por %p151, %p152
      %p154 = scmp.ne.s32.totalorder %s146, %s148
      %p155 = scmp.eq.s32.totalorder %s33, 1
      %p156 = por %p154, %p155
      %p157 = scmp.ne.s32.totalorder %s148, %s149
      %p158 = scmp.eq.s32.totalorder %s33, 0
      %p159 = por %p157, %p158
      %p160 = scmp.ne.s32.totalorder %s148, %s149
      %p161 = scmp.eq.s32.totalorder %s34, 1
      %p162 = por %p160, %p161
      %p164 = scmp.ne.s32.totalorder %s149, %s163
      %p165 = scmp.eq.s32.totalorder %s34, 0
      %p166 = por %p164, %p165
      %s168 = sadd.s32 %s167, 1
      %p171 = scmp.eq.s32.totalorder %s28, 1
      %p172 = scmp.ne.s32.totalorder %s167, %s169
      %p173 = scmp.eq.s32.totalorder %s28, 0
      %p174 = por %p172, %p173
      %p175 = scmp.ne.s32.totalorder %s167, %s169
      %p176 = scmp.eq.s32.totalorder %s33, 1
      %p177 = por %p175, %p176
      %p178 = scmp.ne.s32.totalorder %s169, %s170
      %p179 = scmp.eq.s32.totalorder %s33, 0
      %p180 = por %p178, %p179
      %p181 = scmp.ne.s32.totalorder %s169, %s170
      %p182 = scmp.eq.s32.totalorder %s34, 1
      %p183 = por %p181, %p182
      %p185 = scmp.ne.s32.totalorder %s170, %s184
      %p186 = scmp.eq.s32.totalorder %s34, 0
      %p187 = por %p185, %p186
      %s188 = ssub.s32 %s28, %s35
      %p189 = scmp.eq.s32.totalorder %s188, 0
      %s191 = sadd.s32 %s190, 1
      %s192 = scalar_select %p189, %s190, %s191
      %p195 = pneg %p189
      %p196 = scmp.eq.s32.totalorder %s28, 1
      %p197 = por %p195, %p196
      %p198 = scmp.ne.s32.totalorder %s190, %s193
      %p199 = scmp.eq.s32.totalorder %s28, 0
      %p200 = por %p198, %p199
      %p201 = scmp.ne.s32.totalorder %s190, %s193
      %p202 = scmp.eq.s32.totalorder %s33, 1
      %p203 = por %p201, %p202
      %p204 = scmp.ne.s32.totalorder %s193, %s194
      %p205 = scmp.eq.s32.totalorder %s33, 0
      %p206 = por %p204, %p205
      %p207 = scmp.ne.s32.totalorder %s193, %s194
      %p208 = scmp.eq.s32.totalorder %s34, 1
      %p209 = por %p207, %p208
      %p211 = scmp.ne.s32.totalorder %s194, %s210
      %p212 = scmp.eq.s32.totalorder %s34, 0
      %p213 = por %p211, %p212
      %s214 = ssub.s32 %s28, %s35
      %p215 = scmp.eq.s32.totalorder %s214, 0
      %s217 = sadd.s32 %s216, 1
      %s218 = scalar_select %p215, %s216, %s217
      %p221 = pneg %p215
      %p222 = scmp.eq.s32.totalorder %s28, 1
      %p223 = por %p221, %p222
      %p224 = scmp.ne.s32.totalorder %s216, %s219
      %p225 = scmp.eq.s32.totalorder %s28, 0
      %p226 = por %p224, %p225
      %p227 = scmp.ne.s32.totalorder %s216, %s219
      %p228 = scmp.eq.s32.totalorder %s33, 1
      %p229 = por %p227, %p228
      %p230 = scmp.ne.s32.totalorder %s219, %s220
      %p231 = scmp.eq.s32.totalorder %s33, 0
      %p232 = por %p230, %p231
      %p233 = scmp.ne.s32.totalorder %s219, %s220
      %p234 = scmp.eq.s32.totalorder %s34, 1
      %p235 = por %p233, %p234
      %p237 = scmp.ne.s32.totalorder %s220, %s236
      %p238 = scmp.eq.s32.totalorder %s34, 0
      %p239 = por %p237, %p238
      %s240 = ssub.s32 %s28, %s35
      %p241 = scmp.eq.s32.totalorder %s240, 0
      %s243 = sadd.s32 %s242, 1
      %s244 = scalar_select %p241, %s242, %s243
      %p247 = pneg %p241
      %p248 = scmp.eq.s32.totalorder %s28, 1
      %p249 = por %p247, %p248
      %p250 = scmp.ne.s32.totalorder %s242, %s245
      %p251 = scmp.eq.s32.totalorder %s28, 0
      %p252 = por %p250, %p251
      %p253 = scmp.ne.s32.totalorder %s242, %s245
      %p254 = scmp.eq.s32.totalorder %s33, 1
      %p255 = por %p253, %p254
      %p256 = scmp.ne.s32.totalorder %s245, %s246
      %p257 = scmp.eq.s32.totalorder %s33, 0
      %p258 = por %p256, %p257
      %p259 = scmp.ne.s32.totalorder %s245, %s246
      %p260 = scmp.eq.s32.totalorder %s34, 1
      %p261 = por %p259, %p260
      %p263 = scmp.ne.s32.totalorder %s246, %s262
      %p264 = scmp.eq.s32.totalorder %s34, 0
      %p265 = por %p263, %p264
      %s266 = ssub.s32 %s28, %s35
      %p267 = scmp.eq.s32.totalorder %s266, 0
      %s269 = sadd.s32 %s268, 1
      %s270 = scalar_select %p267, %s268, %s269
      %p273 = pneg %p267
      %p274 = scmp.eq.s32.totalorder %s28, 1
      %p275 = por %p273, %p274
      %p276 = scmp.ne.s32.totalorder %s268, %s271
      %p277 = scmp.eq.s32.totalorder %s28, 0
      %p278 = por %p276, %p277
      %p279 = scmp.ne.s32.totalorder %s268, %s271
      %p280 = scmp.eq.s32.totalorder %s33, 1
      %p281 = por %p279, %p280
      %p282 = scmp.ne.s32.totalorder %s271, %s272
      %p283 = scmp.eq.s32.totalorder %s33, 0
      %p284 = por %p282, %p283
      %p285 = scmp.ne.s32.totalorder %s271, %s272
      %p286 = scmp.eq.s32.totalorder %s34, 1
      %p287 = por %p285, %p286
      %p289 = scmp.ne.s32.totalorder %s272, %s288
      %p290 = scmp.eq.s32.totalorder %s34, 0
      %p291 = por %p289, %p290
      %p292 = scmp.le.s32.totalorder 1, %s28
      %p293 = scmp.lt.s32.totalorder %s28, 3
      %p294 = pnand %p292, %p293
      %p295 = pneg %p294
      // Predicated region
      $region9: #{tpu_custom_call.1} parent=5 // pred_check
        _
      $region10: #{tpu_custom_call.1} parent=5 // pred_check_branch
        %297 = sbr.rel (%p294) target = $region12
      $region11: #{tpu_custom_call.1} parent=5 // pred_region
        %s298 = ssub.s32 %s28, 1
        // Predicated region
        $region13: #{tpu_custom_call.1} parent=11 // pred_check
          %p299 = pneg %p75
        $region14: #{tpu_custom_call.1} parent=11 // pred_check_branch
          %301 = sbr.rel (%p299) target = $region16
        $region15: #{tpu_custom_call.1} parent=11 // pred_region
          _
        $region16: #{tpu_custom_call.1} parent=11 // pred_fallthru
          _
        // Predicated region
        $region17: #{tpu_custom_call.1} parent=11 // pred_check
          %p302 = pneg %p96
        $region18: #{tpu_custom_call.1} parent=11 // pred_check_branch
          %304 = sbr.rel (%p302) target = $region20
        $region19: #{tpu_custom_call.1} parent=11 // pred_region
          %s306 = ssub.s32 9216, 9216
          %307 = vsyncadd [#allocation7], %s306
          %s308 = sshll.u32 [#allocation6], 4
          %s309 = int_to_ptr.vmem [resolvable:$true] %s308
          %314 = dma.hbm_to_vmem [thread:$0]  %s2, 9216, %s309, [#allocation7], 64, 64, 4
        $region20: #{tpu_custom_call.1} parent=11 // pred_fallthru
          _
        // Predicated region
        $region21: #{tpu_custom_call.1} parent=11 // pred_check
          %p315 = pneg %p117
        $region22: #{tpu_custom_call.1} parent=11 // pred_check_branch
          %317 = sbr.rel (%p315) target = $region24
        $region23: #{tpu_custom_call.1} parent=11 // pred_region
          %s319 = ssub.s32 9216, 9216
          %320 = vsyncadd [#allocation10], %s319
          %s321 = sshll.u32 [#allocation9], 4
          %s322 = int_to_ptr.vmem [resolvable:$true] %s321
          %327 = dma.hbm_to_vmem [thread:$0]  %s3, 9216, %s322, [#allocation10], 64, 64, 4
        $region24: #{tpu_custom_call.1} parent=11 // pred_fallthru
          _
        // Predicated region
        $region25: #{tpu_custom_call.1} parent=11 // pred_check
          %p328 = pneg %p138
        $region26: #{tpu_custom_call.1} parent=11 // pred_check_branch
          %330 = sbr.rel (%p328) target = $region28
        $region27: #{tpu_custom_call.1} parent=11 // pred_region
          %s332 = ssub.s32 9216, 9216
          %333 = vsyncadd [#allocation10], %s332
          %s334 = sshll.u32 [#allocation11], 4
          %s335 = int_to_ptr.vmem [resolvable:$true] %s334
          %340 = dma.hbm_to_vmem [thread:$0]  %s4, 9216, %s335, [#allocation10], 64, 64, 4
        $region28: #{tpu_custom_call.1} parent=11 // pred_fallthru
          _
        // Predicated region
        $region29: #{tpu_custom_call.1} parent=11 // pred_check
          %p341 = pneg %p159
        $region30: #{tpu_custom_call.1} parent=11 // pred_check_branch
          %343 = sbr.rel (%p341) target = $region32
        $region31: #{tpu_custom_call.1} parent=11 // pred_region
          _
        $region32: #{tpu_custom_call.1} parent=11 // pred_fallthru
          _
        // Predicated region
        $region33: #{tpu_custom_call.1} parent=11 // pred_check
          %p344 = pneg %p180
        $region34: #{tpu_custom_call.1} parent=11 // pred_check_branch
          %346 = sbr.rel (%p344) target = $region36
        $region35: #{tpu_custom_call.1} parent=11 // pred_region
          _
        $region36: #{tpu_custom_call.1} parent=11 // pred_fallthru
          _
      $region12: #{tpu_custom_call.1} parent=5 // pred_fallthru
        _
      %p347 = scmp.lt.s32.totalorder %s28, 2
      // Predicated region
      $region37: #{tpu_custom_call.1} parent=5 // pred_check
        %p348 = pneg %p347
      $region38: #{tpu_custom_call.1} parent=5 // pred_check_branch
        %350 = sbr.rel (%p348) target = $region40
      $region39: #{tpu_custom_call.1} parent=5 // pred_region
        // Predicated region
        $region41: #{tpu_custom_call.1} parent=39 // pred_check
          %p351 = pneg %p48
        $region42: #{tpu_custom_call.1} parent=39 // pred_check_branch
          %353 = sbr.rel (%p351) target = $region44
        $region43: #{tpu_custom_call.1} parent=39 // pred_region
          %p354 = scmp.lt.s32.totalorder %s28, 1
          %s355 = scalar_select %p354, %s28, 1
          %s356 = smul.addr %s355, 32
          %s357 = smul.addr %s356, 4
          %s358 = scalar_lea.vmem %s0, %s357
        $region44: #{tpu_custom_call.1} parent=39 // pred_fallthru
          _
      $region40: #{tpu_custom_call.1} parent=5 // pred_fallthru
        _
      %p359 = scmp.le.s32.totalorder 1, %s28
      %p360 = scmp.lt.s32.totalorder %s28, 3
      %p361 = pnand %p359, %p360
      %p362 = pneg %p361
      // Predicated region
      $region45: #{tpu_custom_call.1} parent=5 // pred_check
        _
      $region46: #{tpu_custom_call.1} parent=5 // pred_check_branch
        %364 = sbr.rel (%p361) target = $region48
      $region47: #{tpu_custom_call.1} parent=5 // pred_region
        %s365 = ssub.s32 %s28, 1
        // Predicated region
        $region49: #{tpu_custom_call.1} parent=47 // pred_check
          %p366 = pneg %p96
        $region50: #{tpu_custom_call.1} parent=47 // pred_check_branch
          %368 = sbr.rel (%p366) target = $region52
        $region51: #{tpu_custom_call.1} parent=47 // pred_region
          %369 = dma.done [#allocation7], 9216
        $region52: #{tpu_custom_call.1} parent=47 // pred_fallthru
          _
        // Predicated region
        $region53: #{tpu_custom_call.1} parent=47 // pred_check
          %p370 = pneg %p117
        $region54: #{tpu_custom_call.1} parent=47 // pred_check_branch
          %372 = sbr.rel (%p370) target = $region56
        $region55: #{tpu_custom_call.1} parent=47 // pred_region
          %373 = dma.done [#allocation10], 9216
        $region56: #{tpu_custom_call.1} parent=47 // pred_fallthru
          _
        // Predicated region
        $region57: #{tpu_custom_call.1} parent=47 // pred_check
          %p374 = pneg %p138
        $region58: #{tpu_custom_call.1} parent=47 // pred_check_branch
          %376 = sbr.rel (%p374) target = $region60
        $region59: #{tpu_custom_call.1} parent=47 // pred_region
          %377 = dma.done [#allocation10], 9216
        $region60: #{tpu_custom_call.1} parent=47 // pred_fallthru
          _
        %p378 = scmp.lt.s32.totalorder %s33, 1
        %s379 = scalar_select %p378, %s33, 1
        %s380 = smul.addr %s379, 32
        %s381 = smul.addr %s380, 4
        %s382 = scalar_lea.vmem %s0, %s381
        %p383 = pneg %p54
        %p384 = pneg %p51
        %p385 = pneg %p75
        %p386 = pneg %p72
        %p387 = pneg %p96
        %p388 = pneg %p93
        %p389 = pneg %p117
        %p390 = pneg %p114
        %p391 = pneg %p138
        %p392 = pneg %p135
        %p393 = pneg %p159
        %p394 = pneg %p156
        %p395 = pneg %p180
        %p396 = pneg %p177
        %p397 = pneg %p206
        %p398 = pneg %p203
        %s399 = sand.u32 %s193, 1
        %s400 = scalar_lea.sflag [#allocation8], %s399
        %s401 = sand.u32 %s193, 1
        %s402 = smul.addr %s401, 8
        %s403 = scalar_lea.vmem [#allocation12], %s402
        %p404 = pneg %p232
        %p405 = pneg %p229
        %s406 = sand.u32 %s33, 1
        %s407 = scalar_lea.sflag [#allocation14], %s406
        %s408 = sand.u32 %s219, 1
        %s409 = smul.addr %s408, 64
        %s410 = scalar_lea.vmem [#allocation13], %s409
        %p411 = pneg %p258
        %p412 = pneg %p255
        %s413 = sand.u32 %s33, 1
        %s414 = scalar_lea.sflag [#allocation14], %s413
        %s415 = sand.u32 %s245, 1
        %s416 = smul.addr %s415, 16
        %s417 = scalar_lea.vmem [#allocation15], %s416
        %p418 = pneg %p284
        %p419 = pneg %p281
        %s420 = sand.u32 %s271, 1
        %s421 = scalar_lea.sflag [#allocation17], %s420
        %s422 = sand.u32 %s271, 1
        %s423 = smul.addr %s422, 4
        %s424 = scalar_lea.vmem [#allocation16], %s423
        %p425 = scmp.lt.s32.totalorder %s33, 1
        %s426 = scalar_select %p425, %s33, 1
        %s427 = smul.addr %s426, 32
        %s428 = smul.addr %s427, 4
        %s429 = scalar_lea.vmem %s0, %s428
        %431 = vst [vmem:[#allocation3] sm:$0xff] 0.0
        %432 = vst [vmem:[#allocation3 + $0x8] sm:$0x7] 0.0
        %433 = vst [vmem:[#allocation3 + $0x59] sm:$0xff] 0.0
        %434 = vst [vmem:[#allocation3 + $0x61] sm:$0x1f] 0.0
        %435 = vst [vmem:[#allocation3 + $0x13] sm:$0x3] 0.0
        %436 = vst [vmem:[#allocation3 + $0x1d] sm:$0x3] 0.0
        %437 = vst [vmem:[#allocation3 + $0x27] sm:$0x3] 0.0
        %438 = vst [vmem:[#allocation3 + $0x31] sm:$0x3] 0.0
        %439 = vst [vmem:[#allocation3 + $0x3b] sm:$0x3] 0.0
        %440 = vst [vmem:[#allocation3 + $0x45] sm:$0x3] 0.0
        %441 = vst [vmem:[#allocation3 + $0x4f] sm:$0x3] 0.0
        %442 = vst [vmem:[#allocation4] sm:$0x7f] 0.0
        %443 = vst [vmem:[#allocation4 + $0x1d] sm:$0xff] 0.0
        %444 = vst [vmem:[#allocation4 + $0x25] sm:$0x1] 0.0
        %445 = vst [vmem:[#allocation4 + $0xb] sm:$0x3] 0.0
        %446 = vst [vmem:[#allocation4 + $0x11] sm:$0x3] 0.0
        %447 = vst [vmem:[#allocation4 + $0x17] sm:$0x3] 0.0
        %448 = vst [vmem:[#allocation5] sm:$0x1f] 0.0
        %449 = vst [vmem:[#allocation5 + $0xb] sm:$0x7f] 0.0
        %450 = vst [vmem:[#allocation5 + $0x7] sm:$0x3] 0.0
        %v451 = vld [vmem:[%s429] sm:$0xf]
        %v452 = vld [vmem:[%s429 + $0x4] sm:$0xf]
        %v453 = vld [vmem:[%s429 + $0x8] sm:$0xf]
        %v454 = vld [vmem:[%s429 + $0xc] sm:$0xf]
        %v455 = vld [vmem:[%s429 + $0x10] sm:$0xf]
        %v456 = vld [vmem:[%s429 + $0x14] sm:$0xf]
        %v457 = vld [vmem:[%s429 + $0x18] sm:$0xf]
        %v458 = vld [vmem:[%s429 + $0x1c] sm:$0xf]
        %v459 = vld [vmem:[%s429 + $0x20] sm:$0xf]
        %v460 = vld [vmem:[%s429 + $0x24] sm:$0xf]
        %v461 = vld [vmem:[%s429 + $0x28] sm:$0xf]
        %v462 = vld [vmem:[%s429 + $0x2c] sm:$0xf]
        %v463 = vld [vmem:[%s429 + $0x30] sm:$0xf]
        %v464 = vld [vmem:[%s429 + $0x34] sm:$0xf]
        %v465 = vld [vmem:[%s429 + $0x38] sm:$0xf]
        %v466 = vld [vmem:[%s429 + $0x3c] sm:$0xf]
        %v467 = vld [vmem:[%s429 + $0x40] sm:$0xf]
        %v468 = vld [vmem:[%s429 + $0x44] sm:$0xf]
        %v469 = vld [vmem:[%s429 + $0x48] sm:$0xf]
        %v470 = vld [vmem:[%s429 + $0x4c] sm:$0xf]
        %v471 = vld [vmem:[%s429 + $0x50] sm:$0xf]
        %v472 = vld [vmem:[%s429 + $0x54] sm:$0xf]
        %v473 = vld [vmem:[%s429 + $0x58] sm:$0xf]
        %v474 = vld [vmem:[%s429 + $0x5c] sm:$0xf]
        %v475 = vld [vmem:[%s429 + $0x60] sm:$0xf]
        %v476 = vld [vmem:[%s429 + $0x64] sm:$0xf]
        %v477 = vld [vmem:[%s429 + $0x68] sm:$0xf]
        %v478 = vld [vmem:[%s429 + $0x6c] sm:$0xf]
        %v479 = vld [vmem:[%s429 + $0x70] sm:$0xf]
        %v480 = vld [vmem:[%s429 + $0x74] sm:$0xf]
        %v481 = vld [vmem:[%s429 + $0x78] sm:$0xf]
        %v482 = vld [vmem:[%s429 + $0x7c] sm:$0xf]
        %v483 = vld [vmem:[%s1] sm:$0xf]
        %v484 = vld [vmem:[%s1 + $0x4] sm:$0xf]
        %v485 = vld [vmem:[%s1 + $0x8] sm:$0xf]
        %v486 = vld [vmem:[%s1 + $0xc] sm:$0x3]
        %v519 = vunpack.c.l.b16 %v451
        %v520 = vunpack.c.l.b16 %v452
        %v521 = vunpack.c.l.b16 %v453
        %v522 = vunpack.c.l.b16 %v454
        %v523 = vunpack.c.l.b16 %v455
        %v524 = vunpack.c.l.b16 %v456
        %v525 = vunpack.c.l.b16 %v457
        %v526 = vunpack.c.l.b16 %v458
        %v527 = vunpack.c.l.b16 %v459
        %v528 = vunpack.c.l.b16 %v460
        %v529 = vunpack.c.l.b16 %v461
        %v530 = vunpack.c.l.b16 %v462
        %v531 = vunpack.c.l.b16 %v463
        %v532 = vunpack.c.l.b16 %v464
        %v533 = vunpack.c.l.b16 %v465
        %v534 = vunpack.c.l.b16 %v466
        %v535 = vunpack.c.l.b16 %v467
        %v536 = vunpack.c.l.b16 %v468
        %v537 = vunpack.c.l.b16 %v469
        %v538 = vunpack.c.l.b16 %v470
        %v539 = vunpack.c.l.b16 %v471
        %v540 = vunpack.c.l.b16 %v472
        %v541 = vunpack.c.l.b16 %v473
        %v542 = vunpack.c.l.b16 %v474
        %v543 = vunpack.c.l.b16 %v475
        %v544 = vunpack.c.l.b16 %v476
        %v545 = vunpack.c.l.b16 %v477
        %v546 = vunpack.c.l.b16 %v478
        %v547 = vunpack.c.l.b16 %v479
        %v548 = vunpack.c.l.b16 %v480
        %v549 = vunpack.c.l.b16 %v481
        %v550 = vunpack.c.l.b16 %v482
        %v551 = vpack.c.b16 %v520, %v519
        %v552 = vpack.c.b16 %v522, %v521
        %v553 = vpack.c.b16 %v524, %v523
        %v554 = vpack.c.b16 %v526, %v525
        %v555 = vpack.c.b16 %v528, %v527
        %v556 = vpack.c.b16 %v530, %v529
        %v557 = vpack.c.b16 %v532, %v531
        %v558 = vpack.c.b16 %v534, %v533
        %v559 = vpack.c.b16 %v536, %v535
        %v560 = vpack.c.b16 %v538, %v537
        %v561 = vpack.c.b16 %v540, %v539
        %v562 = vpack.c.b16 %v542, %v541
        %v563 = vpack.c.b16 %v544, %v543
        %v564 = vpack.c.b16 %v546, %v545
        %v565 = vpack.c.b16 %v548, %v547
        %v566 = vpack.c.b16 %v550, %v549
        %v571 = vunpack.c.l.b16 %v483
        %v572 = vunpack.c.l.b16 %v484
        %v573 = vunpack.c.l.b16 %v485
        %v574 = vunpack.c.l.b16 %v486
        %v575 = vpack.c.b16 %v572, %v571
        %v576 = vpack.c.b16 %v574, %v573
        %vm578 = vcmask 220160
        %v580 = vsel %vm578, %v551, 0
        %v583 = vsel %vm578, %v552, 0
        %v586 = vsel %vm578, %v553, 0
        %v589 = vsel %vm578, %v554, 0
        %v592 = vsel %vm578, %v555, 0
        %v595 = vsel %vm578, %v556, 0
        %v598 = vsel %vm578, %v557, 0
        %v601 = vsel %vm578, %v558, 0
        %v604 = vsel %vm578, %v559, 0
        %v607 = vsel %vm578, %v560, 0
        %v610 = vsel %vm578, %v561, 0
        %v613 = vsel %vm578, %v562, 0
        %v616 = vsel %vm578, %v563, 0
        %v619 = vsel %vm578, %v564, 0
        %v622 = vsel %vm578, %v565, 0
        %v625 = vsel %vm578, %v566, 0
        %vm627 = vcmask 1044480
        %vm628 = vcmask 1045504
        %v629 = vsel %vm627, 4294967295, 65535
        %v630 = vsel %vm628, %v629, 0
        %v632 = vand.u32 %v576, %v630
        %634 = vmatprep.subr.bf16.mxu0 0
        %635 = vmatpush1.bf16.msra.mxu0 %v575
        %636 = vmatprep.subr.bf16.mxu0 0
        %637 = vmatpush1.bf16.msra.mxu0 %v632
        %638 = vmatprep.subr.bf16.mxu0 0
        %639 = vmatpush1.bf16.msra.mxu0 0
        %640 = vmatprep.subr.bf16.mxu0 0
        %641 = vmatpush1.bf16.msra.mxu0 0
        %642 = vmatprep.subr.bf16.mxu0 0
        %643 = vmatpush1.bf16.msra.mxu0 0
        %644 = vmatprep.subr.bf16.mxu0 0
        %645 = vmatpush1.bf16.msra.mxu0 0
        %646 = vmatprep.subr.bf16.mxu0 0
        %647 = vmatpush1.bf16.msra.mxu0 0
        %648 = vmatprep.subr.bf16.mxu0 0
        %649 = vmatpush1.bf16.msra.mxu0 0
        %650 = vmatprep.subr.bf16.mxu0 0
        %651 = vmatpush1.bf16.msra.mxu0 0
        %652 = vmatprep.subr.bf16.mxu0 0
        %653 = vmatpush1.bf16.msra.mxu0 0
        %654 = vmatprep.subr.bf16.mxu0 0
        %655 = vmatpush1.bf16.msra.mxu0 0
        %656 = vmatprep.subr.bf16.mxu0 0
        %657 = vmatpush1.bf16.msra.mxu0 0
        %658 = vmatprep.subr.bf16.mxu0 0
        %659 = vmatpush1.bf16.msra.mxu0 0
        %660 = vmatprep.subr.bf16.mxu0 0
        %661 = vmatpush1.bf16.msra.mxu0 0
        %662 = vmatprep.subr.bf16.mxu0 0
        %663 = vmatpush1.bf16.msra.mxu0 0
        %664 = vmatprep.subr.bf16.mxu0 0
        %665 = vmatpush1.bf16.msra.mxu0 0
        %666 = vmatprep.mubr.bf16.mxu0 0
        %667 = vmatmul.mubr.bf16.gmra.mrb[0].mxu0 %v580
        %v668 = vpop.f32.mrb[0].mxu0
        %v669 = vadd.f32 0.0, %v668
        %v670 = vpop.f32.mrb[0].mxu0
        %v671 = vpop.f32.mrb[0].mxu0
        %v672 = vadd.f32 0.0, %v671
        %v673 = vpop.f32.mrb[0].mxu0
        %674 = vmatprep.mubr.bf16.mxu0 0
        %675 = vmatmul.mubr.bf16.gmra.mrb[0].mxu0 %v583
        %v676 = vpop.f32.mrb[0].mxu0
        %v677 = vadd.f32 0.0, %v676
        %v678 = vpop.f32.mrb[0].mxu0
        %v679 = vpop.f32.mrb[0].mxu0
        %v680 = vadd.f32 0.0, %v679
        %v681 = vpop.f32.mrb[0].mxu0
        %682 = vmatprep.mubr.bf16.mxu0 0
        %683 = vmatmul.mubr.bf16.gmra.mrb[0].mxu0 %v586
        %v684 = vpop.f32.mrb[0].mxu0
        %v685 = vadd.f32 0.0, %v684
        %v686 = vpop.f32.mrb[0].mxu0
        %v687 = vpop.f32.mrb[0].mxu0
        %v688 = vadd.f32 0.0, %v687
        %v689 = vpop.f32.mrb[0].mxu0
        %690 = vmatprep.mubr.bf16.mxu0 0
        %691 = vmatmul.mubr.bf16.gmra.mrb[0].mxu0 %v589
        %v692 = vpop.f32.mrb[0].mxu0
        %v693 = vadd.f32 0.0, %v692
        %v694 = vpop.f32.mrb[0].mxu0
        %v695 = vpop.f32.mrb[0].mxu0
        %v696 = vadd.f32 0.0, %v695
        %v697 = vpop.f32.mrb[0].mxu0
        %698 = vmatprep.mubr.bf16.mxu0 0
        %699 = vmatmul.mubr.bf16.gmra.mrb[0].mxu0 %v592
        %v700 = vpop.f32.mrb[0].mxu0
        %v701 = vadd.f32 0.0, %v700
        %v702 = vpop.f32.mrb[0].mxu0
        %v703 = vpop.f32.mrb[0].mxu0
        %v704 = vadd.f32 0.0, %v703
        %v705 = vpop.f32.mrb[0].mxu0
        %706 = vmatprep.mubr.bf16.mxu0 0
        %707 = vmatmul.mubr.bf16.gmra.mrb[0].mxu0 %v595
        %v708 = vpop.f32.mrb[0].mxu0
        %v709 = vadd.f32 0.0, %v708
        %v710 = vpop.f32.mrb[0].mxu0
        %v711 = vpop.f32.mrb[0].mxu0
        %v712 = vadd.f32 0.0, %v711
        %v713 = vpop.f32.mrb[0].mxu0
        %714 = vmatprep.mubr.bf16.mxu0 0
        %715 = vmatmul.mubr.bf16.gmra.mrb[0].mxu0 %v598
        %v716 = vpop.f32.mrb[0].mxu0
        %v717 = vadd.f32 0.0, %v716
        %v718 = vpop.f32.mrb[0].mxu0
        %v719 = vpop.f32.mrb[0].mxu0
        %v720 = vadd.f32 0.0, %v719
        %v721 = vpop.f32.mrb[0].mxu0
        %722 = vmatprep.mubr.bf16.mxu0 0
        %723 = vmatmul.mubr.bf16.gmra.mrb[0].mxu0 %v601
        %v724 = vpop.f32.mrb[0].mxu0
        %v725 = vadd.f32 0.0, %v724
        %v726 = vpop.f32.mrb[0].mxu0
        %v727 = vpop.f32.mrb[0].mxu0
        %v728 = vadd.f32 0.0, %v727
        %v729 = vpop.f32.mrb[0].mxu0
        %730 = vmatprep.mubr.bf16.mxu0 0
        %731 = vmatmul.mubr.bf16.gmra.mrb[0].mxu0 %v604
        %v732 = vpop.f32.mrb[0].mxu0
        %v733 = vadd.f32 0.0, %v732
        %v734 = vpop.f32.mrb[0].mxu0
        %v735 = vpop.f32.mrb[0].mxu0
        %v736 = vadd.f32 0.0, %v735
        %v737 = vpop.f32.mrb[0].mxu0
        %738 = vmatprep.mubr.bf16.mxu0 0
        %739 = vmatmul.mubr.bf16.gmra.mrb[0].mxu0 %v607
        %v740 = vpop.f32.mrb[0].mxu0
        %v741 = vadd.f32 0.0, %v740
        %v742 = vpop.f32.mrb[0].mxu0
        %v743 = vpop.f32.mrb[0].mxu0
        %v744 = vadd.f32 0.0, %v743
        %v745 = vpop.f32.mrb[0].mxu0
        %746 = vmatprep.mubr.bf16.mxu0 0
        %747 = vmatmul.mubr.bf16.gmra.mrb[0].mxu0 %v610
        %v748 = vpop.f32.mrb[0].mxu0
        %v749 = vadd.f32 0.0, %v748
        %v750 = vpop.f32.mrb[0].mxu0
        %v751 = vpop.f32.mrb[0].mxu0
        %v752 = vadd.f32 0.0, %v751
        %v753 = vpop.f32.mrb[0].mxu0
        %754 = vmatprep.mubr.bf16.mxu0 0
        %755 = vmatmul.mubr.bf16.gmra.mrb[0].mxu0 %v613
        %v756 = vpop.f32.mrb[0].mxu0
        %v757 = vadd.f32 0.0, %v756
        %v758 = vpop.f32.mrb[0].mxu0
        %v759 = vpop.f32.mrb[0].mxu0
        %v760 = vadd.f32 0.0, %v759
        %v761 = vpop.f32.mrb[0].mxu0
        %762 = vmatprep.mubr.bf16.mxu0 0
        %763 = vmatmul.mubr.bf16.gmra.mrb[0].mxu0 %v616
        %v764 = vpop.f32.mrb[0].mxu0
        %v765 = vadd.f32 0.0, %v764
        %v766 = vpop.f32.mrb[0].mxu0
        %v767 = vpop.f32.mrb[0].mxu0
        %v768 = vadd.f32 0.0, %v767
        %v769 = vpop.f32.mrb[0].mxu0
        %770 = vmatprep.mubr.bf16.mxu0 0
        %771 = vmatmul.mubr.bf16.gmra.mrb[0].mxu0 %v619
        %v772 = vpop.f32.mrb[0].mxu0
        %v773 = vadd.f32 0.0, %v772
        %v774 = vpop.f32.mrb[0].mxu0
        %v775 = vpop.f32.mrb[0].mxu0
        %v776 = vadd.f32 0.0, %v775
        %v777 = vpop.f32.mrb[0].mxu0
        %778 = vmatprep.mubr.bf16.mxu0 0
        %779 = vmatmul.mubr.bf16.gmra.mrb[0].mxu0 %v622
        %v780 = vpop.f32.mrb[0].mxu0
        %v781 = vadd.f32 0.0, %v780
        %v782 = vpop.f32.mrb[0].mxu0
        %v783 = vpop.f32.mrb[0].mxu0
        %v784 = vadd.f32 0.0, %v783
        %v785 = vpop.f32.mrb[0].mxu0
        %786 = vmatprep.mubr.bf16.mxu0 0
        %787 = vmatmul.mubr.bf16.gmra.mrb[0].mxu0 %v625
        %v788 = vpop.f32.mrb[0].mxu0
        %v789 = vadd.f32 0.0, %v788
        %v790 = vpop.f32.mrb[0].mxu0
        %v791 = vpop.f32.mrb[0].mxu0
        %v792 = vadd.f32 0.0, %v791
        %v793 = vpop.f32.mrb[0].mxu0
        %794 = vdwg.mxu0
        %v795 = vld [vmem:[%s5] sm:$0x1]
        %v796 = vlaneseq
        %v797 = vshrl.u32 %v796, 7
        %v798 = vsub.s32 0, %v797
        %v799 = vrot.slane %v795, %v798
        %v800 = vmul.f32 %v669, %v799
        %v801 = vmul.f32 %v672, %v799
        %v802 = vmul.f32 %v677, %v799
        %v803 = vmul.f32 %v680, %v799
        %v804 = vmul.f32 %v685, %v799
        %v805 = vmul.f32 %v688, %v799
        %v806 = vmul.f32 %v693, %v799
        %v807 = vmul.f32 %v696, %v799
        %v808 = vmul.f32 %v701, %v799
        %v809 = vmul.f32 %v704, %v799
        %v810 = vmul.f32 %v709, %v799
        %v811 = vmul.f32 %v712, %v799
        %v812 = vmul.f32 %v717, %v799
        %v813 = vmul.f32 %v720, %v799
        %v814 = vmul.f32 %v725, %v799
        %v815 = vmul.f32 %v728, %v799
        %v816 = vmul.f32 %v733, %v799
        %v817 = vmul.f32 %v736, %v799
        %v818 = vmul.f32 %v741, %v799
        %v819 = vmul.f32 %v744, %v799
        %v820 = vmul.f32 %v749, %v799
        %v821 = vmul.f32 %v752, %v799
        %v822 = vmul.f32 %v757, %v799
        %v823 = vmul.f32 %v760, %v799
        %v824 = vmul.f32 %v765, %v799
        %v825 = vmul.f32 %v768, %v799
        %v826 = vmul.f32 %v773, %v799
        %v827 = vmul.f32 %v776, %v799
        %v828 = vmul.f32 %v781, %v799
        %v829 = vmul.f32 %v784, %v799
        %v830 = vmul.f32 %v789, %v799
        %v831 = vmul.f32 %v792, %v799
        %v832 = vld [vmem:[%s6] sm:$0x1]
        %v833 = vlaneseq
        %v834 = vshrl.u32 %v833, 7
        %v835 = vsub.s32 0, %v834
        %v836 = vrot.slane %v832, %v835
        %v837 = vadd.f32 %v800, %v836
        %v838 = vadd.f32 %v801, %v836
        %v839 = vadd.f32 %v802, %v836
        %v840 = vadd.f32 %v803, %v836
        %v841 = vadd.f32 %v804, %v836
        %v842 = vadd.f32 %v805, %v836
        %v843 = vadd.f32 %v806, %v836
        %v844 = vadd.f32 %v807, %v836
        %v845 = vadd.f32 %v808, %v836
        %v846 = vadd.f32 %v809, %v836
        %v847 = vadd.f32 %v810, %v836
        %v848 = vadd.f32 %v811, %v836
        %v849 = vadd.f32 %v812, %v836
        %v850 = vadd.f32 %v813, %v836
        %v851 = vadd.f32 %v814, %v836
        %v852 = vadd.f32 %v815, %v836
        %v853 = vadd.f32 %v816, %v836
        %v854 = vadd.f32 %v817, %v836
        %v855 = vadd.f32 %v818, %v836
        %v856 = vadd.f32 %v819, %v836
        %v857 = vadd.f32 %v820, %v836
        %v858 = vadd.f32 %v821, %v836
        %v859 = vadd.f32 %v822, %v836
        %v860 = vadd.f32 %v823, %v836
        %v861 = vadd.f32 %v824, %v836
        %v862 = vadd.f32 %v825, %v836
        %v863 = vadd.f32 %v826, %v836
        %v864 = vadd.f32 %v827, %v836
        %v865 = vadd.f32 %v828, %v836
        %v866 = vadd.f32 %v829, %v836
        %v867 = vadd.f32 %v830, %v836
        %v868 = vadd.f32 %v831, %v836
        %v869 = vmax.f32 %v837, 0.0
        %v870 = vmax.f32 %v838, 0.0
        %v871 = vmax.f32 %v839, 0.0
        %v872 = vmax.f32 %v840, 0.0
        %v873 = vmax.f32 %v841, 0.0
        %v874 = vmax.f32 %v842, 0.0
        %v875 = vmax.f32 %v843, 0.0
        %v876 = vmax.f32 %v844, 0.0
        %v877 = vmax.f32 %v845, 0.0
        %v878 = vmax.f32 %v846, 0.0
        %v879 = vmax.f32 %v847, 0.0
        %v880 = vmax.f32 %v848, 0.0
        %v881 = vmax.f32 %v849, 0.0
        %v882 = vmax.f32 %v850, 0.0
        %v883 = vmax.f32 %v851, 0.0
        %v884 = vmax.f32 %v852, 0.0
        %v885 = vmax.f32 %v853, 0.0
        %v886 = vmax.f32 %v854, 0.0
        %v887 = vmax.f32 %v855, 0.0
        %v888 = vmax.f32 %v856, 0.0
        %v889 = vmax.f32 %v857, 0.0
        %v890 = vmax.f32 %v858, 0.0
        %v891 = vmax.f32 %v859, 0.0
        %v892 = vmax.f32 %v860, 0.0
        %v893 = vmax.f32 %v861, 0.0
        %v894 = vmax.f32 %v862, 0.0
        %v895 = vmax.f32 %v863, 0.0
        %v896 = vmax.f32 %v864, 0.0
        %v897 = vmax.f32 %v865, 0.0
        %v898 = vmax.f32 %v866, 0.0
        %v899 = vmax.f32 %v867, 0.0
        %v900 = vmax.f32 %v868, 0.0
        %901 = vst [vmem:[#allocation2] sm:$0xff] %v869
        %902 = vst [vmem:[#allocation2 + $0x8] sm:$0xff] %v870
        %903 = vst [vmem:[#allocation2 + $0x10] sm:$0xff] %v871
        %904 = vst [vmem:[#allocation2 + $0x18] sm:$0xff] %v872
        %905 = vst [vmem:[#allocation2 + $0x20] sm:$0xff] %v873
        %906 = vst [vmem:[#allocation2 + $0x28] sm:$0xff] %v874
        %907 = vst [vmem:[#allocation2 + $0x30] sm:$0xff] %v875
        %908 = vst [vmem:[#allocation2 + $0x38] sm:$0xff] %v876
        %909 = vst [vmem:[#allocation2 + $0x40] sm:$0xff] %v877
        %910 = vst [vmem:[#allocation2 + $0x48] sm:$0xff] %v878
        %911 = vst [vmem:[#allocation2 + $0x50] sm:$0xff] %v879
        %912 = vst [vmem:[#allocation2 + $0x58] sm:$0xff] %v880
        %913 = vst [vmem:[#allocation2 + $0x60] sm:$0xff] %v881
        %914 = vst [vmem:[#allocation2 + $0x68] sm:$0xff] %v882
        %915 = vst [vmem:[#allocation2 + $0x70] sm:$0xff] %v883
        %916 = vst [vmem:[#allocation2 + $0x78] sm:$0xff] %v884
        %917 = vst [vmem:[#allocation2 + $0x80] sm:$0xff] %v885
        %918 = vst [vmem:[#allocation2 + $0x88] sm:$0xff] %v886
        %919 = vst [vmem:[#allocation2 + $0x90] sm:$0xff] %v887
        %920 = vst [vmem:[#allocation2 + $0x98] sm:$0xff] %v888
        %921 = vst [vmem:[#allocation2 + $0xa0] sm:$0xff] %v889
        %922 = vst [vmem:[#allocation2 + $0xa8] sm:$0xff] %v890
        %923 = vst [vmem:[#allocation2 + $0xb0] sm:$0xff] %v891
        %924 = vst [vmem:[#allocation2 + $0xb8] sm:$0xff] %v892
        %925 = vst [vmem:[#allocation2 + $0xc0] sm:$0xff] %v893
        %926 = vst [vmem:[#allocation2 + $0xc8] sm:$0xff] %v894
        %927 = vst [vmem:[#allocation2 + $0xd0] sm:$0xff] %v895
        %928 = vst [vmem:[#allocation2 + $0xd8] sm:$0xff] %v896
        %929 = vst [vmem:[#allocation2 + $0xe0] sm:$0xff] %v897
        %930 = vst [vmem:[#allocation2 + $0xe8] sm:$0xff] %v898
        %931 = vst [vmem:[#allocation2 + $0xf0] sm:$0xff] %v899
        %932 = vst [vmem:[#allocation2 + $0xf8] sm:$0xff] %v900
        %v933 = vlaneseq
        %v934 = vshrl.u32 %v933, 7
        %v935 = vmul.u32 %v934, 2
        %v936 = vld [vmem:[#allocation2] ss:$2 sm:$0xff]
        %s937 = scalar_lea.vmem [#allocation2], 16
        %v938 = vld [vmem:[%s937] ss:$2 sm:$0xff]
        %s939 = scalar_lea.vmem [#allocation2], 1
        %v940 = vld [vmem:[%s939] ss:$2 sm:$0xff]
        %s941 = scalar_lea.vmem [#allocation2], 17
        %v942 = vld [vmem:[%s941] ss:$2 sm:$0xff]
        %v943 = vadd.s32 %v935, 16
        %v944 = vmax.f32 %v936, %v940
        %vm945 = vcmp.ge.f32.partialorder %v936, %v940
        %v946 = vadd.s32 %v935, 1
        %v947 = vsel %vm945, %v935, %v946
        %v948 = vmax.f32 %v938, %v942
        %vm949 = vcmp.ge.f32.partialorder %v938, %v942
        %v950 = vadd.s32 %v943, 1
        %v951 = vsel %vm949, %v943, %v950
        %vm952 = vcmp.ge.f32.partialorder %v944, %v948
        %v953 = vsel %vm952, %v947, %v951
        %954 = vst [vmem:[%s410] sm:$0xff] %v953
        %v955 = vmax.f32 %v944, %v948
        %956 = vst [vmem:[#allocation3 + $0xb] sm:$0xff] %v955
        %s957 = scalar_lea.vmem [#allocation2], 32
        %v958 = vld [vmem:[%s957] ss:$2 sm:$0xff]
        %s959 = scalar_lea.vmem [#allocation2], 48
        %v960 = vld [vmem:[%s959] ss:$2 sm:$0xff]
        %s961 = scalar_lea.vmem [#allocation2], 33
        %v962 = vld [vmem:[%s961] ss:$2 sm:$0xff]
        %s963 = scalar_lea.vmem [#allocation2], 49
        %v964 = vld [vmem:[%s963] ss:$2 sm:$0xff]
        %v965 = vadd.s32 %v935, 32
        %v966 = vadd.s32 %v935, 48
        %v967 = vmax.f32 %v958, %v962
        %vm968 = vcmp.ge.f32.partialorder %v958, %v962
        %v969 = vadd.s32 %v965, 1
        %v970 = vsel %vm968, %v965, %v969
        %v971 = vmax.f32 %v960, %v964
        %vm972 = vcmp.ge.f32.partialorder %v960, %v964
        %v973 = vadd.s32 %v966, 1
        %v974 = vsel %vm972, %v966, %v973
        %vm975 = vcmp.ge.f32.partialorder %v967, %v971
        %v976 = vsel %vm975, %v970, %v974
        %977 = vst [vmem:[%s410 + $0x8] sm:$0xff] %v976
        %v978 = vmax.f32 %v967, %v971
        %979 = vst [vmem:[#allocation3 + $0x15] sm:$0xff] %v978
        %s980 = scalar_lea.vmem [#allocation2], 64
        %v981 = vld [vmem:[%s980] ss:$2 sm:$0xff]
        %s982 = scalar_lea.vmem [#allocation2], 80
        %v983 = vld [vmem:[%s982] ss:$2 sm:$0xff]
        %s984 = scalar_lea.vmem [#allocation2], 65
        %v985 = vld [vmem:[%s984] ss:$2 sm:$0xff]
        %s986 = scalar_lea.vmem [#allocation2], 81
        %v987 = vld [vmem:[%s986] ss:$2 sm:$0xff]
        %v988 = vadd.s32 %v935, 64
        %v989 = vadd.s32 %v935, 80
        %v990 = vmax.f32 %v981, %v985
        %vm991 = vcmp.ge.f32.partialorder %v981, %v985
        %v992 = vadd.s32 %v988, 1
        %v993 = vsel %vm991, %v988, %v992
        %v994 = vmax.f32 %v983, %v987
        %vm995 = vcmp.ge.f32.partialorder %v983, %v987
        %v996 = vadd.s32 %v989, 1
        %v997 = vsel %vm995, %v989, %v996
        %vm998 = vcmp.ge.f32.partialorder %v990, %v994
        %v999 = vsel %vm998, %v993, %v997
        %1000 = vst [vmem:[%s410 + $0x10] sm:$0xff] %v999
        %v1001 = vmax.f32 %v990, %v994
        %1002 = vst [vmem:[#allocation3 + $0x1f] sm:$0xff] %v1001
        %s1003 = scalar_lea.vmem [#allocation2], 96
        %v1004 = vld [vmem:[%s1003] ss:$2 sm:$0xff]
        %s1005 = scalar_lea.vmem [#allocation2], 112
        %v1006 = vld [vmem:[%s1005] ss:$2 sm:$0xff]
        %s1007 = scalar_lea.vmem [#allocation2], 97
        %v1008 = vld [vmem:[%s1007] ss:$2 sm:$0xff]
        %s1009 = scalar_lea.vmem [#allocation2], 113
        %v1010 = vld [vmem:[%s1009] ss:$2 sm:$0xff]
        %v1011 = vadd.s32 %v935, 96
        %v1012 = vadd.s32 %v935, 112
        %v1013 = vmax.f32 %v1004, %v1008
        %vm1014 = vcmp.ge.f32.partialorder %v1004, %v1008
        %v1015 = vadd.s32 %v1011, 1
        %v1016 = vsel %vm1014, %v1011, %v1015
        %v1017 = vmax.f32 %v1006, %v1010
        %vm1018 = vcmp.ge.f32.partialorder %v1006, %v1010
        %v1019 = vadd.s32 %v1012, 1
        %v1020 = vsel %vm1018, %v1012, %v1019
        %vm1021 = vcmp.ge.f32.partialorder %v1013, %v1017
        %v1022 = vsel %vm1021, %v1016, %v1020
        %1023 = vst [vmem:[%s410 + $0x18] sm:$0xff] %v1022
        %v1024 = vmax.f32 %v1013, %v1017
        %1025 = vst [vmem:[#allocation3 + $0x29] sm:$0xff] %v1024
        %s1026 = scalar_lea.vmem [#allocation2], 128
        %v1027 = vld [vmem:[%s1026] ss:$2 sm:$0xff]
        %s1028 = scalar_lea.vmem [#allocation2], 144
        %v1029 = vld [vmem:[%s1028] ss:$2 sm:$0xff]
        %s1030 = scalar_lea.vmem [#allocation2], 129
        %v1031 = vld [vmem:[%s1030] ss:$2 sm:$0xff]
        %s1032 = scalar_lea.vmem [#allocation2], 145
        %v1033 = vld [vmem:[%s1032] ss:$2 sm:$0xff]
        %v1034 = vadd.s32 %v935, 128
        %v1035 = vadd.s32 %v935, 144
        %v1036 = vmax.f32 %v1027, %v1031
        %vm1037 = vcmp.ge.f32.partialorder %v1027, %v1031
        %v1038 = vadd.s32 %v1034, 1
        %v1039 = vsel %vm1037, %v1034, %v1038
        %v1040 = vmax.f32 %v1029, %v1033
        %vm1041 = vcmp.ge.f32.partialorder %v1029, %v1033
        %v1042 = vadd.s32 %v1035, 1
        %v1043 = vsel %vm1041, %v1035, %v1042
        %vm1044 = vcmp.ge.f32.partialorder %v1036, %v1040
        %v1045 = vsel %vm1044, %v1039, %v1043
        %1046 = vst [vmem:[%s410 + $0x20] sm:$0xff] %v1045
        %v1047 = vmax.f32 %v1036, %v1040
        %1048 = vst [vmem:[#allocation3 + $0x33] sm:$0xff] %v1047
        %s1049 = scalar_lea.vmem [#allocation2], 160
        %v1050 = vld [vmem:[%s1049] ss:$2 sm:$0xff]
        %s1051 = scalar_lea.vmem [#allocation2], 176
        %v1052 = vld [vmem:[%s1051] ss:$2 sm:$0xff]
        %s1053 = scalar_lea.vmem [#allocation2], 161
        %v1054 = vld [vmem:[%s1053] ss:$2 sm:$0xff]
        %s1055 = scalar_lea.vmem [#allocation2], 177
        %v1056 = vld [vmem:[%s1055] ss:$2 sm:$0xff]
        %v1057 = vadd.s32 %v935, 160
        %v1058 = vadd.s32 %v935, 176
        %v1059 = vmax.f32 %v1050, %v1054
        %vm1060 = vcmp.ge.f32.partialorder %v1050, %v1054
        %v1061 = vadd.s32 %v1057, 1
        %v1062 = vsel %vm1060, %v1057, %v1061
        %v1063 = vmax.f32 %v1052, %v1056
        %vm1064 = vcmp.ge.f32.partialorder %v1052, %v1056
        %v1065 = vadd.s32 %v1058, 1
        %v1066 = vsel %vm1064, %v1058, %v1065
        %vm1067 = vcmp.ge.f32.partialorder %v1059, %v1063
        %v1068 = vsel %vm1067, %v1062, %v1066
        %1069 = vst [vmem:[%s410 + $0x28] sm:$0xff] %v1068
        %v1070 = vmax.f32 %v1059, %v1063
        %1071 = vst [vmem:[#allocation3 + $0x3d] sm:$0xff] %v1070
        %s1072 = scalar_lea.vmem [#allocation2], 192
        %v1073 = vld [vmem:[%s1072] ss:$2 sm:$0xff]
        %s1074 = scalar_lea.vmem [#allocation2], 208
        %v1075 = vld [vmem:[%s1074] ss:$2 sm:$0xff]
        %s1076 = scalar_lea.vmem [#allocation2], 193
        %v1077 = vld [vmem:[%s1076] ss:$2 sm:$0xff]
        %s1078 = scalar_lea.vmem [#allocation2], 209
        %v1079 = vld [vmem:[%s1078] ss:$2 sm:$0xff]
        %v1080 = vadd.s32 %v935, 192
        %v1081 = vadd.s32 %v935, 208
        %v1082 = vmax.f32 %v1073, %v1077
        %vm1083 = vcmp.ge.f32.partialorder %v1073, %v1077
        %v1084 = vadd.s32 %v1080, 1
        %v1085 = vsel %vm1083, %v1080, %v1084
        %v1086 = vmax.f32 %v1075, %v1079
        %vm1087 = vcmp.ge.f32.partialorder %v1075, %v1079
        %v1088 = vadd.s32 %v1081, 1
        %v1089 = vsel %vm1087, %v1081, %v1088
        %vm1090 = vcmp.ge.f32.partialorder %v1082, %v1086
        %v1091 = vsel %vm1090, %v1085, %v1089
        %1092 = vst [vmem:[%s410 + $0x30] sm:$0xff] %v1091
        %v1093 = vmax.f32 %v1082, %v1086
        %1094 = vst [vmem:[#allocation3 + $0x47] sm:$0xff] %v1093
        %s1095 = scalar_lea.vmem [#allocation2], 224
        %v1096 = vld [vmem:[%s1095] ss:$2 sm:$0xff]
        %s1097 = scalar_lea.vmem [#allocation2], 240
        %v1098 = vld [vmem:[%s1097] ss:$2 sm:$0xff]
        %s1099 = scalar_lea.vmem [#allocation2], 225
        %v1100 = vld [vmem:[%s1099] ss:$2 sm:$0xff]
        %s1101 = scalar_lea.vmem [#allocation2], 241
        %v1102 = vld [vmem:[%s1101] ss:$2 sm:$0xff]
        %v1103 = vadd.s32 %v935, 224
        %v1104 = vadd.s32 %v935, 240
        %v1105 = vmax.f32 %v1096, %v1100
        %vm1106 = vcmp.ge.f32.partialorder %v1096, %v1100
        %v1107 = vadd.s32 %v1103, 1
        %v1108 = vsel %vm1106, %v1103, %v1107
        %v1109 = vmax.f32 %v1098, %v1102
        %vm1110 = vcmp.ge.f32.partialorder %v1098, %v1102
        %v1111 = vadd.s32 %v1104, 1
        %v1112 = vsel %vm1110, %v1104, %v1111
        %vm1113 = vcmp.ge.f32.partialorder %v1105, %v1109
        %v1114 = vsel %vm1113, %v1108, %v1112
        %1115 = vst [vmem:[%s410 + $0x38] sm:$0xff] %v1114
        %v1116 = vmax.f32 %v1105, %v1109
        %1117 = vst [vmem:[#allocation3 + $0x51] sm:$0xff] %v1116
        %v1118 = vld [vmem:[#allocation3] sm:$0xff]
        %v1119 = vld [vmem:[#allocation3 + $0x8] sm:$0xff]
        %v1120 = vld [vmem:[#allocation3 + $0x10] sm:$0xff]
        %v1121 = vld [vmem:[#allocation3 + $0x18] sm:$0xff]
        %v1122 = vld [vmem:[#allocation3 + $0x20] sm:$0xff]
        %v1123 = vld [vmem:[#allocation3 + $0x28] sm:$0xff]
        %v1124 = vld [vmem:[#allocation3 + $0x30] sm:$0xff]
        %v1125 = vld [vmem:[#allocation3 + $0x38] sm:$0xff]
        %v1126 = vld [vmem:[#allocation3 + $0x40] sm:$0xff]
        %v1127 = vld [vmem:[#allocation3 + $0x48] sm:$0xff]
        %v1128 = vpack.c.bf16 %v1119, %v1118
        %v1129 = vpack.c.bf16 %v1121, %v1120
        %v1130 = vpack.c.bf16 %v1123, %v1122
        %v1131 = vpack.c.bf16 %v1125, %v1124
        %v1132 = vpack.c.bf16 %v1127, %v1126
        %v1133 = vld [vmem:[#allocation3 + $0x1] sm:$0xff]
        %v1134 = vld [vmem:[#allocation3 + $0x9] sm:$0xff]
        %v1135 = vld [vmem:[#allocation3 + $0x11] sm:$0xff]
        %v1136 = vld [vmem:[#allocation3 + $0x19] sm:$0xff]
        %v1137 = vld [vmem:[#allocation3 + $0x21] sm:$0xff]
        %v1138 = vld [vmem:[#allocation3 + $0x29] sm:$0xff]
        %v1139 = vld [vmem:[#allocation3 + $0x31] sm:$0xff]
        %v1140 = vld [vmem:[#allocation3 + $0x39] sm:$0xff]
        %v1141 = vld [vmem:[#allocation3 + $0x41] sm:$0xff]
        %v1142 = vld [vmem:[#allocation3 + $0x49] sm:$0xff]
        %v1143 = vpack.c.bf16 %v1134, %v1133
        %v1144 = vpack.c.bf16 %v1136, %v1135
        %v1145 = vpack.c.bf16 %v1138, %v1137
        %v1146 = vpack.c.bf16 %v1140, %v1139
        %v1147 = vpack.c.bf16 %v1142, %v1141
        %v1148 = vld [vmem:[#allocation3 + $0x2] sm:$0xff]
        %v1149 = vld [vmem:[#allocation3 + $0xa] sm:$0xff]
        %v1150 = vld [vmem:[#allocation3 + $0x12] sm:$0xff]
        %v1151 = vld [vmem:[#allocation3 + $0x1a] sm:$0xff]
        %v1152 = vld [vmem:[#allocation3 + $0x22] sm:$0xff]
        %v1153 = vld [vmem:[#allocation3 + $0x2a] sm:$0xff]
        %v1154 = vld [vmem:[#allocation3 + $0x32] sm:$0xff]
        %v1155 = vld [vmem:[#allocation3 + $0x3a] sm:$0xff]
        %v1156 = vld [vmem:[#allocation3 + $0x42] sm:$0xff]
        %v1157 = vld [vmem:[#allocation3 + $0x4a] sm:$0xff]
        %v1158 = vpack.c.bf16 %v1149, %v1148
        %v1159 = vpack.c.bf16 %v1151, %v1150
        %v1160 = vpack.c.bf16 %v1153, %v1152
        %v1161 = vpack.c.bf16 %v1155, %v1154
        %v1162 = vpack.c.bf16 %v1157, %v1156
        %v1163 = vld [vmem:[#allocation3 + $0x52] sm:$0xff]
        %v1164 = vpack.c.bf16 %v1150, %v1149
        %v1165 = vpack.c.bf16 %v1152, %v1151
        %v1166 = vpack.c.bf16 %v1154, %v1153
        %v1167 = vpack.c.bf16 %v1156, %v1155
        %v1168 = vpack.c.bf16 %v1163, %v1157
        %v1169 = vld [vmem:[#allocation3 + $0xb] sm:$0xff]
        %v1170 = vld [vmem:[#allocation3 + $0x13] sm:$0xff]
        %v1171 = vld [vmem:[#allocation3 + $0x1b] sm:$0xff]
        %v1172 = vld [vmem:[#allocation3 + $0x23] sm:$0xff]
        %v1173 = vld [vmem:[#allocation3 + $0x2b] sm:$0xff]
        %v1174 = vld [vmem:[#allocation3 + $0x33] sm:$0xff]
        %v1175 = vld [vmem:[#allocation3 + $0x3b] sm:$0xff]
        %v1176 = vld [vmem:[#allocation3 + $0x43] sm:$0xff]
        %v1177 = vld [vmem:[#allocation3 + $0x4b] sm:$0xff]
        %v1178 = vld [vmem:[#allocation3 + $0x53] sm:$0xff]
        %v1179 = vpack.c.bf16 %v1170, %v1169
        %v1180 = vpack.c.bf16 %v1172, %v1171
        %v1181 = vpack.c.bf16 %v1174, %v1173
        %v1182 = vpack.c.bf16 %v1176, %v1175
        %v1183 = vpack.c.bf16 %v1178, %v1177
        %v1184 = vld [vmem:[#allocation3 + $0xc] sm:$0xff]
        %v1185 = vld [vmem:[#allocation3 + $0x14] sm:$0xff]
        %v1186 = vld [vmem:[#allocation3 + $0x1c] sm:$0xff]
        %v1187 = vld [vmem:[#allocation3 + $0x24] sm:$0xff]
        %v1188 = vld [vmem:[#allocation3 + $0x2c] sm:$0xff]
        %v1189 = vld [vmem:[#allocation3 + $0x34] sm:$0xff]
        %v1190 = vld [vmem:[#allocation3 + $0x3c] sm:$0xff]
        %v1191 = vld [vmem:[#allocation3 + $0x44] sm:$0xff]
        %v1192 = vld [vmem:[#allocation3 + $0x4c] sm:$0xff]
        %v1193 = vld [vmem:[#allocation3 + $0x54] sm:$0xff]
        %v1194 = vpack.c.bf16 %v1185, %v1184
        %v1195 = vpack.c.bf16 %v1187, %v1186
        %v1196 = vpack.c.bf16 %v1189, %v1188
        %v1197 = vpack.c.bf16 %v1191, %v1190
        %v1198 = vpack.c.bf16 %v1193, %v1192
        %v1199 = vld [vmem:[#allocation3 + $0x5c] sm:$0xff]
        %v1200 = vpack.c.bf16 %v1186, %v1185
        %v1201 = vpack.c.bf16 %v1188, %v1187
        %v1202 = vpack.c.bf16 %v1190, %v1189
        %v1203 = vpack.c.bf16 %v1192, %v1191
        %v1204 = vpack.c.bf16 %v1199, %v1193
        %v1205 = vld [vmem:[#allocation3 + $0x15] sm:$0xff]
        %v1206 = vld [vmem:[#allocation3 + $0x1d] sm:$0xff]
        %v1207 = vld [vmem:[#allocation3 + $0x25] sm:$0xff]
        %v1208 = vld [vmem:[#allocation3 + $0x2d] sm:$0xff]
        %v1209 = vld [vmem:[#allocation3 + $0x35] sm:$0xff]
        %v1210 = vld [vmem:[#allocation3 + $0x3d] sm:$0xff]
        %v1211 = vld [vmem:[#allocation3 + $0x45] sm:$0xff]
        %v1212 = vld [vmem:[#allocation3 + $0x4d] sm:$0xff]
        %v1213 = vld [vmem:[#allocation3 + $0x55] sm:$0xff]
        %v1214 = vld [vmem:[#allocation3 + $0x5d] sm:$0xff]
        %v1215 = vpack.c.bf16 %v1206, %v1205
        %v1216 = vpack.c.bf16 %v1208, %v1207
        %v1217 = vpack.c.bf16 %v1210, %v1209
        %v1218 = vpack.c.bf16 %v1212, %v1211
        %v1219 = vpack.c.bf16 %v1214, %v1213
        %v1220 = vld [vmem:[#allocation3 + $0x16] sm:$0xff]
        %v1221 = vld [vmem:[#allocation3 + $0x1e] sm:$0xff]
        %v1222 = vld [vmem:[#allocation3 + $0x26] sm:$0xff]
        %v1223 = vld [vmem:[#allocation3 + $0x2e] sm:$0xff]
        %v1224 = vld [vmem:[#allocation3 + $0x36] sm:$0xff]
        %v1225 = vld [vmem:[#allocation3 + $0x3e] sm:$0xff]
        %v1226 = vld [vmem:[#allocation3 + $0x46] sm:$0xff]
        %v1227 = vld [vmem:[#allocation3 + $0x4e] sm:$0xff]
        %v1228 = vld [vmem:[#allocation3 + $0x56] sm:$0xff]
        %v1229 = vld [vmem:[#allocation3 + $0x5e] sm:$0xff]
        %v1230 = vpack.c.bf16 %v1221, %v1220
        %v1231 = vpack.c.bf16 %v1223, %v1222
        %v1232 = vpack.c.bf16 %v1225, %v1224
        %v1233 = vpack.c.bf16 %v1227, %v1226
        %v1234 = vpack.c.bf16 %v1229, %v1228
        %v1235 = vld [vmem:[#allocation6] sm:$0xf]
        %v1236 = vld [vmem:[#allocation6 + $0x4] sm:$0xf]
        %v1237 = vld [vmem:[#allocation6 + $0x8] sm:$0xf]
        %v1238 = vld [vmem:[#allocation6 + $0xc] sm:$0xf]
        %v1239 = vld [vmem:[#allocation6 + $0x10] sm:$0xf]
        %v1240 = vld [vmem:[#allocation6 + $0x14] sm:$0xf]
        %v1241 = vld [vmem:[#allocation6 + $0x18] sm:$0xf]
        %v1242 = vld [vmem:[#allocation6 + $0x1c] sm:$0xf]
        %v1243 = vld [vmem:[#allocation6 + $0x20] sm:$0xf]
        %v1244 = vld [vmem:[#allocation6 + $0x24] sm:$0xf]
        %v1245 = vld [vmem:[#allocation6 + $0x28] sm:$0xf]
        %v1246 = vld [vmem:[#allocation6 + $0x2c] sm:$0xf]
        %v1247 = vld [vmem:[#allocation6 + $0x30] sm:$0xf]
        %v1248 = vld [vmem:[#allocation6 + $0x34] sm:$0xf]
        %v1249 = vld [vmem:[#allocation6 + $0x38] sm:$0xf]
        %v1250 = vld [vmem:[#allocation6 + $0x3c] sm:$0xf]
        %v1251 = vld [vmem:[#allocation6 + $0x40] sm:$0xf]
        %v1252 = vld [vmem:[#allocation6 + $0x44] sm:$0xf]
        %v1253 = vld [vmem:[#allocation6 + $0x48] sm:$0xf]
        %v1254 = vld [vmem:[#allocation6 + $0x4c] sm:$0xf]
        %v1255 = vld [vmem:[#allocation6 + $0x50] sm:$0xf]
        %v1256 = vld [vmem:[#allocation6 + $0x54] sm:$0xf]
        %v1257 = vld [vmem:[#allocation6 + $0x58] sm:$0xf]
        %v1258 = vld [vmem:[#allocation6 + $0x5c] sm:$0xf]
        %v1259 = vld [vmem:[#allocation6 + $0x60] sm:$0xf]
        %v1260 = vld [vmem:[#allocation6 + $0x64] sm:$0xf]
        %v1261 = vld [vmem:[#allocation6 + $0x68] sm:$0xf]
        %v1262 = vld [vmem:[#allocation6 + $0x6c] sm:$0xf]
        %v1263 = vld [vmem:[#allocation6 + $0x70] sm:$0xf]
        %v1264 = vld [vmem:[#allocation6 + $0x74] sm:$0xf]
        %v1265 = vld [vmem:[#allocation6 + $0x78] sm:$0xf]
        %v1266 = vld [vmem:[#allocation6 + $0x7c] sm:$0xf]
        %v1267 = vld [vmem:[#allocation6 + $0x80] sm:$0xf]
        %v1268 = vld [vmem:[#allocation6 + $0x84] sm:$0xf]
        %v1269 = vld [vmem:[#allocation6 + $0x88] sm:$0xf]
        %v1270 = vld [vmem:[#allocation6 + $0x8c] sm:$0xf]
        %v1271 = vld [vmem:[#allocation6 + $0x90] sm:$0xf]
        %v1272 = vld [vmem:[#allocation6 + $0x94] sm:$0xf]
        %v1273 = vld [vmem:[#allocation6 + $0x98] sm:$0xf]
        %v1274 = vld [vmem:[#allocation6 + $0x9c] sm:$0xf]
        %v1275 = vld [vmem:[#allocation6 + $0xa0] sm:$0xf]
        %v1276 = vld [vmem:[#allocation6 + $0xa4] sm:$0xf]
        %v1277 = vld [vmem:[#allocation6 + $0xa8] sm:$0xf]
        %v1278 = vld [vmem:[#allocation6 + $0xac] sm:$0xf]
        %v1279 = vld [vmem:[#allocation6 + $0xb0] sm:$0xf]
        %v1280 = vld [vmem:[#allocation6 + $0xb4] sm:$0xf]
        %v1281 = vld [vmem:[#allocation6 + $0xb8] sm:$0xf]
        %v1282 = vld [vmem:[#allocation6 + $0xbc] sm:$0xf]
        %v1283 = vld [vmem:[#allocation6 + $0xc0] sm:$0xf]
        %v1284 = vld [vmem:[#allocation6 + $0xc4] sm:$0xf]
        %v1285 = vld [vmem:[#allocation6 + $0xc8] sm:$0xf]
        %v1286 = vld [vmem:[#allocation6 + $0xcc] sm:$0xf]
        %v1287 = vld [vmem:[#allocation6 + $0xd0] sm:$0xf]
        %v1288 = vld [vmem:[#allocation6 + $0xd4] sm:$0xf]
        %v1289 = vld [vmem:[#allocation6 + $0xd8] sm:$0xf]
        %v1290 = vld [vmem:[#allocation6 + $0xdc] sm:$0xf]
        %v1291 = vld [vmem:[#allocation6 + $0xe0] sm:$0xf]
        %v1292 = vld [vmem:[#allocation6 + $0xe4] sm:$0xf]
        %v1293 = vld [vmem:[#allocation6 + $0xe8] sm:$0xf]
        %v1294 = vld [vmem:[#allocation6 + $0xec] sm:$0xf]
        %v1295 = vld [vmem:[#allocation6 + $0xf0] sm:$0xf]
        %v1296 = vld [vmem:[#allocation6 + $0xf4] sm:$0xf]
        %v1297 = vld [vmem:[#allocation6 + $0xf8] sm:$0xf]
        %v1298 = vld [vmem:[#allocation6 + $0xfc] sm:$0xf]
        %v1299 = vld [vmem:[#allocation6 + $0x100] sm:$0xf]
        %v1300 = vld [vmem:[#allocation6 + $0x104] sm:$0xf]
        %v1301 = vld [vmem:[#allocation6 + $0x108] sm:$0xf]
        %v1302 = vld [vmem:[#allocation6 + $0x10c] sm:$0xf]
        %v1303 = vld [vmem:[#allocation6 + $0x110] sm:$0xf]
        %v1304 = vld [vmem:[#allocation6 + $0x114] sm:$0xf]
        %v1305 = vld [vmem:[#allocation6 + $0x118] sm:$0xf]
        %v1306 = vld [vmem:[#allocation6 + $0x11c] sm:$0xf]
        %v1307 = vld [vmem:[#allocation6 + $0x120] sm:$0xf]
        %v1308 = vld [vmem:[#allocation6 + $0x124] sm:$0xf]
        %v1309 = vld [vmem:[#allocation6 + $0x128] sm:$0xf]
        %v1310 = vld [vmem:[#allocation6 + $0x12c] sm:$0xf]
        %v1311 = vld [vmem:[#allocation6 + $0x130] sm:$0xf]
        %v1312 = vld [vmem:[#allocation6 + $0x134] sm:$0xf]
        %v1313 = vld [vmem:[#allocation6 + $0x138] sm:$0xf]
        %v1314 = vld [vmem:[#allocation6 + $0x13c] sm:$0xf]
        %v1315 = vld [vmem:[#allocation6 + $0x140] sm:$0xf]
        %v1316 = vld [vmem:[#allocation6 + $0x144] sm:$0xf]
        %v1317 = vld [vmem:[#allocation6 + $0x148] sm:$0xf]
        %v1318 = vld [vmem:[#allocation6 + $0x14c] sm:$0xf]
        %v1319 = vld [vmem:[#allocation6 + $0x150] sm:$0xf]
        %v1320 = vld [vmem:[#allocation6 + $0x154] sm:$0xf]
        %v1321 = vld [vmem:[#allocation6 + $0x158] sm:$0xf]
        %v1322 = vld [vmem:[#allocation6 + $0x15c] sm:$0xf]
        %v1323 = vld [vmem:[#allocation6 + $0x160] sm:$0xf]
        %v1324 = vld [vmem:[#allocation6 + $0x164] sm:$0xf]
        %v1325 = vld [vmem:[#allocation6 + $0x168] sm:$0xf]
        %v1326 = vld [vmem:[#allocation6 + $0x16c] sm:$0xf]
        %v1327 = vld [vmem:[#allocation6 + $0x170] sm:$0xf]
        %v1328 = vld [vmem:[#allocation6 + $0x174] sm:$0xf]
        %v1329 = vld [vmem:[#allocation6 + $0x178] sm:$0xf]
        %v1330 = vld [vmem:[#allocation6 + $0x17c] sm:$0xf]
        %v1331 = vld [vmem:[#allocation6 + $0x180] sm:$0xf]
        %v1332 = vld [vmem:[#allocation6 + $0x184] sm:$0xf]
        %v1333 = vld [vmem:[#allocation6 + $0x188] sm:$0xf]
        %v1334 = vld [vmem:[#allocation6 + $0x18c] sm:$0xf]
        %v1335 = vld [vmem:[#allocation6 + $0x190] sm:$0xf]
        %v1336 = vld [vmem:[#allocation6 + $0x194] sm:$0xf]
        %v1337 = vld [vmem:[#allocation6 + $0x198] sm:$0xf]
        %v1338 = vld [vmem:[#allocation6 + $0x19c] sm:$0xf]
        %v1339 = vld [vmem:[#allocation6 + $0x1a0] sm:$0xf]
        %v1340 = vld [vmem:[#allocation6 + $0x1a4] sm:$0xf]
        %v1341 = vld [vmem:[#allocation6 + $0x1a8] sm:$0xf]
        %v1342 = vld [vmem:[#allocation6 + $0x1ac] sm:$0xf]
        %v1343 = vld [vmem:[#allocation6 + $0x1b0] sm:$0xf]
        %v1344 = vld [vmem:[#allocation6 + $0x1b4] sm:$0xf]
        %v1345 = vld [vmem:[#allocation6 + $0x1b8] sm:$0xf]
        %v1346 = vld [vmem:[#allocation6 + $0x1bc] sm:$0xf]
        %v1347 = vld [vmem:[#allocation6 + $0x1c0] sm:$0xf]
        %v1348 = vld [vmem:[#allocation6 + $0x1c4] sm:$0xf]
        %v1349 = vld [vmem:[#allocation6 + $0x1c8] sm:$0xf]
        %v1350 = vld [vmem:[#allocation6 + $0x1cc] sm:$0xf]
        %v1351 = vld [vmem:[#allocation6 + $0x1d0] sm:$0xf]
        %v1352 = vld [vmem:[#allocation6 + $0x1d4] sm:$0xf]
        %v1353 = vld [vmem:[#allocation6 + $0x1d8] sm:$0xf]
        %v1354 = vld [vmem:[#allocation6 + $0x1dc] sm:$0xf]
        %v1355 = vld [vmem:[#allocation6 + $0x1e0] sm:$0xf]
        %v1356 = vld [vmem:[#allocation6 + $0x1e4] sm:$0xf]
        %v1357 = vld [vmem:[#allocation6 + $0x1e8] sm:$0xf]
        %v1358 = vld [vmem:[#allocation6 + $0x1ec] sm:$0xf]
        %v1359 = vld [vmem:[#allocation6 + $0x1f0] sm:$0xf]
        %v1360 = vld [vmem:[#allocation6 + $0x1f4] sm:$0xf]
        %v1361 = vld [vmem:[#allocation6 + $0x1f8] sm:$0xf]
        %v1362 = vld [vmem:[#allocation6 + $0x1fc] sm:$0xf]
        %v1363 = vld [vmem:[#allocation6 + $0x200] sm:$0xf]
        %v1364 = vld [vmem:[#allocation6 + $0x204] sm:$0xf]
        %v1365 = vld [vmem:[#allocation6 + $0x208] sm:$0xf]
        %v1366 = vld [vmem:[#allocation6 + $0x20c] sm:$0xf]
        %v1367 = vld [vmem:[#allocation6 + $0x210] sm:$0xf]
        %v1368 = vld [vmem:[#allocation6 + $0x214] sm:$0xf]
        %v1369 = vld [vmem:[#allocation6 + $0x218] sm:$0xf]
        %v1370 = vld [vmem:[#allocation6 + $0x21c] sm:$0xf]
        %v1371 = vld [vmem:[#allocation6 + $0x220] sm:$0xf]
        %v1372 = vld [vmem:[#allocation6 + $0x224] sm:$0xf]
        %v1373 = vld [vmem:[#allocation6 + $0x228] sm:$0xf]
        %v1374 = vld [vmem:[#allocation6 + $0x22c] sm:$0xf]
        %v1375 = vld [vmem:[#allocation6 + $0x230] sm:$0xf]
        %v1376 = vld [vmem:[#allocation6 + $0x234] sm:$0xf]
        %v1377 = vld [vmem:[#allocation6 + $0x238] sm:$0xf]
        %v1378 = vld [vmem:[#allocation6 + $0x23c] sm:$0xf]
        %v1523 = vunpack.c.l.b16 %v1235
        %v1524 = vunpack.c.l.b16 %v1236
        %v1525 = vunpack.c.l.b16 %v1237
        %v1526 = vunpack.c.l.b16 %v1238
        %v1527 = vunpack.c.l.b16 %v1239
        %v1528 = vunpack.c.l.b16 %v1240
        %v1529 = vunpack.c.l.b16 %v1241
        %v1530 = vunpack.c.l.b16 %v1242
        %v1531 = vunpack.c.l.b16 %v1243
        %v1532 = vunpack.c.l.b16 %v1244
        %v1533 = vunpack.c.l.b16 %v1245
        %v1534 = vunpack.c.l.b16 %v1246
        %v1535 = vunpack.c.l.b16 %v1247
        %v1536 = vunpack.c.l.b16 %v1248
        %v1537 = vunpack.c.l.b16 %v1249
        %v1538 = vunpack.c.l.b16 %v1250
        %v1539 = vunpack.c.l.b16 %v1251
        %v1540 = vunpack.c.l.b16 %v1252
        %v1541 = vunpack.c.l.b16 %v1253
        %v1542 = vunpack.c.l.b16 %v1254
        %v1543 = vunpack.c.l.b16 %v1255
        %v1544 = vunpack.c.l.b16 %v1256
        %v1545 = vunpack.c.l.b16 %v1257
        %v1546 = vunpack.c.l.b16 %v1258
        %v1547 = vunpack.c.l.b16 %v1259
        %v1548 = vunpack.c.l.b16 %v1260
        %v1549 = vunpack.c.l.b16 %v1261
        %v1550 = vunpack.c.l.b16 %v1262
        %v1551 = vunpack.c.l.b16 %v1263
        %v1552 = vunpack.c.l.b16 %v1264
        %v1553 = vunpack.c.l.b16 %v1265
        %v1554 = vunpack.c.l.b16 %v1266
        %v1555 = vunpack.c.l.b16 %v1267
        %v1556 = vunpack.c.l.b16 %v1268
        %v1557 = vunpack.c.l.b16 %v1269
        %v1558 = vunpack.c.l.b16 %v1270
        %v1559 = vunpack.c.l.b16 %v1271
        %v1560 = vunpack.c.l.b16 %v1272
        %v1561 = vunpack.c.l.b16 %v1273
        %v1562 = vunpack.c.l.b16 %v1274
        %v1563 = vunpack.c.l.b16 %v1275
        %v1564 = vunpack.c.l.b16 %v1276
        %v1565 = vunpack.c.l.b16 %v1277
        %v1566 = vunpack.c.l.b16 %v1278
        %v1567 = vunpack.c.l.b16 %v1279
        %v1568 = vunpack.c.l.b16 %v1280
        %v1569 = vunpack.c.l.b16 %v1281
        %v1570 = vunpack.c.l.b16 %v1282
        %v1571 = vunpack.c.l.b16 %v1283
        %v1572 = vunpack.c.l.b16 %v1284
        %v1573 = vunpack.c.l.b16 %v1285
        %v1574 = vunpack.c.l.b16 %v1286
        %v1575 = vunpack.c.l.b16 %v1287
        %v1576 = vunpack.c.l.b16 %v1288
        %v1577 = vunpack.c.l.b16 %v1289
        %v1578 = vunpack.c.l.b16 %v1290
        %v1579 = vunpack.c.l.b16 %v1291
        %v1580 = vunpack.c.l.b16 %v1292
        %v1581 = vunpack.c.l.b16 %v1293
        %v1582 = vunpack.c.l.b16 %v1294
        %v1583 = vunpack.c.l.b16 %v1295
        %v1584 = vunpack.c.l.b16 %v1296
        %v1585 = vunpack.c.l.b16 %v1297
        %v1586 = vunpack.c.l.b16 %v1298
        %v1587 = vunpack.c.l.b16 %v1299
        %v1588 = vunpack.c.l.b16 %v1300
        %v1589 = vunpack.c.l.b16 %v1301
        %v1590 = vunpack.c.l.b16 %v1302
        %v1591 = vunpack.c.l.b16 %v1303
        %v1592 = vunpack.c.l.b16 %v1304
        %v1593 = vunpack.c.l.b16 %v1305
        %v1594 = vunpack.c.l.b16 %v1306
        %v1595 = vunpack.c.l.b16 %v1307
        %v1596 = vunpack.c.l.b16 %v1308
        %v1597 = vunpack.c.l.b16 %v1309
        %v1598 = vunpack.c.l.b16 %v1310
        %v1599 = vunpack.c.l.b16 %v1311
        %v1600 = vunpack.c.l.b16 %v1312
        %v1601 = vunpack.c.l.b16 %v1313
        %v1602 = vunpack.c.l.b16 %v1314
        %v1603 = vunpack.c.l.b16 %v1315
        %v1604 = vunpack.c.l.b16 %v1316
        %v1605 = vunpack.c.l.b16 %v1317
        %v1606 = vunpack.c.l.b16 %v1318
        %v1607 = vunpack.c.l.b16 %v1319
        %v1608 = vunpack.c.l.b16 %v1320
        %v1609 = vunpack.c.l.b16 %v1321
        %v1610 = vunpack.c.l.b16 %v1322
        %v1611 = vunpack.c.l.b16 %v1323
        %v1612 = vunpack.c.l.b16 %v1324
        %v1613 = vunpack.c.l.b16 %v1325
        %v1614 = vunpack.c.l.b16 %v1326
        %v1615 = vunpack.c.l.b16 %v1327
        %v1616 = vunpack.c.l.b16 %v1328
        %v1617 = vunpack.c.l.b16 %v1329
        %v1618 = vunpack.c.l.b16 %v1330
        %v1619 = vunpack.c.l.b16 %v1331
        %v1620 = vunpack.c.l.b16 %v1332
        %v1621 = vunpack.c.l.b16 %v1333
        %v1622 = vunpack.c.l.b16 %v1334
        %v1623 = vunpack.c.l.b16 %v1335
        %v1624 = vunpack.c.l.b16 %v1336
        %v1625 = vunpack.c.l.b16 %v1337
        %v1626 = vunpack.c.l.b16 %v1338
        %v1627 = vunpack.c.l.b16 %v1339
        %v1628 = vunpack.c.l.b16 %v1340
        %v1629 = vunpack.c.l.b16 %v1341
        %v1630 = vunpack.c.l.b16 %v1342
        %v1631 = vunpack.c.l.b16 %v1343
        %v1632 = vunpack.c.l.b16 %v1344
        %v1633 = vunpack.c.l.b16 %v1345
        %v1634 = vunpack.c.l.b16 %v1346
        %v1635 = vunpack.c.l.b16 %v1347
        %v1636 = vunpack.c.l.b16 %v1348
        %v1637 = vunpack.c.l.b16 %v1349
        %v1638 = vunpack.c.l.b16 %v1350
        %v1639 = vunpack.c.l.b16 %v1351
        %v1640 = vunpack.c.l.b16 %v1352
        %v1641 = vunpack.c.l.b16 %v1353
        %v1642 = vunpack.c.l.b16 %v1354
        %v1643 = vunpack.c.l.b16 %v1355
        %v1644 = vunpack.c.l.b16 %v1356
        %v1645 = vunpack.c.l.b16 %v1357
        %v1646 = vunpack.c.l.b16 %v1358
        %v1647 = vunpack.c.l.b16 %v1359
        %v1648 = vunpack.c.l.b16 %v1360
        %v1649 = vunpack.c.l.b16 %v1361
        %v1650 = vunpack.c.l.b16 %v1362
        %v1651 = vunpack.c.l.b16 %v1363
        %v1652 = vunpack.c.l.b16 %v1364
        %v1653 = vunpack.c.l.b16 %v1365
        %v1654 = vunpack.c.l.b16 %v1366
        %v1655 = vunpack.c.l.b16 %v1367
        %v1656 = vunpack.c.l.b16 %v1368
        %v1657 = vunpack.c.l.b16 %v1369
        %v1658 = vunpack.c.l.b16 %v1370
        %v1659 = vunpack.c.l.b16 %v1371
        %v1660 = vunpack.c.l.b16 %v1372
        %v1661 = vunpack.c.l.b16 %v1373
        %v1662 = vunpack.c.l.b16 %v1374
        %v1663 = vunpack.c.l.b16 %v1375
        %v1664 = vunpack.c.l.b16 %v1376
        %v1665 = vunpack.c.l.b16 %v1377
        %v1666 = vunpack.c.l.b16 %v1378
        %v1667 = vpack.c.b16 %v1524, %v1523
        %v1668 = vpack.c.b16 %v1526, %v1525
        %v1669 = vpack.c.b16 %v1528, %v1527
        %v1670 = vpack.c.b16 %v1530, %v1529
        %v1671 = vpack.c.b16 %v1532, %v1531
        %v1672 = vpack.c.b16 %v1534, %v1533
        %v1673 = vpack.c.b16 %v1536, %v1535
        %v1674 = vpack.c.b16 %v1538, %v1537
        %v1675 = vpack.c.b16 %v1540, %v1539
        %v1676 = vpack.c.b16 %v1542, %v1541
        %v1677 = vpack.c.b16 %v1544, %v1543
        %v1678 = vpack.c.b16 %v1546, %v1545
        %v1679 = vpack.c.b16 %v1548, %v1547
        %v1680 = vpack.c.b16 %v1550, %v1549
        %v1681 = vpack.c.b16 %v1552, %v1551
        %v1682 = vpack.c.b16 %v1554, %v1553
        %v1683 = vpack.c.b16 %v1556, %v1555
        %v1684 = vpack.c.b16 %v1558, %v1557
        %v1685 = vpack.c.b16 %v1560, %v1559
        %v1686 = vpack.c.b16 %v1562, %v1561
        %v1687 = vpack.c.b16 %v1564, %v1563
        %v1688 = vpack.c.b16 %v1566, %v1565
        %v1689 = vpack.c.b16 %v1568, %v1567
        %v1690 = vpack.c.b16 %v1570, %v1569
        %v1691 = vpack.c.b16 %v1572, %v1571
        %v1692 = vpack.c.b16 %v1574, %v1573
        %v1693 = vpack.c.b16 %v1576, %v1575
        %v1694 = vpack.c.b16 %v1578, %v1577
        %v1695 = vpack.c.b16 %v1580, %v1579
        %v1696 = vpack.c.b16 %v1582, %v1581
        %v1697 = vpack.c.b16 %v1584, %v1583
        %v1698 = vpack.c.b16 %v1586, %v1585
        %v1699 = vpack.c.b16 %v1588, %v1587
        %v1700 = vpack.c.b16 %v1590, %v1589
        %v1701 = vpack.c.b16 %v1592, %v1591
        %v1702 = vpack.c.b16 %v1594, %v1593
        %v1703 = vpack.c.b16 %v1596, %v1595
        %v1704 = vpack.c.b16 %v1598, %v1597
        %v1705 = vpack.c.b16 %v1600, %v1599
        %v1706 = vpack.c.b16 %v1602, %v1601
        %v1707 = vpack.c.b16 %v1604, %v1603
        %v1708 = vpack.c.b16 %v1606, %v1605
        %v1709 = vpack.c.b16 %v1608, %v1607
        %v1710 = vpack.c.b16 %v1610, %v1609
        %v1711 = vpack.c.b16 %v1612, %v1611
        %v1712 = vpack.c.b16 %v1614, %v1613
        %v1713 = vpack.c.b16 %v1616, %v1615
        %v1714 = vpack.c.b16 %v1618, %v1617
        %v1715 = vpack.c.b16 %v1620, %v1619
        %v1716 = vpack.c.b16 %v1622, %v1621
        %v1717 = vpack.c.b16 %v1624, %v1623
        %v1718 = vpack.c.b16 %v1626, %v1625
        %v1719 = vpack.c.b16 %v1628, %v1627
        %v1720 = vpack.c.b16 %v1630, %v1629
        %v1721 = vpack.c.b16 %v1632, %v1631
        %v1722 = vpack.c.b16 %v1634, %v1633
        %v1723 = vpack.c.b16 %v1636, %v1635
        %v1724 = vpack.c.b16 %v1638, %v1637
        %v1725 = vpack.c.b16 %v1640, %v1639
        %v1726 = vpack.c.b16 %v1642, %v1641
        %v1727 = vpack.c.b16 %v1644, %v1643
        %v1728 = vpack.c.b16 %v1646, %v1645
        %v1729 = vpack.c.b16 %v1648, %v1647
        %v1730 = vpack.c.b16 %v1650, %v1649
        %v1731 = vpack.c.b16 %v1652, %v1651
        %v1732 = vpack.c.b16 %v1654, %v1653
        %v1733 = vpack.c.b16 %v1656, %v1655
        %v1734 = vpack.c.b16 %v1658, %v1657
        %v1735 = vpack.c.b16 %v1660, %v1659
        %v1736 = vpack.c.b16 %v1662, %v1661
        %v1737 = vpack.c.b16 %v1664, %v1663
        %v1738 = vpack.c.b16 %v1666, %v1665
        %1811 = vmatprep.subr.bf16.mxu0 0
        %1812 = vmatpush1.bf16.msra.mxu0 %v1667
        %1813 = vmatprep.subr.bf16.mxu0 0
        %1814 = vmatpush1.bf16.msra.mxu0 %v1668
        %1815 = vmatprep.subr.bf16.mxu0 0
        %1816 = vmatpush1.bf16.msra.mxu0 %v1669
        %1817 = vmatprep.subr.bf16.mxu0 0
        %1818 = vmatpush1.bf16.msra.mxu0 %v1670
        %1819 = vmatprep.subr.bf16.mxu0 0
        %1820 = vmatpush1.bf16.msra.mxu0 %v1671
        %1821 = vmatprep.subr.bf16.mxu0 0
        %1822 = vmatpush1.bf16.msra.mxu0 %v1672
        %1823 = vmatprep.subr.bf16.mxu0 0
        %1824 = vmatpush1.bf16.msra.mxu0 %v1673
        %1825 = vmatprep.subr.bf16.mxu0 0
        %1826 = vmatpush1.bf16.msra.mxu0 %v1674
        %1827 = vmatprep.subr.bf16.mxu0 0
        %1828 = vmatpush1.bf16.msra.mxu0 %v1675
        %1829 = vmatprep.subr.bf16.mxu0 0
        %1830 = vmatpush1.bf16.msra.mxu0 %v1676
        %1831 = vmatprep.subr.bf16.mxu0 0
        %1832 = vmatpush1.bf16.msra.mxu0 %v1677
        %1833 = vmatprep.subr.bf16.mxu0 0
        %1834 = vmatpush1.bf16.msra.mxu0 %v1678
        %1835 = vmatprep.subr.bf16.mxu0 0
        %1836 = vmatpush1.bf16.msra.mxu0 %v1679
        %1837 = vmatprep.subr.bf16.mxu0 0
        %1838 = vmatpush1.bf16.msra.mxu0 %v1680
        %1839 = vmatprep.subr.bf16.mxu0 0
        %1840 = vmatpush1.bf16.msra.mxu0 %v1681
        %1841 = vmatprep.subr.bf16.mxu0 0
        %1842 = vmatpush1.bf16.msra.mxu0 %v1682
        %1843 = vmatprep.mubr.bf16.mxu0 %v1143
        %1844 = vmatmul.mubr.bf16.gmra.mrb[0].mxu0 %v1128
        %v1845 = vpop.f32.mrb[0].mxu0
        %v1846 = vadd.f32 0.0, %v1845
        %v1847 = vpop.f32.mrb[0].mxu0
        %v1848 = vpop.f32.mrb[0].mxu0
        %v1849 = vadd.f32 0.0, %v1848
        %v1850 = vpop.f32.mrb[0].mxu0
        %1851 = vmatprep.mubr.bf16.mxu0 %v1144
        %1852 = vmatmul.mubr.bf16.gmra.mrb[0].mxu0 %v1129
        %v1853 = vpop.f32.mrb[0].mxu0
        %v1854 = vadd.f32 0.0, %v1853
        %v1855 = vpop.f32.mrb[0].mxu0
        %v1856 = vpop.f32.mrb[0].mxu0
        %v1857 = vadd.f32 0.0, %v1856
        %v1858 = vpop.f32.mrb[0].mxu0
        %1859 = vmatprep.mubr.bf16.mxu0 %v1145
        %1860 = vmatmul.mubr.bf16.gmra.mrb[0].mxu0 %v1130
        %v1861 = vpop.f32.mrb[0].mxu0
        %v1862 = vadd.f32 0.0, %v1861
        %v1863 = vpop.f32.mrb[0].mxu0
        %v1864 = vpop.f32.mrb[0].mxu0
        %v1865 = vadd.f32 0.0, %v1864
        %v1866 = vpop.f32.mrb[0].mxu0
        %1867 = vmatprep.mubr.bf16.mxu0 %v1146
        %1868 = vmatmul.mubr.bf16.gmra.mrb[0].mxu0 %v1131
        %v1869 = vpop.f32.mrb[0].mxu0
        %v1870 = vadd.f32 0.0, %v1869
        %v1871 = vpop.f32.mrb[0].mxu0
        %v1872 = vpop.f32.mrb[0].mxu0
        %v1873 = vadd.f32 0.0, %v1872
        %v1874 = vpop.f32.mrb[0].mxu0
        %1875 = vmatprep.mubr.bf16.mxu0 %v1147
        %1876 = vmatmul.mubr.bf16.gmra.mrb[0].mxu0 %v1132
        %v1877 = vpop.f32.mrb[0].mxu0
        %v1878 = vadd.f32 0.0, %v1877
        %v1879 = vpop.f32.mrb[0].mxu0
        %v1880 = vpop.f32.mrb[0].mxu0
        %v1881 = vadd.f32 0.0, %v1880
        %v1882 = vpop.f32.mrb[0].mxu0
        %1883 = vdwg.mxu0
        %1884 = vmatprep.subr.bf16.mxu0 0
        %1885 = vmatpush1.bf16.msra.mxu0 %v1683
        %1886 = vmatprep.subr.bf16.mxu0 0
        %1887 = vmatpush1.bf16.msra.mxu0 %v1684
        %1888 = vmatprep.subr.bf16.mxu0 0
        %1889 = vmatpush1.bf16.msra.mxu0 %v1685
        %1890 = vmatprep.subr.bf16.mxu0 0
        %1891 = vmatpush1.bf16.msra.mxu0 %v1686
        %1892 = vmatprep.subr.bf16.mxu0 0
        %1893 = vmatpush1.bf16.msra.mxu0 %v1687
        %1894 = vmatprep.subr.bf16.mxu0 0
        %1895 = vmatpush1.bf16.msra.mxu0 %v1688
        %1896 = vmatprep.subr.bf16.mxu0 0
        %1897 = vmatpush1.bf16.msra.mxu0 %v1689
        %1898 = vmatprep.subr.bf16.mxu0 0
        %1899 = vmatpush1.bf16.msra.mxu0 %v1690
        %1900 = vmatprep.subr.bf16.mxu0 0
        %1901 = vmatpush1.bf16.msra.mxu0 %v1691
        %1902 = vmatprep.subr.bf16.mxu0 0
        %1903 = vmatpush1.bf16.msra.mxu0 %v1692
        %1904 = vmatprep.subr.bf16.mxu0 0
        %1905 = vmatpush1.bf16.msra.mxu0 %v1693
        %1906 = vmatprep.subr.bf16.mxu0 0
        %1907 = vmatpush1.bf16.msra.mxu0 %v1694
        %1908 = vmatprep.subr.bf16.mxu0 0
        %1909 = vmatpush1.bf16.msra.mxu0 %v1695
        %1910 = vmatprep.subr.bf16.mxu0 0
        %1911 = vmatpush1.bf16.msra.mxu0 %v1696
        %1912 = vmatprep.subr.bf16.mxu0 0
        %1913 = vmatpush1.bf16.msra.mxu0 %v1697
        %1914 = vmatprep.subr.bf16.mxu0 0
        %1915 = vmatpush1.bf16.msra.mxu0 %v1698
        %1916 = vmatprep.mubr.bf16.mxu0 %v1164
        %1917 = vmatmul.mubr.bf16.gmra.mrb[0].mxu0 %v1158
        %v1918 = vpop.f32.mrb[0].mxu0
        %v1919 = vadd.f32 %v1846, %v1918
        %v1920 = vpop.f32.mrb[0].mxu0
        %v1921 = vpop.f32.mrb[0].mxu0
        %v1922 = vadd.f32 %v1849, %v1921
        %v1923 = vpop.f32.mrb[0].mxu0
        %1924 = vmatprep.mubr.bf16.mxu0 %v1165
        %1925 = vmatmul.mubr.bf16.gmra.mrb[0].mxu0 %v1159
        %v1926 = vpop.f32.mrb[0].mxu0
        %v1927 = vadd.f32 %v1854, %v1926
        %v1928 = vpop.f32.mrb[0].mxu0
        %v1929 = vpop.f32.mrb[0].mxu0
        %v1930 = vadd.f32 %v1857, %v1929
        %v1931 = vpop.f32.mrb[0].mxu0
        %1932 = vmatprep.mubr.bf16.mxu0 %v1166
        %1933 = vmatmul.mubr.bf16.gmra.mrb[0].mxu0 %v1160
        %v1934 = vpop.f32.mrb[0].mxu0
        %v1935 = vadd.f32 %v1862, %v1934
        %v1936 = vpop.f32.mrb[0].mxu0
        %v1937 = vpop.f32.mrb[0].mxu0
        %v1938 = vadd.f32 %v1865, %v1937
        %v1939 = vpop.f32.mrb[0].mxu0
        %1940 = vmatprep.mubr.bf16.mxu0 %v1167
        %1941 = vmatmul.mubr.bf16.gmra.mrb[0].mxu0 %v1161
        %v1942 = vpop.f32.mrb[0].mxu0
        %v1943 = vadd.f32 %v1870, %v1942
        %v1944 = vpop.f32.mrb[0].mxu0
        %v1945 = vpop.f32.mrb[0].mxu0
        %v1946 = vadd.f32 %v1873, %v1945
        %v1947 = vpop.f32.mrb[0].mxu0
        %1948 = vmatprep.mubr.bf16.mxu0 %v1168
        %1949 = vmatmul.mubr.bf16.gmra.mrb[0].mxu0 %v1162
        %v1950 = vpop.f32.mrb[0].mxu0
        %v1951 = vadd.f32 %v1878, %v1950
        %v1952 = vpop.f32.mrb[0].mxu0
        %v1953 = vpop.f32.mrb[0].mxu0
        %v1954 = vadd.f32 %v1881, %v1953
        %v1955 = vpop.f32.mrb[0].mxu0
        %1956 = vdwg.mxu0
        %1957 = vmatprep.subr.bf16.mxu0 0
        %1958 = vmatpush1.bf16.msra.mxu0 %v1699
        %1959 = vmatprep.subr.bf16.mxu0 0
        %1960 = vmatpush1.bf16.msra.mxu0 %v1700
        %1961 = vmatprep.subr.bf16.mxu0 0
        %1962 = vmatpush1.bf16.msra.mxu0 %v1701
        %1963 = vmatprep.subr.bf16.mxu0 0
        %1964 = vmatpush1.bf16.msra.mxu0 %v1702
        %1965 = vmatprep.subr.bf16.mxu0 0
        %1966 = vmatpush1.bf16.msra.mxu0 %v1703
        %1967 = vmatprep.subr.bf16.mxu0 0
        %1968 = vmatpush1.bf16.msra.mxu0 %v1704
        %1969 = vmatprep.subr.bf16.mxu0 0
        %1970 = vmatpush1.bf16.msra.mxu0 %v1705
        %1971 = vmatprep.subr.bf16.mxu0 0
        %1972 = vmatpush1.bf16.msra.mxu0 %v1706
        %1973 = vmatprep.subr.bf16.mxu0 0
        %1974 = vmatpush1.bf16.msra.mxu0 %v1707
        %1975 = vmatprep.subr.bf16.mxu0 0
        %1976 = vmatpush1.bf16.msra.mxu0 %v1708
        %1977 = vmatprep.subr.bf16.mxu0 0
        %1978 = vmatpush1.bf16.msra.mxu0 %v1709
        %1979 = vmatprep.subr.bf16.mxu0 0
        %1980 = vmatpush1.bf16.msra.mxu0 %v1710
        %1981 = vmatprep.subr.bf16.mxu0 0
        %1982 = vmatpush1.bf16.msra.mxu0 %v1711
        %1983 = vmatprep.subr.bf16.mxu0 0
        %1984 = vmatpush1.bf16.msra.mxu0 %v1712
        %1985 = vmatprep.subr.bf16.mxu0 0
        %1986 = vmatpush1.bf16.msra.mxu0 %v1713
        %1987 = vmatprep.subr.bf16.mxu0 0
        %1988 = vmatpush1.bf16.msra.mxu0 %v1714
        %1989 = vmatprep.mubr.bf16.mxu0 %v1194
        %1990 = vmatmul.mubr.bf16.gmra.mrb[0].mxu0 %v1179
        %v1991 = vpop.f32.mrb[0].mxu0
        %v1992 = vadd.f32 %v1919, %v1991
        %v1993 = vpop.f32.mrb[0].mxu0
        %v1994 = vpop.f32.mrb[0].mxu0
        %v1995 = vadd.f32 %v1922, %v1994
        %v1996 = vpop.f32.mrb[0].mxu0
        %1997 = vmatprep.mubr.bf16.mxu0 %v1195
        %1998 = vmatmul.mubr.bf16.gmra.mrb[0].mxu0 %v1180
        %v1999 = vpop.f32.mrb[0].mxu0
        %v2000 = vadd.f32 %v1927, %v1999
        %v2001 = vpop.f32.mrb[0].mxu0
        %v2002 = vpop.f32.mrb[0].mxu0
        %v2003 = vadd.f32 %v1930, %v2002
        %v2004 = vpop.f32.mrb[0].mxu0
        %2005 = vmatprep.mubr.bf16.mxu0 %v1196
        %2006 = vmatmul.mubr.bf16.gmra.mrb[0].mxu0 %v1181
        %v2007 = vpop.f32.mrb[0].mxu0
        %v2008 = vadd.f32 %v1935, %v2007
        %v2009 = vpop.f32.mrb[0].mxu0
        %v2010 = vpop.f32.mrb[0].mxu0
        %v2011 = vadd.f32 %v1938, %v2010
        %v2012 = vpop.f32.mrb[0].mxu0
        %2013 = vmatprep.mubr.bf16.mxu0 %v1197
        %2014 = vmatmul.mubr.bf16.gmra.mrb[0].mxu0 %v1182
        %v2015 = vpop.f32.mrb[0].mxu0
        %v2016 = vadd.f32 %v1943, %v2015
        %v2017 = vpop.f32.mrb[0].mxu0
        %v2018 = vpop.f32.mrb[0].mxu0
        %v2019 = vadd.f32 %v1946, %v2018
        %v2020 = vpop.f32.mrb[0].mxu0
        %2021 = vmatprep.mubr.bf16.mxu0 %v1198
        %2022 = vmatmul.mubr.bf16.gmra.mrb[0].mxu0 %v1183
        %v2023 = vpop.f32.mrb[0].mxu0
        %v2024 = vadd.f32 %v1951, %v2023
        %v2025 = vpop.f32.mrb[0].mxu0
        %v2026 = vpop.f32.mrb[0].mxu0
        %v2027 = vadd.f32 %v1954, %v2026
        %v2028 = vpop.f32.mrb[0].mxu0
        %2029 = vdwg.mxu0
        %2030 = vmatprep.subr.bf16.mxu0 0
        %2031 = vmatpush1.bf16.msra.mxu0 %v1715
        %2032 = vmatprep.subr.bf16.mxu0 0
        %2033 = vmatpush1.bf16.msra.mxu0 %v1716
        %2034 = vmatprep.subr.bf16.mxu0 0
        %2035 = vmatpush1.bf16.msra.mxu0 %v1717
        %2036 = vmatprep.subr.bf16.mxu0 0
        %2037 = vmatpush1.bf16.msra.mxu0 %v1718
        %2038 = vmatprep.subr.bf16.mxu0 0
        %2039 = vmatpush1.bf16.msra.mxu0 %v1719
        %2040 = vmatprep.subr.bf16.mxu0 0
        %2041 = vmatpush1.bf16.msra.mxu0 %v1720
        %2042 = vmatprep.subr.bf16.mxu0 0
        %2043 = vmatpush1.bf16.msra.mxu0 %v1721
        %2044 = vmatprep.subr.bf16.mxu0 0
        %2045 = vmatpush1.bf16.msra.mxu0 %v1722
        %2046 = vmatprep.subr.bf16.mxu0 0
        %2047 = vmatpush1.bf16.msra.mxu0 %v1723
        %2048 = vmatprep.subr.bf16.mxu0 0
        %2049 = vmatpush1.bf16.msra.mxu0 %v1724
        %2050 = vmatprep.subr.bf16.mxu0 0
        %2051 = vmatpush1.bf16.msra.mxu0 %v1725
        %2052 = vmatprep.subr.bf16.mxu0 0
        %2053 = vmatpush1.bf16.msra.mxu0 %v1726
        %2054 = vmatprep.subr.bf16.mxu0 0
        %2055 = vmatpush1.bf16.msra.mxu0 %v1727
        %2056 = vmatprep.subr.bf16.mxu0 0
        %2057 = vmatpush1.bf16.msra.mxu0 %v1728
        %2058 = vmatprep.subr.bf16.mxu0 0
        %2059 = vmatpush1.bf16.msra.mxu0 %v1729
        %2060 = vmatprep.subr.bf16.mxu0 0
        %2061 = vmatpush1.bf16.msra.mxu0 %v1730
        %2062 = vmatprep.mubr.bf16.mxu0 %v1215
        %2063 = vmatmul.mubr.bf16.gmra.mrb[0].mxu0 %v1200
        %v2064 = vpop.f32.mrb[0].mxu0
        %v2065 = vadd.f32 %v1992, %v2064
        %v2066 = vpop.f32.mrb[0].mxu0
        %v2067 = vpop.f32.mrb[0].mxu0
        %v2068 = vadd.f32 %v1995, %v2067
        %v2069 = vpop.f32.mrb[0].mxu0
        %2070 = vmatprep.mubr.bf16.mxu0 %v1216
        %2071 = vmatmul.mubr.bf16.gmra.mrb[0].mxu0 %v1201
        %v2072 = vpop.f32.mrb[0].mxu0
        %v2073 = vadd.f32 %v2000, %v2072
        %v2074 = vpop.f32.mrb[0].mxu0
        %v2075 = vpop.f32.mrb[0].mxu0
        %v2076 = vadd.f32 %v2003, %v2075
        %v2077 = vpop.f32.mrb[0].mxu0
        %2078 = vmatprep.mubr.bf16.mxu0 %v1217
        %2079 = vmatmul.mubr.bf16.gmra.mrb[0].mxu0 %v1202
        %v2080 = vpop.f32.mrb[0].mxu0
        %v2081 = vadd.f32 %v2008, %v2080
        %v2082 = vpop.f32.mrb[0].mxu0
        %v2083 = vpop.f32.mrb[0].mxu0
        %v2084 = vadd.f32 %v2011, %v2083
        %v2085 = vpop.f32.mrb[0].mxu0
        %2086 = vmatprep.mubr.bf16.mxu0 %v1218
        %2087 = vmatmul.mubr.bf16.gmra.mrb[0].mxu0 %v1203
        %v2088 = vpop.f32.mrb[0].mxu0
        %v2089 = vadd.f32 %v2016, %v2088
        %v2090 = vpop.f32.mrb[0].mxu0
        %v2091 = vpop.f32.mrb[0].mxu0
        %v2092 = vadd.f32 %v2019, %v2091
        %v2093 = vpop.f32.mrb[0].mxu0
        %2094 = vmatprep.mubr.bf16.mxu0 %v1219
        %2095 = vmatmul.mubr.bf16.gmra.mrb[0].mxu0 %v1204
        %v2096 = vpop.f32.mrb[0].mxu0
        %v2097 = vadd.f32 %v2024, %v2096
        %v2098 = vpop.f32.mrb[0].mxu0
        %v2099 = vpop.f32.mrb[0].mxu0
        %v2100 = vadd.f32 %v2027, %v2099
        %v2101 = vpop.f32.mrb[0].mxu0
        %2102 = vdwg.mxu0
        %2103 = vmatprep.subr.bf16.mxu0 0
        %2104 = vmatpush1.bf16.msra.mxu0 %v1731
        %2105 = vmatprep.subr.bf16.mxu0 0
        %2106 = vmatpush1.bf16.msra.mxu0 %v1732
        %2107 = vmatprep.subr.bf16.mxu0 0
        %2108 = vmatpush1.bf16.msra.mxu0 %v1733
        %2109 = vmatprep.subr.bf16.mxu0 0
        %2110 = vmatpush1.bf16.msra.mxu0 %v1734
        %2111 = vmatprep.subr.bf16.mxu0 0
        %2112 = vmatpush1.bf16.msra.mxu0 %v1735
        %2113 = vmatprep.subr.bf16.mxu0 0
        %2114 = vmatpush1.bf16.msra.mxu0 %v1736
        %2115 = vmatprep.subr.bf16.mxu0 0
        %2116 = vmatpush1.bf16.msra.mxu0 %v1737
        %2117 = vmatprep.subr.bf16.mxu0 0
        %2118 = vmatpush1.bf16.msra.mxu0 %v1738
        %2119 = vmatprep.subr.bf16.mxu0 0
        %2120 = vmatpush1.bf16.msra.mxu0 0
        %2121 = vmatprep.subr.bf16.mxu0 0
        %2122 = vmatpush1.bf16.msra.mxu0 0
        %2123 = vmatprep.subr.bf16.mxu0 0
        %2124 = vmatpush1.bf16.msra.mxu0 0
        %2125 = vmatprep.subr.bf16.mxu0 0
        %2126 = vmatpush1.bf16.msra.mxu0 0
        %2127 = vmatprep.subr.bf16.mxu0 0
        %2128 = vmatpush1.bf16.msra.mxu0 0
        %2129 = vmatprep.subr.bf16.mxu0 0
        %2130 = vmatpush1.bf16.msra.mxu0 0
        %2131 = vmatprep.subr.bf16.mxu0 0
        %2132 = vmatpush1.bf16.msra.mxu0 0
        %2133 = vmatprep.subr.bf16.mxu0 0
        %2134 = vmatpush1.bf16.msra.mxu0 0
        %2135 = vmatprep.mubr.bf16.mxu0 0
        %2136 = vmatmul.mubr.bf16.gmra.mrb[0].mxu0 %v1230
        %v2137 = vpop.f32.mrb[0].mxu0
        %v2138 = vadd.f32 %v2065, %v2137
        %v2139 = vpop.f32.mrb[0].mxu0
        %v2140 = vpop.f32.mrb[0].mxu0
        %v2141 = vadd.f32 %v2068, %v2140
        %v2142 = vpop.f32.mrb[0].mxu0
        %2143 = vmatprep.mubr.bf16.mxu0 0
        %2144 = vmatmul.mubr.bf16.gmra.mrb[0].mxu0 %v1231
        %v2145 = vpop.f32.mrb[0].mxu0
        %v2146 = vadd.f32 %v2073, %v2145
        %v2147 = vpop.f32.mrb[0].mxu0
        %v2148 = vpop.f32.mrb[0].mxu0
        %v2149 = vadd.f32 %v2076, %v2148
        %v2150 = vpop.f32.mrb[0].mxu0
        %2151 = vmatprep.mubr.bf16.mxu0 0
        %2152 = vmatmul.mubr.bf16.gmra.mrb[0].mxu0 %v1232
        %v2153 = vpop.f32.mrb[0].mxu0
        %v2154 = vadd.f32 %v2081, %v2153
        %v2155 = vpop.f32.mrb[0].mxu0
        %v2156 = vpop.f32.mrb[0].mxu0
        %v2157 = vadd.f32 %v2084, %v2156
        %v2158 = vpop.f32.mrb[0].mxu0
        %2159 = vmatprep.mubr.bf16.mxu0 0
        %2160 = vmatmul.mubr.bf16.gmra.mrb[0].mxu0 %v1233
        %v2161 = vpop.f32.mrb[0].mxu0
        %v2162 = vadd.f32 %v2089, %v2161
        %v2163 = vpop.f32.mrb[0].mxu0
        %v2164 = vpop.f32.mrb[0].mxu0
        %v2165 = vadd.f32 %v2092, %v2164
        %v2166 = vpop.f32.mrb[0].mxu0
        %2167 = vmatprep.mubr.bf16.mxu0 0
        %2168 = vmatmul.mubr.bf16.gmra.mrb[0].mxu0 %v1234
        %v2169 = vpop.f32.mrb[0].mxu0
        %v2170 = vadd.f32 %v2097, %v2169
        %v2171 = vpop.f32.mrb[0].mxu0
        %v2172 = vpop.f32.mrb[0].mxu0
        %v2173 = vadd.f32 %v2100, %v2172
        %v2174 = vpop.f32.mrb[0].mxu0
        %2175 = vdwg.mxu0
        %v2176 = vld [vmem:[%s5 + $0x1] sm:$0x1]
        %v2177 = vlaneseq
        %v2178 = vshrl.u32 %v2177, 7
        %v2179 = vsub.s32 0, %v2178
        %v2180 = vrot.slane %v2176, %v2179
        %v2181 = vmul.f32 %v2138, %v2180
        %v2182 = vmul.f32 %v2141, %v2180
        %v2183 = vmul.f32 %v2146, %v2180
        %v2184 = vmul.f32 %v2149, %v2180
        %v2185 = vmul.f32 %v2154, %v2180
        %v2186 = vmul.f32 %v2157, %v2180
        %v2187 = vmul.f32 %v2162, %v2180
        %v2188 = vmul.f32 %v2165, %v2180
        %v2189 = vmul.f32 %v2170, %v2180
        %v2190 = vmul.f32 %v2173, %v2180
        %v2191 = vld [vmem:[%s6 + $0x1] sm:$0x1]
        %v2192 = vlaneseq
        %v2193 = vshrl.u32 %v2192, 7
        %v2194 = vsub.s32 0, %v2193
        %v2195 = vrot.slane %v2191, %v2194
        %v2196 = vadd.f32 %v2181, %v2195
        %v2197 = vadd.f32 %v2182, %v2195
        %v2198 = vadd.f32 %v2183, %v2195
        %v2199 = vadd.f32 %v2184, %v2195
        %v2200 = vadd.f32 %v2185, %v2195
        %v2201 = vadd.f32 %v2186, %v2195
        %v2202 = vadd.f32 %v2187, %v2195
        %v2203 = vadd.f32 %v2188, %v2195
        %v2204 = vadd.f32 %v2189, %v2195
        %v2205 = vadd.f32 %v2190, %v2195
        %v2206 = vmax.f32 %v2196, 0.0
        %v2207 = vmax.f32 %v2197, 0.0
        %v2208 = vmax.f32 %v2198, 0.0
        %v2209 = vmax.f32 %v2199, 0.0
        %v2210 = vmax.f32 %v2200, 0.0
        %v2211 = vmax.f32 %v2201, 0.0
        %v2212 = vmax.f32 %v2202, 0.0
        %v2213 = vmax.f32 %v2203, 0.0
        %v2214 = vmax.f32 %v2204, 0.0
        %v2215 = vmax.f32 %v2205, 0.0
        %2216 = vst [vmem:[#allocation2] sm:$0xff] %v2206
        %2217 = vst [vmem:[#allocation2 + $0x8] sm:$0xff] %v2207
        %2218 = vst [vmem:[#allocation2 + $0x10] sm:$0xff] %v2208
        %2219 = vst [vmem:[#allocation2 + $0x18] sm:$0xff] %v2209
        %2220 = vst [vmem:[#allocation2 + $0x20] sm:$0xff] %v2210
        %2221 = vst [vmem:[#allocation2 + $0x28] sm:$0xff] %v2211
        %2222 = vst [vmem:[#allocation2 + $0x30] sm:$0xff] %v2212
        %2223 = vst [vmem:[#allocation2 + $0x38] sm:$0xff] %v2213
        %2224 = vst [vmem:[#allocation2 + $0x40] sm:$0xff] %v2214
        %2225 = vst [vmem:[#allocation2 + $0x48] sm:$0xff] %v2215
        %v2226 = vld [vmem:[#allocation2] ss:$2 sm:$0xf]
        %v2227 = vld [vmem:[%s939] ss:$2 sm:$0xf]
        %s2228 = scalar_lea.vmem [#allocation2], 10
        %v2229 = vld [vmem:[%s2228] ss:$2 sm:$0xf]
        %s2230 = scalar_lea.vmem [#allocation2], 11
        %v2231 = vld [vmem:[%s2230] ss:$2 sm:$0xf]
        %v2232 = vadd.s32 %v935, 8
        %v2233 = vmax.f32 %v2226, %v2227
        %vm2234 = vcmp.ge.f32.partialorder %v2226, %v2227
        %v2235 = vsel %vm2234, %v935, %v946
        %v2236 = vmax.f32 %v2229, %v2231
        %vm2237 = vcmp.ge.f32.partialorder %v2229, %v2231
        %v2238 = vadd.s32 %v2232, 1
        %v2239 = vsel %vm2237, %v2232, %v2238
        %vm2240 = vcmp.ge.f32.partialorder %v2233, %v2236
        %v2241 = vsel %vm2240, %v2235, %v2239
        %2242 = vst [vmem:[%s417] sm:$0xf] %v2241
        %v2243 = vmax.f32 %v2233, %v2236
        %2244 = vst [vmem:[#allocation4 + $0x7] sm:$0xf] %v2243
        %s2245 = scalar_lea.vmem [#allocation2], 20
        %v2246 = vld [vmem:[%s2245] ss:$2 sm:$0xf]
        %s2247 = scalar_lea.vmem [#allocation2], 21
        %v2248 = vld [vmem:[%s2247] ss:$2 sm:$0xf]
        %s2249 = scalar_lea.vmem [#allocation2], 30
        %v2250 = vld [vmem:[%s2249] ss:$2 sm:$0xf]
        %s2251 = scalar_lea.vmem [#allocation2], 31
        %v2252 = vld [vmem:[%s2251] ss:$2 sm:$0xf]
        %v2253 = vadd.s32 %v935, 24
        %v2254 = vmax.f32 %v2246, %v2248
        %vm2255 = vcmp.ge.f32.partialorder %v2246, %v2248
        %v2256 = vsel %vm2255, %v943, %v950
        %v2257 = vmax.f32 %v2250, %v2252
        %vm2258 = vcmp.ge.f32.partialorder %v2250, %v2252
        %v2259 = vadd.s32 %v2253, 1
        %v2260 = vsel %vm2258, %v2253, %v2259
        %vm2261 = vcmp.ge.f32.partialorder %v2254, %v2257
        %v2262 = vsel %vm2261, %v2256, %v2260
        %2263 = vst [vmem:[%s417 + $0x4] sm:$0xf] %v2262
        %v2264 = vmax.f32 %v2254, %v2257
        %2265 = vst [vmem:[#allocation4 + $0xd] sm:$0xf] %v2264
        %s2266 = scalar_lea.vmem [#allocation2], 40
        %v2267 = vld [vmem:[%s2266] ss:$2 sm:$0xf]
        %s2268 = scalar_lea.vmem [#allocation2], 41
        %v2269 = vld [vmem:[%s2268] ss:$2 sm:$0xf]
        %s2270 = scalar_lea.vmem [#allocation2], 50
        %v2271 = vld [vmem:[%s2270] ss:$2 sm:$0xf]
        %s2272 = scalar_lea.vmem [#allocation2], 51
        %v2273 = vld [vmem:[%s2272] ss:$2 sm:$0xf]
        %v2274 = vadd.s32 %v935, 40
        %v2275 = vmax.f32 %v2267, %v2269
        %vm2276 = vcmp.ge.f32.partialorder %v2267, %v2269
        %v2277 = vsel %vm2276, %v965, %v969
        %v2278 = vmax.f32 %v2271, %v2273
        %vm2279 = vcmp.ge.f32.partialorder %v2271, %v2273
        %v2280 = vadd.s32 %v2274, 1
        %v2281 = vsel %vm2279, %v2274, %v2280
        %vm2282 = vcmp.ge.f32.partialorder %v2275, %v2278
        %v2283 = vsel %vm2282, %v2277, %v2281
        %2284 = vst [vmem:[%s417 + $0x8] sm:$0xf] %v2283
        %v2285 = vmax.f32 %v2275, %v2278
        %2286 = vst [vmem:[#allocation4 + $0x13] sm:$0xf] %v2285
        %s2287 = scalar_lea.vmem [#allocation2], 60
        %v2288 = vld [vmem:[%s2287] ss:$2 sm:$0xf]
        %s2289 = scalar_lea.vmem [#allocation2], 61
        %v2290 = vld [vmem:[%s2289] ss:$2 sm:$0xf]
        %s2291 = scalar_lea.vmem [#allocation2], 70
        %v2292 = vld [vmem:[%s2291] ss:$2 sm:$0xf]
        %s2293 = scalar_lea.vmem [#allocation2], 71
        %v2294 = vld [vmem:[%s2293] ss:$2 sm:$0xf]
        %v2295 = vadd.s32 %v935, 56
        %v2296 = vmax.f32 %v2288, %v2290
        %vm2297 = vcmp.ge.f32.partialorder %v2288, %v2290
        %v2298 = vsel %vm2297, %v966, %v973
        %v2299 = vmax.f32 %v2292, %v2294
        %vm2300 = vcmp.ge.f32.partialorder %v2292, %v2294
        %v2301 = vadd.s32 %v2295, 1
        %v2302 = vsel %vm2300, %v2295, %v2301
        %vm2303 = vcmp.ge.f32.partialorder %v2296, %v2299
        %v2304 = vsel %vm2303, %v2298, %v2302
        %2305 = vst [vmem:[%s417 + $0xc] sm:$0xf] %v2304
        %v2306 = vmax.f32 %v2296, %v2299
        %2307 = vst [vmem:[#allocation4 + $0x19] sm:$0xf] %v2306
        %v2308 = vld [vmem:[#allocation4] sm:$0xff]
        %v2309 = vld [vmem:[#allocation4 + $0x8] sm:$0xff]
        %v2310 = vld [vmem:[#allocation4 + $0x10] sm:$0xff]
        %v2311 = vpack.c.bf16 %v2309, %v2308
        %v2312 = vpack.c.bf16 %v2310, %v2310
        %v2313 = vld [vmem:[#allocation4 + $0x1] sm:$0xff]
        %v2314 = vld [vmem:[#allocation4 + $0x9] sm:$0xff]
        %v2315 = vld [vmem:[#allocation4 + $0x11] sm:$0xff]
        %v2316 = vpack.c.bf16 %v2314, %v2313
        %v2317 = vpack.c.bf16 %v2315, %v2315
        %v2318 = vld [vmem:[#allocation4 + $0x2] sm:$0xff]
        %v2319 = vld [vmem:[#allocation4 + $0xa] sm:$0xff]
        %v2320 = vld [vmem:[#allocation4 + $0x12] sm:$0xff]
        %v2321 = vpack.c.bf16 %v2319, %v2318
        %v2322 = vpack.c.bf16 %v2320, %v2320
        %v2323 = vld [vmem:[#allocation4 + $0x6] sm:$0xff]
        %v2324 = vld [vmem:[#allocation4 + $0xe] sm:$0xff]
        %v2325 = vld [vmem:[#allocation4 + $0x16] sm:$0xff]
        %v2326 = vpack.c.bf16 %v2324, %v2323
        %v2327 = vpack.c.bf16 %v2325, %v2325
        %v2328 = vld [vmem:[#allocation4 + $0x7] sm:$0xff]
        %v2329 = vld [vmem:[#allocation4 + $0xf] sm:$0xff]
        %v2330 = vld [vmem:[#allocation4 + $0x17] sm:$0xff]
        %v2331 = vpack.c.bf16 %v2329, %v2328
        %v2332 = vpack.c.bf16 %v2330, %v2330
        %v2333 = vld [vmem:[#allocation4 + $0x18] sm:$0xff]
        %v2334 = vpack.c.bf16 %v2310, %v2309
        %v2335 = vpack.c.bf16 %v2333, %v2333
        %v2336 = vld [vmem:[#allocation4 + $0xc] sm:$0xff]
        %v2337 = vld [vmem:[#allocation4 + $0x14] sm:$0xff]
        %v2338 = vld [vmem:[#allocation4 + $0x1c] sm:$0xff]
        %v2339 = vpack.c.bf16 %v2337, %v2336
        %v2340 = vpack.c.bf16 %v2338, %v2338
        %v2341 = vld [vmem:[#allocation4 + $0xd] sm:$0xff]
        %v2342 = vld [vmem:[#allocation4 + $0x15] sm:$0xff]
        %v2343 = vld [vmem:[#allocation4 + $0x1d] sm:$0xff]
        %v2344 = vpack.c.bf16 %v2342, %v2341
        %v2345 = vpack.c.bf16 %v2343, %v2343
        %v2346 = vld [vmem:[#allocation4 + $0xe] sm:$0xff]
        %v2347 = vld [vmem:[#allocation4 + $0x16] sm:$0xff]
        %v2348 = vld [vmem:[#allocation4 + $0x1e] sm:$0xff]
        %v2349 = vpack.c.bf16 %v2347, %v2346
        %v2350 = vpack.c.bf16 %v2348, %v2348
        %v2351 = vld [vmem:[#allocation9] sm:$0xf]
        %v2352 = vld [vmem:[#allocation9 + $0x4] sm:$0xf]
        %v2353 = vld [vmem:[#allocation9 + $0x8] sm:$0xf]
        %v2354 = vld [vmem:[#allocation9 + $0xc] sm:$0xf]
        %v2355 = vld [vmem:[#allocation9 + $0x10] sm:$0xf]
        %v2356 = vld [vmem:[#allocation9 + $0x14] sm:$0xf]
        %v2357 = vld [vmem:[#allocation9 + $0x18] sm:$0xf]
        %v2358 = vld [vmem:[#allocation9 + $0x1c] sm:$0xf]
        %v2359 = vld [vmem:[#allocation9 + $0x20] sm:$0xf]
        %v2360 = vld [vmem:[#allocation9 + $0x24] sm:$0xf]
        %v2361 = vld [vmem:[#allocation9 + $0x28] sm:$0xf]
        %v2362 = vld [vmem:[#allocation9 + $0x2c] sm:$0xf]
        %v2363 = vld [vmem:[#allocation9 + $0x30] sm:$0xf]
        %v2364 = vld [vmem:[#allocation9 + $0x34] sm:$0xf]
        %v2365 = vld [vmem:[#allocation9 + $0x38] sm:$0xf]
        %v2366 = vld [vmem:[#allocation9 + $0x3c] sm:$0xf]
        %v2367 = vld [vmem:[#allocation9 + $0x40] sm:$0xf]
        %v2368 = vld [vmem:[#allocation9 + $0x44] sm:$0xf]
        %v2369 = vld [vmem:[#allocation9 + $0x48] sm:$0xf]
        %v2370 = vld [vmem:[#allocation9 + $0x4c] sm:$0xf]
        %v2371 = vld [vmem:[#allocation9 + $0x50] sm:$0xf]
        %v2372 = vld [vmem:[#allocation9 + $0x54] sm:$0xf]
        %v2373 = vld [vmem:[#allocation9 + $0x58] sm:$0xf]
        %v2374 = vld [vmem:[#allocation9 + $0x5c] sm:$0xf]
        %v2375 = vld [vmem:[#allocation9 + $0x60] sm:$0xf]
        %v2376 = vld [vmem:[#allocation9 + $0x64] sm:$0xf]
        %v2377 = vld [vmem:[#allocation9 + $0x68] sm:$0xf]
        %v2378 = vld [vmem:[#allocation9 + $0x6c] sm:$0xf]
        %v2379 = vld [vmem:[#allocation9 + $0x70] sm:$0xf]
        %v2380 = vld [vmem:[#allocation9 + $0x74] sm:$0xf]
        %v2381 = vld [vmem:[#allocation9 + $0x78] sm:$0xf]
        %v2382 = vld [vmem:[#allocation9 + $0x7c] sm:$0xf]
        %v2383 = vld [vmem:[#allocation9 + $0x80] sm:$0xf]
        %v2384 = vld [vmem:[#allocation9 + $0x84] sm:$0xf]
        %v2385 = vld [vmem:[#allocation9 + $0x88] sm:$0xf]
        %v2386 = vld [vmem:[#allocation9 + $0x8c] sm:$0xf]
        %v2387 = vld [vmem:[#allocation9 + $0x90] sm:$0xf]
        %v2388 = vld [vmem:[#allocation9 + $0x94] sm:$0xf]
        %v2389 = vld [vmem:[#allocation9 + $0x98] sm:$0xf]
        %v2390 = vld [vmem:[#allocation9 + $0x9c] sm:$0xf]
        %v2391 = vld [vmem:[#allocation9 + $0xa0] sm:$0xf]
        %v2392 = vld [vmem:[#allocation9 + $0xa4] sm:$0xf]
        %v2393 = vld [vmem:[#allocation9 + $0xa8] sm:$0xf]
        %v2394 = vld [vmem:[#allocation9 + $0xac] sm:$0xf]
        %v2395 = vld [vmem:[#allocation9 + $0xb0] sm:$0xf]
        %v2396 = vld [vmem:[#allocation9 + $0xb4] sm:$0xf]
        %v2397 = vld [vmem:[#allocation9 + $0xb8] sm:$0xf]
        %v2398 = vld [vmem:[#allocation9 + $0xbc] sm:$0xf]
        %v2399 = vld [vmem:[#allocation9 + $0xc0] sm:$0xf]
        %v2400 = vld [vmem:[#allocation9 + $0xc4] sm:$0xf]
        %v2401 = vld [vmem:[#allocation9 + $0xc8] sm:$0xf]
        %v2402 = vld [vmem:[#allocation9 + $0xcc] sm:$0xf]
        %v2403 = vld [vmem:[#allocation9 + $0xd0] sm:$0xf]
        %v2404 = vld [vmem:[#allocation9 + $0xd4] sm:$0xf]
        %v2405 = vld [vmem:[#allocation9 + $0xd8] sm:$0xf]
        %v2406 = vld [vmem:[#allocation9 + $0xdc] sm:$0xf]
        %v2407 = vld [vmem:[#allocation9 + $0xe0] sm:$0xf]
        %v2408 = vld [vmem:[#allocation9 + $0xe4] sm:$0xf]
        %v2409 = vld [vmem:[#allocation9 + $0xe8] sm:$0xf]
        %v2410 = vld [vmem:[#allocation9 + $0xec] sm:$0xf]
        %v2411 = vld [vmem:[#allocation9 + $0xf0] sm:$0xf]
        %v2412 = vld [vmem:[#allocation9 + $0xf4] sm:$0xf]
        %v2413 = vld [vmem:[#allocation9 + $0xf8] sm:$0xf]
        %v2414 = vld [vmem:[#allocation9 + $0xfc] sm:$0xf]
        %v2415 = vld [vmem:[#allocation9 + $0x100] sm:$0xf]
        %v2416 = vld [vmem:[#allocation9 + $0x104] sm:$0xf]
        %v2417 = vld [vmem:[#allocation9 + $0x108] sm:$0xf]
        %v2418 = vld [vmem:[#allocation9 + $0x10c] sm:$0xf]
        %v2419 = vld [vmem:[#allocation9 + $0x110] sm:$0xf]
        %v2420 = vld [vmem:[#allocation9 + $0x114] sm:$0xf]
        %v2421 = vld [vmem:[#allocation9 + $0x118] sm:$0xf]
        %v2422 = vld [vmem:[#allocation9 + $0x11c] sm:$0xf]
        %v2423 = vld [vmem:[#allocation9 + $0x120] sm:$0xf]
        %v2424 = vld [vmem:[#allocation9 + $0x124] sm:$0xf]
        %v2425 = vld [vmem:[#allocation9 + $0x128] sm:$0xf]
        %v2426 = vld [vmem:[#allocation9 + $0x12c] sm:$0xf]
        %v2427 = vld [vmem:[#allocation9 + $0x130] sm:$0xf]
        %v2428 = vld [vmem:[#allocation9 + $0x134] sm:$0xf]
        %v2429 = vld [vmem:[#allocation9 + $0x138] sm:$0xf]
        %v2430 = vld [vmem:[#allocation9 + $0x13c] sm:$0xf]
        %v2431 = vld [vmem:[#allocation9 + $0x140] sm:$0xf]
        %v2432 = vld [vmem:[#allocation9 + $0x144] sm:$0xf]
        %v2433 = vld [vmem:[#allocation9 + $0x148] sm:$0xf]
        %v2434 = vld [vmem:[#allocation9 + $0x14c] sm:$0xf]
        %v2435 = vld [vmem:[#allocation9 + $0x150] sm:$0xf]
        %v2436 = vld [vmem:[#allocation9 + $0x154] sm:$0xf]
        %v2437 = vld [vmem:[#allocation9 + $0x158] sm:$0xf]
        %v2438 = vld [vmem:[#allocation9 + $0x15c] sm:$0xf]
        %v2439 = vld [vmem:[#allocation9 + $0x160] sm:$0xf]
        %v2440 = vld [vmem:[#allocation9 + $0x164] sm:$0xf]
        %v2441 = vld [vmem:[#allocation9 + $0x168] sm:$0xf]
        %v2442 = vld [vmem:[#allocation9 + $0x16c] sm:$0xf]
        %v2443 = vld [vmem:[#allocation9 + $0x170] sm:$0xf]
        %v2444 = vld [vmem:[#allocation9 + $0x174] sm:$0xf]
        %v2445 = vld [vmem:[#allocation9 + $0x178] sm:$0xf]
        %v2446 = vld [vmem:[#allocation9 + $0x17c] sm:$0xf]
        %v2447 = vld [vmem:[#allocation9 + $0x180] sm:$0xf]
        %v2448 = vld [vmem:[#allocation9 + $0x184] sm:$0xf]
        %v2449 = vld [vmem:[#allocation9 + $0x188] sm:$0xf]
        %v2450 = vld [vmem:[#allocation9 + $0x18c] sm:$0xf]
        %v2451 = vld [vmem:[#allocation9 + $0x190] sm:$0xf]
        %v2452 = vld [vmem:[#allocation9 + $0x194] sm:$0xf]
        %v2453 = vld [vmem:[#allocation9 + $0x198] sm:$0xf]
        %v2454 = vld [vmem:[#allocation9 + $0x19c] sm:$0xf]
        %v2455 = vld [vmem:[#allocation9 + $0x1a0] sm:$0xf]
        %v2456 = vld [vmem:[#allocation9 + $0x1a4] sm:$0xf]
        %v2457 = vld [vmem:[#allocation9 + $0x1a8] sm:$0xf]
        %v2458 = vld [vmem:[#allocation9 + $0x1ac] sm:$0xf]
        %v2459 = vld [vmem:[#allocation9 + $0x1b0] sm:$0xf]
        %v2460 = vld [vmem:[#allocation9 + $0x1b4] sm:$0xf]
        %v2461 = vld [vmem:[#allocation9 + $0x1b8] sm:$0xf]
        %v2462 = vld [vmem:[#allocation9 + $0x1bc] sm:$0xf]
        %v2463 = vld [vmem:[#allocation9 + $0x1c0] sm:$0xf]
        %v2464 = vld [vmem:[#allocation9 + $0x1c4] sm:$0xf]
        %v2465 = vld [vmem:[#allocation9 + $0x1c8] sm:$0xf]
        %v2466 = vld [vmem:[#allocation9 + $0x1cc] sm:$0xf]
        %v2467 = vld [vmem:[#allocation9 + $0x1d0] sm:$0xf]
        %v2468 = vld [vmem:[#allocation9 + $0x1d4] sm:$0xf]
        %v2469 = vld [vmem:[#allocation9 + $0x1d8] sm:$0xf]
        %v2470 = vld [vmem:[#allocation9 + $0x1dc] sm:$0xf]
        %v2471 = vld [vmem:[#allocation9 + $0x1e0] sm:$0xf]
        %v2472 = vld [vmem:[#allocation9 + $0x1e4] sm:$0xf]
        %v2473 = vld [vmem:[#allocation9 + $0x1e8] sm:$0xf]
        %v2474 = vld [vmem:[#allocation9 + $0x1ec] sm:$0xf]
        %v2475 = vld [vmem:[#allocation9 + $0x1f0] sm:$0xf]
        %v2476 = vld [vmem:[#allocation9 + $0x1f4] sm:$0xf]
        %v2477 = vld [vmem:[#allocation9 + $0x1f8] sm:$0xf]
        %v2478 = vld [vmem:[#allocation9 + $0x1fc] sm:$0xf]
        %v2479 = vld [vmem:[#allocation9 + $0x200] sm:$0xf]
        %v2480 = vld [vmem:[#allocation9 + $0x204] sm:$0xf]
        %v2481 = vld [vmem:[#allocation9 + $0x208] sm:$0xf]
        %v2482 = vld [vmem:[#allocation9 + $0x20c] sm:$0xf]
        %v2483 = vld [vmem:[#allocation9 + $0x210] sm:$0xf]
        %v2484 = vld [vmem:[#allocation9 + $0x214] sm:$0xf]
        %v2485 = vld [vmem:[#allocation9 + $0x218] sm:$0xf]
        %v2486 = vld [vmem:[#allocation9 + $0x21c] sm:$0xf]
        %v2487 = vld [vmem:[#allocation9 + $0x220] sm:$0xf]
        %v2488 = vld [vmem:[#allocation9 + $0x224] sm:$0xf]
        %v2489 = vld [vmem:[#allocation9 + $0x228] sm:$0xf]
        %v2490 = vld [vmem:[#allocation9 + $0x22c] sm:$0xf]
        %v2491 = vld [vmem:[#allocation9 + $0x230] sm:$0xf]
        %v2492 = vld [vmem:[#allocation9 + $0x234] sm:$0xf]
        %v2493 = vld [vmem:[#allocation9 + $0x238] sm:$0xf]
        %v2494 = vld [vmem:[#allocation9 + $0x23c] sm:$0xf]
        %v2639 = vunpack.c.l.b16 %v2351
        %v2640 = vunpack.c.l.b16 %v2352
        %v2641 = vunpack.c.l.b16 %v2353
        %v2642 = vunpack.c.l.b16 %v2354
        %v2643 = vunpack.c.l.b16 %v2355
        %v2644 = vunpack.c.l.b16 %v2356
        %v2645 = vunpack.c.l.b16 %v2357
        %v2646 = vunpack.c.l.b16 %v2358
        %v2647 = vunpack.c.l.b16 %v2359
        %v2648 = vunpack.c.l.b16 %v2360
        %v2649 = vunpack.c.l.b16 %v2361
        %v2650 = vunpack.c.l.b16 %v2362
        %v2651 = vunpack.c.l.b16 %v2363
        %v2652 = vunpack.c.l.b16 %v2364
        %v2653 = vunpack.c.l.b16 %v2365
        %v2654 = vunpack.c.l.b16 %v2366
        %v2655 = vunpack.c.l.b16 %v2367
        %v2656 = vunpack.c.l.b16 %v2368
        %v2657 = vunpack.c.l.b16 %v2369
        %v2658 = vunpack.c.l.b16 %v2370
        %v2659 = vunpack.c.l.b16 %v2371
        %v2660 = vunpack.c.l.b16 %v2372
        %v2661 = vunpack.c.l.b16 %v2373
        %v2662 = vunpack.c.l.b16 %v2374
        %v2663 = vunpack.c.l.b16 %v2375
        %v2664 = vunpack.c.l.b16 %v2376
        %v2665 = vunpack.c.l.b16 %v2377
        %v2666 = vunpack.c.l.b16 %v2378
        %v2667 = vunpack.c.l.b16 %v2379
        %v2668 = vunpack.c.l.b16 %v2380
        %v2669 = vunpack.c.l.b16 %v2381
        %v2670 = vunpack.c.l.b16 %v2382
        %v2671 = vunpack.c.l.b16 %v2383
        %v2672 = vunpack.c.l.b16 %v2384
        %v2673 = vunpack.c.l.b16 %v2385
        %v2674 = vunpack.c.l.b16 %v2386
        %v2675 = vunpack.c.l.b16 %v2387
        %v2676 = vunpack.c.l.b16 %v2388
        %v2677 = vunpack.c.l.b16 %v2389
        %v2678 = vunpack.c.l.b16 %v2390
        %v2679 = vunpack.c.l.b16 %v2391
        %v2680 = vunpack.c.l.b16 %v2392
        %v2681 = vunpack.c.l.b16 %v2393
        %v2682 = vunpack.c.l.b16 %v2394
        %v2683 = vunpack.c.l.b16 %v2395
        %v2684 = vunpack.c.l.b16 %v2396
        %v2685 = vunpack.c.l.b16 %v2397
        %v2686 = vunpack.c.l.b16 %v2398
        %v2687 = vunpack.c.l.b16 %v2399
        %v2688 = vunpack.c.l.b16 %v2400
        %v2689 = vunpack.c.l.b16 %v2401
        %v2690 = vunpack.c.l.b16 %v2402
        %v2691 = vunpack.c.l.b16 %v2403
        %v2692 = vunpack.c.l.b16 %v2404
        %v2693 = vunpack.c.l.b16 %v2405
        %v2694 = vunpack.c.l.b16 %v2406
        %v2695 = vunpack.c.l.b16 %v2407
        %v2696 = vunpack.c.l.b16 %v2408
        %v2697 = vunpack.c.l.b16 %v2409
        %v2698 = vunpack.c.l.b16 %v2410
        %v2699 = vunpack.c.l.b16 %v2411
        %v2700 = vunpack.c.l.b16 %v2412
        %v2701 = vunpack.c.l.b16 %v2413
        %v2702 = vunpack.c.l.b16 %v2414
        %v2703 = vunpack.c.l.b16 %v2415
        %v2704 = vunpack.c.l.b16 %v2416
        %v2705 = vunpack.c.l.b16 %v2417
        %v2706 = vunpack.c.l.b16 %v2418
        %v2707 = vunpack.c.l.b16 %v2419
        %v2708 = vunpack.c.l.b16 %v2420
        %v2709 = vunpack.c.l.b16 %v2421
        %v2710 = vunpack.c.l.b16 %v2422
        %v2711 = vunpack.c.l.b16 %v2423
        %v2712 = vunpack.c.l.b16 %v2424
        %v2713 = vunpack.c.l.b16 %v2425
        %v2714 = vunpack.c.l.b16 %v2426
        %v2715 = vunpack.c.l.b16 %v2427
        %v2716 = vunpack.c.l.b16 %v2428
        %v2717 = vunpack.c.l.b16 %v2429
        %v2718 = vunpack.c.l.b16 %v2430
        %v2719 = vunpack.c.l.b16 %v2431
        %v2720 = vunpack.c.l.b16 %v2432
        %v2721 = vunpack.c.l.b16 %v2433
        %v2722 = vunpack.c.l.b16 %v2434
        %v2723 = vunpack.c.l.b16 %v2435
        %v2724 = vunpack.c.l.b16 %v2436
        %v2725 = vunpack.c.l.b16 %v2437
        %v2726 = vunpack.c.l.b16 %v2438
        %v2727 = vunpack.c.l.b16 %v2439
        %v2728 = vunpack.c.l.b16 %v2440
        %v2729 = vunpack.c.l.b16 %v2441
        %v2730 = vunpack.c.l.b16 %v2442
        %v2731 = vunpack.c.l.b16 %v2443
        %v2732 = vunpack.c.l.b16 %v2444
        %v2733 = vunpack.c.l.b16 %v2445
        %v2734 = vunpack.c.l.b16 %v2446
        %v2735 = vunpack.c.l.b16 %v2447
        %v2736 = vunpack.c.l.b16 %v2448
        %v2737 = vunpack.c.l.b16 %v2449
        %v2738 = vunpack.c.l.b16 %v2450
        %v2739 = vunpack.c.l.b16 %v2451
        %v2740 = vunpack.c.l.b16 %v2452
        %v2741 = vunpack.c.l.b16 %v2453
        %v2742 = vunpack.c.l.b16 %v2454
        %v2743 = vunpack.c.l.b16 %v2455
        %v2744 = vunpack.c.l.b16 %v2456
        %v2745 = vunpack.c.l.b16 %v2457
        %v2746 = vunpack.c.l.b16 %v2458
        %v2747 = vunpack.c.l.b16 %v2459
        %v2748 = vunpack.c.l.b16 %v2460
        %v2749 = vunpack.c.l.b16 %v2461
        %v2750 = vunpack.c.l.b16 %v2462
        %v2751 = vunpack.c.l.b16 %v2463
        %v2752 = vunpack.c.l.b16 %v2464
        %v2753 = vunpack.c.l.b16 %v2465
        %v2754 = vunpack.c.l.b16 %v2466
        %v2755 = vunpack.c.l.b16 %v2467
        %v2756 = vunpack.c.l.b16 %v2468
        %v2757 = vunpack.c.l.b16 %v2469
        %v2758 = vunpack.c.l.b16 %v2470
        %v2759 = vunpack.c.l.b16 %v2471
        %v2760 = vunpack.c.l.b16 %v2472
        %v2761 = vunpack.c.l.b16 %v2473
        %v2762 = vunpack.c.l.b16 %v2474
        %v2763 = vunpack.c.l.b16 %v2475
        %v2764 = vunpack.c.l.b16 %v2476
        %v2765 = vunpack.c.l.b16 %v2477
        %v2766 = vunpack.c.l.b16 %v2478
        %v2767 = vunpack.c.l.b16 %v2479
        %v2768 = vunpack.c.l.b16 %v2480
        %v2769 = vunpack.c.l.b16 %v2481
        %v2770 = vunpack.c.l.b16 %v2482
        %v2771 = vunpack.c.l.b16 %v2483
        %v2772 = vunpack.c.l.b16 %v2484
        %v2773 = vunpack.c.l.b16 %v2485
        %v2774 = vunpack.c.l.b16 %v2486
        %v2775 = vunpack.c.l.b16 %v2487
        %v2776 = vunpack.c.l.b16 %v2488
        %v2777 = vunpack.c.l.b16 %v2489
        %v2778 = vunpack.c.l.b16 %v2490
        %v2779 = vunpack.c.l.b16 %v2491
        %v2780 = vunpack.c.l.b16 %v2492
        %v2781 = vunpack.c.l.b16 %v2493
        %v2782 = vunpack.c.l.b16 %v2494
        %v2783 = vpack.c.b16 %v2640, %v2639
        %v2784 = vpack.c.b16 %v2642, %v2641
        %v2785 = vpack.c.b16 %v2644, %v2643
        %v2786 = vpack.c.b16 %v2646, %v2645
        %v2787 = vpack.c.b16 %v2648, %v2647
        %v2788 = vpack.c.b16 %v2650, %v2649
        %v2789 = vpack.c.b16 %v2652, %v2651
        %v2790 = vpack.c.b16 %v2654, %v2653
        %v2791 = vpack.c.b16 %v2656, %v2655
        %v2792 = vpack.c.b16 %v2658, %v2657
        %v2793 = vpack.c.b16 %v2660, %v2659
        %v2794 = vpack.c.b16 %v2662, %v2661
        %v2795 = vpack.c.b16 %v2664, %v2663
        %v2796 = vpack.c.b16 %v2666, %v2665
        %v2797 = vpack.c.b16 %v2668, %v2667
        %v2798 = vpack.c.b16 %v2670, %v2669
        %v2799 = vpack.c.b16 %v2672, %v2671
        %v2800 = vpack.c.b16 %v2674, %v2673
        %v2801 = vpack.c.b16 %v2676, %v2675
        %v2802 = vpack.c.b16 %v2678, %v2677
        %v2803 = vpack.c.b16 %v2680, %v2679
        %v2804 = vpack.c.b16 %v2682, %v2681
        %v2805 = vpack.c.b16 %v2684, %v2683
        %v2806 = vpack.c.b16 %v2686, %v2685
        %v2807 = vpack.c.b16 %v2688, %v2687
        %v2808 = vpack.c.b16 %v2690, %v2689
        %v2809 = vpack.c.b16 %v2692, %v2691
        %v2810 = vpack.c.b16 %v2694, %v2693
        %v2811 = vpack.c.b16 %v2696, %v2695
        %v2812 = vpack.c.b16 %v2698, %v2697
        %v2813 = vpack.c.b16 %v2700, %v2699
        %v2814 = vpack.c.b16 %v2702, %v2701
        %v2815 = vpack.c.b16 %v2704, %v2703
        %v2816 = vpack.c.b16 %v2706, %v2705
        %v2817 = vpack.c.b16 %v2708, %v2707
        %v2818 = vpack.c.b16 %v2710, %v2709
        %v2819 = vpack.c.b16 %v2712, %v2711
        %v2820 = vpack.c.b16 %v2714, %v2713
        %v2821 = vpack.c.b16 %v2716, %v2715
        %v2822 = vpack.c.b16 %v2718, %v2717
        %v2823 = vpack.c.b16 %v2720, %v2719
        %v2824 = vpack.c.b16 %v2722, %v2721
        %v2825 = vpack.c.b16 %v2724, %v2723
        %v2826 = vpack.c.b16 %v2726, %v2725
        %v2827 = vpack.c.b16 %v2728, %v2727
        %v2828 = vpack.c.b16 %v2730, %v2729
        %v2829 = vpack.c.b16 %v2732, %v2731
        %v2830 = vpack.c.b16 %v2734, %v2733
        %v2831 = vpack.c.b16 %v2736, %v2735
        %v2832 = vpack.c.b16 %v2738, %v2737
        %v2833 = vpack.c.b16 %v2740, %v2739
        %v2834 = vpack.c.b16 %v2742, %v2741
        %v2835 = vpack.c.b16 %v2744, %v2743
        %v2836 = vpack.c.b16 %v2746, %v2745
        %v2837 = vpack.c.b16 %v2748, %v2747
        %v2838 = vpack.c.b16 %v2750, %v2749
        %v2839 = vpack.c.b16 %v2752, %v2751
        %v2840 = vpack.c.b16 %v2754, %v2753
        %v2841 = vpack.c.b16 %v2756, %v2755
        %v2842 = vpack.c.b16 %v2758, %v2757
        %v2843 = vpack.c.b16 %v2760, %v2759
        %v2844 = vpack.c.b16 %v2762, %v2761
        %v2845 = vpack.c.b16 %v2764, %v2763
        %v2846 = vpack.c.b16 %v2766, %v2765
        %v2847 = vpack.c.b16 %v2768, %v2767
        %v2848 = vpack.c.b16 %v2770, %v2769
        %v2849 = vpack.c.b16 %v2772, %v2771
        %v2850 = vpack.c.b16 %v2774, %v2773
        %v2851 = vpack.c.b16 %v2776, %v2775
        %v2852 = vpack.c.b16 %v2778, %v2777
        %v2853 = vpack.c.b16 %v2780, %v2779
        %v2854 = vpack.c.b16 %v2782, %v2781
        %2927 = vmatprep.subr.bf16.mxu0 0
        %2928 = vmatpush1.bf16.msra.mxu0 %v2783
        %2929 = vmatprep.subr.bf16.mxu0 0
        %2930 = vmatpush1.bf16.msra.mxu0 %v2784
        %2931 = vmatprep.subr.bf16.mxu0 0
        %2932 = vmatpush1.bf16.msra.mxu0 %v2785
        %2933 = vmatprep.subr.bf16.mxu0 0
        %2934 = vmatpush1.bf16.msra.mxu0 %v2786
        %2935 = vmatprep.subr.bf16.mxu0 0
        %2936 = vmatpush1.bf16.msra.mxu0 %v2787
        %2937 = vmatprep.subr.bf16.mxu0 0
        %2938 = vmatpush1.bf16.msra.mxu0 %v2788
        %2939 = vmatprep.subr.bf16.mxu0 0
        %2940 = vmatpush1.bf16.msra.mxu0 %v2789
        %2941 = vmatprep.subr.bf16.mxu0 0
        %2942 = vmatpush1.bf16.msra.mxu0 %v2790
        %2943 = vmatprep.subr.bf16.mxu0 0
        %2944 = vmatpush1.bf16.msra.mxu0 %v2791
        %2945 = vmatprep.subr.bf16.mxu0 0
        %2946 = vmatpush1.bf16.msra.mxu0 %v2792
        %2947 = vmatprep.subr.bf16.mxu0 0
        %2948 = vmatpush1.bf16.msra.mxu0 %v2793
        %2949 = vmatprep.subr.bf16.mxu0 0
        %2950 = vmatpush1.bf16.msra.mxu0 %v2794
        %2951 = vmatprep.subr.bf16.mxu0 0
        %2952 = vmatpush1.bf16.msra.mxu0 %v2795
        %2953 = vmatprep.subr.bf16.mxu0 0
        %2954 = vmatpush1.bf16.msra.mxu0 %v2796
        %2955 = vmatprep.subr.bf16.mxu0 0
        %2956 = vmatpush1.bf16.msra.mxu0 %v2797
        %2957 = vmatprep.subr.bf16.mxu0 0
        %2958 = vmatpush1.bf16.msra.mxu0 %v2798
        %2959 = vmatprep.mubr.bf16.mxu0 %v2316
        %2960 = vmatmul.mubr.bf16.gmra.mrb[0].mxu0 %v2311
        %v2961 = vpop.f32.mrb[0].mxu0
        %v2962 = vadd.f32 0.0, %v2961
        %v2963 = vpop.f32.mrb[0].mxu0
        %v2964 = vpop.f32.mrb[0].mxu0
        %v2965 = vadd.f32 0.0, %v2964
        %v2966 = vpop.f32.mrb[0].mxu0
        %2967 = vmatprep.mubr.bf16.mxu0 %v2317
        %2968 = vmatmul.mubr.bf16.gmra.mrb[0].mxu0 %v2312
        %v2969 = vpop.f32.mrb[0].mxu0
        %v2970 = vadd.f32 0.0, %v2969
        %v2971 = vpop.f32.mrb[0].mxu0
        %v2972 = vpop.f32.mrb[0].mxu0
        %v2973 = vpop.f32.mrb[0].mxu0
        %2974 = vdwg.mxu0
        %2975 = vmatprep.subr.bf16.mxu0 0
        %2976 = vmatpush1.bf16.msra.mxu0 %v2799
        %2977 = vmatprep.subr.bf16.mxu0 0
        %2978 = vmatpush1.bf16.msra.mxu0 %v2800
        %2979 = vmatprep.subr.bf16.mxu0 0
        %2980 = vmatpush1.bf16.msra.mxu0 %v2801
        %2981 = vmatprep.subr.bf16.mxu0 0
        %2982 = vmatpush1.bf16.msra.mxu0 %v2802
        %2983 = vmatprep.subr.bf16.mxu0 0
        %2984 = vmatpush1.bf16.msra.mxu0 %v2803
        %2985 = vmatprep.subr.bf16.mxu0 0
        %2986 = vmatpush1.bf16.msra.mxu0 %v2804
        %2987 = vmatprep.subr.bf16.mxu0 0
        %2988 = vmatpush1.bf16.msra.mxu0 %v2805
        %2989 = vmatprep.subr.bf16.mxu0 0
        %2990 = vmatpush1.bf16.msra.mxu0 %v2806
        %2991 = vmatprep.subr.bf16.mxu0 0
        %2992 = vmatpush1.bf16.msra.mxu0 %v2807
        %2993 = vmatprep.subr.bf16.mxu0 0
        %2994 = vmatpush1.bf16.msra.mxu0 %v2808
        %2995 = vmatprep.subr.bf16.mxu0 0
        %2996 = vmatpush1.bf16.msra.mxu0 %v2809
        %2997 = vmatprep.subr.bf16.mxu0 0
        %2998 = vmatpush1.bf16.msra.mxu0 %v2810
        %2999 = vmatprep.subr.bf16.mxu0 0
        %3000 = vmatpush1.bf16.msra.mxu0 %v2811
        %3001 = vmatprep.subr.bf16.mxu0 0
        %3002 = vmatpush1.bf16.msra.mxu0 %v2812
        %3003 = vmatprep.subr.bf16.mxu0 0
        %3004 = vmatpush1.bf16.msra.mxu0 %v2813
        %3005 = vmatprep.subr.bf16.mxu0 0
        %3006 = vmatpush1.bf16.msra.mxu0 %v2814
        %3007 = vmatprep.mubr.bf16.mxu0 %v2326
        %3008 = vmatmul.mubr.bf16.gmra.mrb[0].mxu0 %v2321
        %v3009 = vpop.f32.mrb[0].mxu0
        %v3010 = vadd.f32 %v2962, %v3009
        %v3011 = vpop.f32.mrb[0].mxu0
        %v3012 = vpop.f32.mrb[0].mxu0
        %v3013 = vadd.f32 %v2965, %v3012
        %v3014 = vpop.f32.mrb[0].mxu0
        %3015 = vmatprep.mubr.bf16.mxu0 %v2327
        %3016 = vmatmul.mubr.bf16.gmra.mrb[0].mxu0 %v2322
        %v3017 = vpop.f32.mrb[0].mxu0
        %v3018 = vadd.f32 %v2970, %v3017
        %v3019 = vpop.f32.mrb[0].mxu0
        %v3020 = vpop.f32.mrb[0].mxu0
        %v3021 = vpop.f32.mrb[0].mxu0
        %3022 = vdwg.mxu0
        %3023 = vmatprep.subr.bf16.mxu0 0
        %3024 = vmatpush1.bf16.msra.mxu0 %v2815
        %3025 = vmatprep.subr.bf16.mxu0 0
        %3026 = vmatpush1.bf16.msra.mxu0 %v2816
        %3027 = vmatprep.subr.bf16.mxu0 0
        %3028 = vmatpush1.bf16.msra.mxu0 %v2817
        %3029 = vmatprep.subr.bf16.mxu0 0
        %3030 = vmatpush1.bf16.msra.mxu0 %v2818
        %3031 = vmatprep.subr.bf16.mxu0 0
        %3032 = vmatpush1.bf16.msra.mxu0 %v2819
        %3033 = vmatprep.subr.bf16.mxu0 0
        %3034 = vmatpush1.bf16.msra.mxu0 %v2820
        %3035 = vmatprep.subr.bf16.mxu0 0
        %3036 = vmatpush1.bf16.msra.mxu0 %v2821
        %3037 = vmatprep.subr.bf16.mxu0 0
        %3038 = vmatpush1.bf16.msra.mxu0 %v2822
        %3039 = vmatprep.subr.bf16.mxu0 0
        %3040 = vmatpush1.bf16.msra.mxu0 %v2823
        %3041 = vmatprep.subr.bf16.mxu0 0
        %3042 = vmatpush1.bf16.msra.mxu0 %v2824
        %3043 = vmatprep.subr.bf16.mxu0 0
        %3044 = vmatpush1.bf16.msra.mxu0 %v2825
        %3045 = vmatprep.subr.bf16.mxu0 0
        %3046 = vmatpush1.bf16.msra.mxu0 %v2826
        %3047 = vmatprep.subr.bf16.mxu0 0
        %3048 = vmatpush1.bf16.msra.mxu0 %v2827
        %3049 = vmatprep.subr.bf16.mxu0 0
        %3050 = vmatpush1.bf16.msra.mxu0 %v2828
        %3051 = vmatprep.subr.bf16.mxu0 0
        %3052 = vmatpush1.bf16.msra.mxu0 %v2829
        %3053 = vmatprep.subr.bf16.mxu0 0
        %3054 = vmatpush1.bf16.msra.mxu0 %v2830
        %3055 = vmatprep.mubr.bf16.mxu0 %v2334
        %3056 = vmatmul.mubr.bf16.gmra.mrb[0].mxu0 %v2331
        %v3057 = vpop.f32.mrb[0].mxu0
        %v3058 = vadd.f32 %v3010, %v3057
        %v3059 = vpop.f32.mrb[0].mxu0
        %v3060 = vpop.f32.mrb[0].mxu0
        %v3061 = vadd.f32 %v3013, %v3060
        %v3062 = vpop.f32.mrb[0].mxu0
        %3063 = vmatprep.mubr.bf16.mxu0 %v2335
        %3064 = vmatmul.mubr.bf16.gmra.mrb[0].mxu0 %v2332
        %v3065 = vpop.f32.mrb[0].mxu0
        %v3066 = vadd.f32 %v3018, %v3065
        %v3067 = vpop.f32.mrb[0].mxu0
        %v3068 = vpop.f32.mrb[0].mxu0
        %v3069 = vpop.f32.mrb[0].mxu0
        %3070 = vdwg.mxu0
        %3071 = vmatprep.subr.bf16.mxu0 0
        %3072 = vmatpush1.bf16.msra.mxu0 %v2831
        %3073 = vmatprep.subr.bf16.mxu0 0
        %3074 = vmatpush1.bf16.msra.mxu0 %v2832
        %3075 = vmatprep.subr.bf16.mxu0 0
        %3076 = vmatpush1.bf16.msra.mxu0 %v2833
        %3077 = vmatprep.subr.bf16.mxu0 0
        %3078 = vmatpush1.bf16.msra.mxu0 %v2834
        %3079 = vmatprep.subr.bf16.mxu0 0
        %3080 = vmatpush1.bf16.msra.mxu0 %v2835
        %3081 = vmatprep.subr.bf16.mxu0 0
        %3082 = vmatpush1.bf16.msra.mxu0 %v2836
        %3083 = vmatprep.subr.bf16.mxu0 0
        %3084 = vmatpush1.bf16.msra.mxu0 %v2837
        %3085 = vmatprep.subr.bf16.mxu0 0
        %3086 = vmatpush1.bf16.msra.mxu0 %v2838
        %3087 = vmatprep.subr.bf16.mxu0 0
        %3088 = vmatpush1.bf16.msra.mxu0 %v2839
        %3089 = vmatprep.subr.bf16.mxu0 0
        %3090 = vmatpush1.bf16.msra.mxu0 %v2840
        %3091 = vmatprep.subr.bf16.mxu0 0
        %3092 = vmatpush1.bf16.msra.mxu0 %v2841
        %3093 = vmatprep.subr.bf16.mxu0 0
        %3094 = vmatpush1.bf16.msra.mxu0 %v2842
        %3095 = vmatprep.subr.bf16.mxu0 0
        %3096 = vmatpush1.bf16.msra.mxu0 %v2843
        %3097 = vmatprep.subr.bf16.mxu0 0
        %3098 = vmatpush1.bf16.msra.mxu0 %v2844
        %3099 = vmatprep.subr.bf16.mxu0 0
        %3100 = vmatpush1.bf16.msra.mxu0 %v2845
        %3101 = vmatprep.subr.bf16.mxu0 0
        %3102 = vmatpush1.bf16.msra.mxu0 %v2846
        %3103 = vmatprep.mubr.bf16.mxu0 %v2344
        %3104 = vmatmul.mubr.bf16.gmra.mrb[0].mxu0 %v2339
        %v3105 = vpop.f32.mrb[0].mxu0
        %v3106 = vadd.f32 %v3058, %v3105
        %v3107 = vpop.f32.mrb[0].mxu0
        %v3108 = vpop.f32.mrb[0].mxu0
        %v3109 = vadd.f32 %v3061, %v3108
        %v3110 = vpop.f32.mrb[0].mxu0
        %3111 = vmatprep.mubr.bf16.mxu0 %v2345
        %3112 = vmatmul.mubr.bf16.gmra.mrb[0].mxu0 %v2340
        %v3113 = vpop.f32.mrb[0].mxu0
        %v3114 = vadd.f32 %v3066, %v3113
        %v3115 = vpop.f32.mrb[0].mxu0
        %v3116 = vpop.f32.mrb[0].mxu0
        %v3117 = vpop.f32.mrb[0].mxu0
        %3118 = vdwg.mxu0
        %3119 = vmatprep.subr.bf16.mxu0 0
        %3120 = vmatpush1.bf16.msra.mxu0 %v2847
        %3121 = vmatprep.subr.bf16.mxu0 0
        %3122 = vmatpush1.bf16.msra.mxu0 %v2848
        %3123 = vmatprep.subr.bf16.mxu0 0
        %3124 = vmatpush1.bf16.msra.mxu0 %v2849
        %3125 = vmatprep.subr.bf16.mxu0 0
        %3126 = vmatpush1.bf16.msra.mxu0 %v2850
        %3127 = vmatprep.subr.bf16.mxu0 0
        %3128 = vmatpush1.bf16.msra.mxu0 %v2851
        %3129 = vmatprep.subr.bf16.mxu0 0
        %3130 = vmatpush1.bf16.msra.mxu0 %v2852
        %3131 = vmatprep.subr.bf16.mxu0 0
        %3132 = vmatpush1.bf16.msra.mxu0 %v2853
        %3133 = vmatprep.subr.bf16.mxu0 0
        %3134 = vmatpush1.bf16.msra.mxu0 %v2854
        %3135 = vmatprep.subr.bf16.mxu0 0
        %3136 = vmatpush1.bf16.msra.mxu0 0
        %3137 = vmatprep.subr.bf16.mxu0 0
        %3138 = vmatpush1.bf16.msra.mxu0 0
        %3139 = vmatprep.subr.bf16.mxu0 0
        %3140 = vmatpush1.bf16.msra.mxu0 0
        %3141 = vmatprep.subr.bf16.mxu0 0
        %3142 = vmatpush1.bf16.msra.mxu0 0
        %3143 = vmatprep.subr.bf16.mxu0 0
        %3144 = vmatpush1.bf16.msra.mxu0 0
        %3145 = vmatprep.subr.bf16.mxu0 0
        %3146 = vmatpush1.bf16.msra.mxu0 0
        %3147 = vmatprep.subr.bf16.mxu0 0
        %3148 = vmatpush1.bf16.msra.mxu0 0
        %3149 = vmatprep.subr.bf16.mxu0 0
        %3150 = vmatpush1.bf16.msra.mxu0 0
        %3151 = vmatprep.mubr.bf16.mxu0 0
        %3152 = vmatmul.mubr.bf16.gmra.mrb[0].mxu0 %v2349
        %v3153 = vpop.f32.mrb[0].mxu0
        %v3154 = vadd.f32 %v3106, %v3153
        %v3155 = vpop.f32.mrb[0].mxu0
        %v3156 = vpop.f32.mrb[0].mxu0
        %v3157 = vadd.f32 %v3109, %v3156
        %v3158 = vpop.f32.mrb[0].mxu0
        %3159 = vmatprep.mubr.bf16.mxu0 0
        %3160 = vmatmul.mubr.bf16.gmra.mrb[0].mxu0 %v2350
        %v3161 = vpop.f32.mrb[0].mxu0
        %v3162 = vadd.f32 %v3114, %v3161
        %v3163 = vpop.f32.mrb[0].mxu0
        %v3164 = vpop.f32.mrb[0].mxu0
        %v3165 = vpop.f32.mrb[0].mxu0
        %3166 = vdwg.mxu0
        %v3167 = vld [vmem:[%s5 + $0x2] sm:$0x1]
        %v3168 = vlaneseq
        %v3169 = vshrl.u32 %v3168, 7
        %v3170 = vsub.s32 0, %v3169
        %v3171 = vrot.slane %v3167, %v3170
        %v3172 = vmul.f32 %v3154, %v3171
        %v3173 = vmul.f32 %v3157, %v3171
        %v3174 = vmul.f32 %v3162, %v3171
        %v3175 = vld [vmem:[%s6 + $0x2] sm:$0x1]
        %v3176 = vlaneseq
        %v3177 = vshrl.u32 %v3176, 7
        %v3178 = vsub.s32 0, %v3177
        %v3179 = vrot.slane %v3175, %v3178
        %v3180 = vadd.f32 %v3172, %v3179
        %v3181 = vadd.f32 %v3173, %v3179
        %v3182 = vadd.f32 %v3174, %v3179
        %v3183 = vmax.f32 %v3180, 0.0
        %v3184 = vmax.f32 %v3181, 0.0
        %v3185 = vmax.f32 %v3182, 0.0
        %3186 = vst [vmem:[#allocation2] sm:$0xff] %v3183
        %3187 = vst [vmem:[#allocation2 + $0x8] sm:$0xff] %v3184
        %3188 = vst [vmem:[#allocation2 + $0x10] sm:$0xff] %v3185
        %v3189 = vld [vmem:[#allocation2] ss:$2 sm:$0x3]
        %v3190 = vld [vmem:[%s939] ss:$2 sm:$0x3]
        %s3191 = scalar_lea.vmem [#allocation2], 6
        %v3192 = vld [vmem:[%s3191] ss:$2 sm:$0x3]
        %s3193 = scalar_lea.vmem [#allocation2], 7
        %v3194 = vld [vmem:[%s3193] ss:$2 sm:$0x3]
        %v3195 = vadd.s32 %v935, 4
        %v3196 = vmax.f32 %v3189, %v3190
        %vm3197 = vcmp.ge.f32.partialorder %v3189, %v3190
        %v3198 = vsel %vm3197, %v935, %v946
        %v3199 = vmax.f32 %v3192, %v3194
        %vm3200 = vcmp.ge.f32.partialorder %v3192, %v3194
        %v3201 = vadd.s32 %v3195, 1
        %v3202 = vsel %vm3200, %v3195, %v3201
        %vm3203 = vcmp.ge.f32.partialorder %v3196, %v3199
        %v3204 = vsel %vm3203, %v3198, %v3202
        %3205 = vst [vmem:[%s424] sm:$0x3] %v3204
        %v3206 = vmax.f32 %v3196, %v3199
        %3207 = vst [vmem:[#allocation5 + $0x5] sm:$0x3] %v3206
        %s3208 = scalar_lea.vmem [#allocation2], 12
        %v3209 = vld [vmem:[%s3208] ss:$2 sm:$0x3]
        %s3210 = scalar_lea.vmem [#allocation2], 13
        %v3211 = vld [vmem:[%s3210] ss:$2 sm:$0x3]
        %s3212 = scalar_lea.vmem [#allocation2], 18
        %v3213 = vld [vmem:[%s3212] ss:$2 sm:$0x3]
        %s3214 = scalar_lea.vmem [#allocation2], 19
        %v3215 = vld [vmem:[%s3214] ss:$2 sm:$0x3]
        %v3216 = vadd.s32 %v935, 12
        %v3217 = vmax.f32 %v3209, %v3211
        %vm3218 = vcmp.ge.f32.partialorder %v3209, %v3211
        %v3219 = vsel %vm3218, %v2232, %v2238
        %v3220 = vmax.f32 %v3213, %v3215
        %vm3221 = vcmp.ge.f32.partialorder %v3213, %v3215
        %v3222 = vadd.s32 %v3216, 1
        %v3223 = vsel %vm3221, %v3216, %v3222
        %vm3224 = vcmp.ge.f32.partialorder %v3217, %v3220
        %v3225 = vsel %vm3224, %v3219, %v3223
        %3226 = vst [vmem:[%s424 + $0x2] sm:$0x3] %v3225
        %v3227 = vmax.f32 %v3217, %v3220
        %3228 = vst [vmem:[#allocation5 + $0x9] sm:$0x3] %v3227
        %v3229 = vld [vmem:[#allocation5] sm:$0xff]
        %v3230 = vpack.c.bf16 %v3229, %v3229
        %v3231 = vld [vmem:[#allocation5 + $0x1] sm:$0xff]
        %v3232 = vpack.c.bf16 %v3231, %v3231
        %v3233 = vld [vmem:[#allocation5 + $0x2] sm:$0xff]
        %v3234 = vpack.c.bf16 %v3233, %v3233
        %v3235 = vld [vmem:[#allocation5 + $0x4] sm:$0xff]
        %v3236 = vpack.c.bf16 %v3235, %v3235
        %v3237 = vld [vmem:[#allocation5 + $0x5] sm:$0xff]
        %v3238 = vpack.c.bf16 %v3237, %v3237
        %v3239 = vld [vmem:[#allocation5 + $0x6] sm:$0xff]
        %v3240 = vpack.c.bf16 %v3239, %v3239
        %v3241 = vld [vmem:[#allocation5 + $0x8] sm:$0xff]
        %v3242 = vpack.c.bf16 %v3241, %v3241
        %v3243 = vld [vmem:[#allocation5 + $0x9] sm:$0xff]
        %v3244 = vpack.c.bf16 %v3243, %v3243
        %v3245 = vld [vmem:[#allocation5 + $0xa] sm:$0xff]
        %v3246 = vpack.c.bf16 %v3245, %v3245
        %v3247 = vld [vmem:[#allocation11] sm:$0xf]
        %v3248 = vld [vmem:[#allocation11 + $0x4] sm:$0xf]
        %v3249 = vld [vmem:[#allocation11 + $0x8] sm:$0xf]
        %v3250 = vld [vmem:[#allocation11 + $0xc] sm:$0xf]
        %v3251 = vld [vmem:[#allocation11 + $0x10] sm:$0xf]
        %v3252 = vld [vmem:[#allocation11 + $0x14] sm:$0xf]
        %v3253 = vld [vmem:[#allocation11 + $0x18] sm:$0xf]
        %v3254 = vld [vmem:[#allocation11 + $0x1c] sm:$0xf]
        %v3255 = vld [vmem:[#allocation11 + $0x20] sm:$0xf]
        %v3256 = vld [vmem:[#allocation11 + $0x24] sm:$0xf]
        %v3257 = vld [vmem:[#allocation11 + $0x28] sm:$0xf]
        %v3258 = vld [vmem:[#allocation11 + $0x2c] sm:$0xf]
        %v3259 = vld [vmem:[#allocation11 + $0x30] sm:$0xf]
        %v3260 = vld [vmem:[#allocation11 + $0x34] sm:$0xf]
        %v3261 = vld [vmem:[#allocation11 + $0x38] sm:$0xf]
        %v3262 = vld [vmem:[#allocation11 + $0x3c] sm:$0xf]
        %v3263 = vld [vmem:[#allocation11 + $0x40] sm:$0xf]
        %v3264 = vld [vmem:[#allocation11 + $0x44] sm:$0xf]
        %v3265 = vld [vmem:[#allocation11 + $0x48] sm:$0xf]
        %v3266 = vld [vmem:[#allocation11 + $0x4c] sm:$0xf]
        %v3267 = vld [vmem:[#allocation11 + $0x50] sm:$0xf]
        %v3268 = vld [vmem:[#allocation11 + $0x54] sm:$0xf]
        %v3269 = vld [vmem:[#allocation11 + $0x58] sm:$0xf]
        %v3270 = vld [vmem:[#allocation11 + $0x5c] sm:$0xf]
        %v3271 = vld [vmem:[#allocation11 + $0x60] sm:$0xf]
        %v3272 = vld [vmem:[#allocation11 + $0x64] sm:$0xf]
        %v3273 = vld [vmem:[#allocation11 + $0x68] sm:$0xf]
        %v3274 = vld [vmem:[#allocation11 + $0x6c] sm:$0xf]
        %v3275 = vld [vmem:[#allocation11 + $0x70] sm:$0xf]
        %v3276 = vld [vmem:[#allocation11 + $0x74] sm:$0xf]
        %v3277 = vld [vmem:[#allocation11 + $0x78] sm:$0xf]
        %v3278 = vld [vmem:[#allocation11 + $0x7c] sm:$0xf]
        %v3279 = vld [vmem:[#allocation11 + $0x80] sm:$0xf]
        %v3280 = vld [vmem:[#allocation11 + $0x84] sm:$0xf]
        %v3281 = vld [vmem:[#allocation11 + $0x88] sm:$0xf]
        %v3282 = vld [vmem:[#allocation11 + $0x8c] sm:$0xf]
        %v3283 = vld [vmem:[#allocation11 + $0x90] sm:$0xf]
        %v3284 = vld [vmem:[#allocation11 + $0x94] sm:$0xf]
        %v3285 = vld [vmem:[#allocation11 + $0x98] sm:$0xf]
        %v3286 = vld [vmem:[#allocation11 + $0x9c] sm:$0xf]
        %v3287 = vld [vmem:[#allocation11 + $0xa0] sm:$0xf]
        %v3288 = vld [vmem:[#allocation11 + $0xa4] sm:$0xf]
        %v3289 = vld [vmem:[#allocation11 + $0xa8] sm:$0xf]
        %v3290 = vld [vmem:[#allocation11 + $0xac] sm:$0xf]
        %v3291 = vld [vmem:[#allocation11 + $0xb0] sm:$0xf]
        %v3292 = vld [vmem:[#allocation11 + $0xb4] sm:$0xf]
        %v3293 = vld [vmem:[#allocation11 + $0xb8] sm:$0xf]
        %v3294 = vld [vmem:[#allocation11 + $0xbc] sm:$0xf]
        %v3295 = vld [vmem:[#allocation11 + $0xc0] sm:$0xf]
        %v3296 = vld [vmem:[#allocation11 + $0xc4] sm:$0xf]
        %v3297 = vld [vmem:[#allocation11 + $0xc8] sm:$0xf]
        %v3298 = vld [vmem:[#allocation11 + $0xcc] sm:$0xf]
        %v3299 = vld [vmem:[#allocation11 + $0xd0] sm:$0xf]
        %v3300 = vld [vmem:[#allocation11 + $0xd4] sm:$0xf]
        %v3301 = vld [vmem:[#allocation11 + $0xd8] sm:$0xf]
        %v3302 = vld [vmem:[#allocation11 + $0xdc] sm:$0xf]
        %v3303 = vld [vmem:[#allocation11 + $0xe0] sm:$0xf]
        %v3304 = vld [vmem:[#allocation11 + $0xe4] sm:$0xf]
        %v3305 = vld [vmem:[#allocation11 + $0xe8] sm:$0xf]
        %v3306 = vld [vmem:[#allocation11 + $0xec] sm:$0xf]
        %v3307 = vld [vmem:[#allocation11 + $0xf0] sm:$0xf]
        %v3308 = vld [vmem:[#allocation11 + $0xf4] sm:$0xf]
        %v3309 = vld [vmem:[#allocation11 + $0xf8] sm:$0xf]
        %v3310 = vld [vmem:[#allocation11 + $0xfc] sm:$0xf]
        %v3311 = vld [vmem:[#allocation11 + $0x100] sm:$0xf]
        %v3312 = vld [vmem:[#allocation11 + $0x104] sm:$0xf]
        %v3313 = vld [vmem:[#allocation11 + $0x108] sm:$0xf]
        %v3314 = vld [vmem:[#allocation11 + $0x10c] sm:$0xf]
        %v3315 = vld [vmem:[#allocation11 + $0x110] sm:$0xf]
        %v3316 = vld [vmem:[#allocation11 + $0x114] sm:$0xf]
        %v3317 = vld [vmem:[#allocation11 + $0x118] sm:$0xf]
        %v3318 = vld [vmem:[#allocation11 + $0x11c] sm:$0xf]
        %v3319 = vld [vmem:[#allocation11 + $0x120] sm:$0xf]
        %v3320 = vld [vmem:[#allocation11 + $0x124] sm:$0xf]
        %v3321 = vld [vmem:[#allocation11 + $0x128] sm:$0xf]
        %v3322 = vld [vmem:[#allocation11 + $0x12c] sm:$0xf]
        %v3323 = vld [vmem:[#allocation11 + $0x130] sm:$0xf]
        %v3324 = vld [vmem:[#allocation11 + $0x134] sm:$0xf]
        %v3325 = vld [vmem:[#allocation11 + $0x138] sm:$0xf]
        %v3326 = vld [vmem:[#allocation11 + $0x13c] sm:$0xf]
        %v3327 = vld [vmem:[#allocation11 + $0x140] sm:$0xf]
        %v3328 = vld [vmem:[#allocation11 + $0x144] sm:$0xf]
        %v3329 = vld [vmem:[#allocation11 + $0x148] sm:$0xf]
        %v3330 = vld [vmem:[#allocation11 + $0x14c] sm:$0xf]
        %v3331 = vld [vmem:[#allocation11 + $0x150] sm:$0xf]
        %v3332 = vld [vmem:[#allocation11 + $0x154] sm:$0xf]
        %v3333 = vld [vmem:[#allocation11 + $0x158] sm:$0xf]
        %v3334 = vld [vmem:[#allocation11 + $0x15c] sm:$0xf]
        %v3335 = vld [vmem:[#allocation11 + $0x160] sm:$0xf]
        %v3336 = vld [vmem:[#allocation11 + $0x164] sm:$0xf]
        %v3337 = vld [vmem:[#allocation11 + $0x168] sm:$0xf]
        %v3338 = vld [vmem:[#allocation11 + $0x16c] sm:$0xf]
        %v3339 = vld [vmem:[#allocation11 + $0x170] sm:$0xf]
        %v3340 = vld [vmem:[#allocation11 + $0x174] sm:$0xf]
        %v3341 = vld [vmem:[#allocation11 + $0x178] sm:$0xf]
        %v3342 = vld [vmem:[#allocation11 + $0x17c] sm:$0xf]
        %v3343 = vld [vmem:[#allocation11 + $0x180] sm:$0xf]
        %v3344 = vld [vmem:[#allocation11 + $0x184] sm:$0xf]
        %v3345 = vld [vmem:[#allocation11 + $0x188] sm:$0xf]
        %v3346 = vld [vmem:[#allocation11 + $0x18c] sm:$0xf]
        %v3347 = vld [vmem:[#allocation11 + $0x190] sm:$0xf]
        %v3348 = vld [vmem:[#allocation11 + $0x194] sm:$0xf]
        %v3349 = vld [vmem:[#allocation11 + $0x198] sm:$0xf]
        %v3350 = vld [vmem:[#allocation11 + $0x19c] sm:$0xf]
        %v3351 = vld [vmem:[#allocation11 + $0x1a0] sm:$0xf]
        %v3352 = vld [vmem:[#allocation11 + $0x1a4] sm:$0xf]
        %v3353 = vld [vmem:[#allocation11 + $0x1a8] sm:$0xf]
        %v3354 = vld [vmem:[#allocation11 + $0x1ac] sm:$0xf]
        %v3355 = vld [vmem:[#allocation11 + $0x1b0] sm:$0xf]
        %v3356 = vld [vmem:[#allocation11 + $0x1b4] sm:$0xf]
        %v3357 = vld [vmem:[#allocation11 + $0x1b8] sm:$0xf]
        %v3358 = vld [vmem:[#allocation11 + $0x1bc] sm:$0xf]
        %v3359 = vld [vmem:[#allocation11 + $0x1c0] sm:$0xf]
        %v3360 = vld [vmem:[#allocation11 + $0x1c4] sm:$0xf]
        %v3361 = vld [vmem:[#allocation11 + $0x1c8] sm:$0xf]
        %v3362 = vld [vmem:[#allocation11 + $0x1cc] sm:$0xf]
        %v3363 = vld [vmem:[#allocation11 + $0x1d0] sm:$0xf]
        %v3364 = vld [vmem:[#allocation11 + $0x1d4] sm:$0xf]
        %v3365 = vld [vmem:[#allocation11 + $0x1d8] sm:$0xf]
        %v3366 = vld [vmem:[#allocation11 + $0x1dc] sm:$0xf]
        %v3367 = vld [vmem:[#allocation11 + $0x1e0] sm:$0xf]
        %v3368 = vld [vmem:[#allocation11 + $0x1e4] sm:$0xf]
        %v3369 = vld [vmem:[#allocation11 + $0x1e8] sm:$0xf]
        %v3370 = vld [vmem:[#allocation11 + $0x1ec] sm:$0xf]
        %v3371 = vld [vmem:[#allocation11 + $0x1f0] sm:$0xf]
        %v3372 = vld [vmem:[#allocation11 + $0x1f4] sm:$0xf]
        %v3373 = vld [vmem:[#allocation11 + $0x1f8] sm:$0xf]
        %v3374 = vld [vmem:[#allocation11 + $0x1fc] sm:$0xf]
        %v3375 = vld [vmem:[#allocation11 + $0x200] sm:$0xf]
        %v3376 = vld [vmem:[#allocation11 + $0x204] sm:$0xf]
        %v3377 = vld [vmem:[#allocation11 + $0x208] sm:$0xf]
        %v3378 = vld [vmem:[#allocation11 + $0x20c] sm:$0xf]
        %v3379 = vld [vmem:[#allocation11 + $0x210] sm:$0xf]
        %v3380 = vld [vmem:[#allocation11 + $0x214] sm:$0xf]
        %v3381 = vld [vmem:[#allocation11 + $0x218] sm:$0xf]
        %v3382 = vld [vmem:[#allocation11 + $0x21c] sm:$0xf]
        %v3383 = vld [vmem:[#allocation11 + $0x220] sm:$0xf]
        %v3384 = vld [vmem:[#allocation11 + $0x224] sm:$0xf]
        %v3385 = vld [vmem:[#allocation11 + $0x228] sm:$0xf]
        %v3386 = vld [vmem:[#allocation11 + $0x22c] sm:$0xf]
        %v3387 = vld [vmem:[#allocation11 + $0x230] sm:$0xf]
        %v3388 = vld [vmem:[#allocation11 + $0x234] sm:$0xf]
        %v3389 = vld [vmem:[#allocation11 + $0x238] sm:$0xf]
        %v3390 = vld [vmem:[#allocation11 + $0x23c] sm:$0xf]
        %v3535 = vunpack.c.l.b16 %v3247
        %v3536 = vunpack.c.l.b16 %v3248
        %v3537 = vunpack.c.l.b16 %v3249
        %v3538 = vunpack.c.l.b16 %v3250
        %v3539 = vunpack.c.l.b16 %v3251
        %v3540 = vunpack.c.l.b16 %v3252
        %v3541 = vunpack.c.l.b16 %v3253
        %v3542 = vunpack.c.l.b16 %v3254
        %v3543 = vunpack.c.l.b16 %v3255
        %v3544 = vunpack.c.l.b16 %v3256
        %v3545 = vunpack.c.l.b16 %v3257
        %v3546 = vunpack.c.l.b16 %v3258
        %v3547 = vunpack.c.l.b16 %v3259
        %v3548 = vunpack.c.l.b16 %v3260
        %v3549 = vunpack.c.l.b16 %v3261
        %v3550 = vunpack.c.l.b16 %v3262
        %v3551 = vunpack.c.l.b16 %v3263
        %v3552 = vunpack.c.l.b16 %v3264
        %v3553 = vunpack.c.l.b16 %v3265
        %v3554 = vunpack.c.l.b16 %v3266
        %v3555 = vunpack.c.l.b16 %v3267
        %v3556 = vunpack.c.l.b16 %v3268
        %v3557 = vunpack.c.l.b16 %v3269
        %v3558 = vunpack.c.l.b16 %v3270
        %v3559 = vunpack.c.l.b16 %v3271
        %v3560 = vunpack.c.l.b16 %v3272
        %v3561 = vunpack.c.l.b16 %v3273
        %v3562 = vunpack.c.l.b16 %v3274
        %v3563 = vunpack.c.l.b16 %v3275
        %v3564 = vunpack.c.l.b16 %v3276
        %v3565 = vunpack.c.l.b16 %v3277
        %v3566 = vunpack.c.l.b16 %v3278
        %v3567 = vunpack.c.l.b16 %v3279
        %v3568 = vunpack.c.l.b16 %v3280
        %v3569 = vunpack.c.l.b16 %v3281
        %v3570 = vunpack.c.l.b16 %v3282
        %v3571 = vunpack.c.l.b16 %v3283
        %v3572 = vunpack.c.l.b16 %v3284
        %v3573 = vunpack.c.l.b16 %v3285
        %v3574 = vunpack.c.l.b16 %v3286
        %v3575 = vunpack.c.l.b16 %v3287
        %v3576 = vunpack.c.l.b16 %v3288
        %v3577 = vunpack.c.l.b16 %v3289
        %v3578 = vunpack.c.l.b16 %v3290
        %v3579 = vunpack.c.l.b16 %v3291
        %v3580 = vunpack.c.l.b16 %v3292
        %v3581 = vunpack.c.l.b16 %v3293
        %v3582 = vunpack.c.l.b16 %v3294
        %v3583 = vunpack.c.l.b16 %v3295
        %v3584 = vunpack.c.l.b16 %v3296
        %v3585 = vunpack.c.l.b16 %v3297
        %v3586 = vunpack.c.l.b16 %v3298
        %v3587 = vunpack.c.l.b16 %v3299
        %v3588 = vunpack.c.l.b16 %v3300
        %v3589 = vunpack.c.l.b16 %v3301
        %v3590 = vunpack.c.l.b16 %v3302
        %v3591 = vunpack.c.l.b16 %v3303
        %v3592 = vunpack.c.l.b16 %v3304
        %v3593 = vunpack.c.l.b16 %v3305
        %v3594 = vunpack.c.l.b16 %v3306
        %v3595 = vunpack.c.l.b16 %v3307
        %v3596 = vunpack.c.l.b16 %v3308
        %v3597 = vunpack.c.l.b16 %v3309
        %v3598 = vunpack.c.l.b16 %v3310
        %v3599 = vunpack.c.l.b16 %v3311
        %v3600 = vunpack.c.l.b16 %v3312
        %v3601 = vunpack.c.l.b16 %v3313
        %v3602 = vunpack.c.l.b16 %v3314
        %v3603 = vunpack.c.l.b16 %v3315
        %v3604 = vunpack.c.l.b16 %v3316
        %v3605 = vunpack.c.l.b16 %v3317
        %v3606 = vunpack.c.l.b16 %v3318
        %v3607 = vunpack.c.l.b16 %v3319
        %v3608 = vunpack.c.l.b16 %v3320
        %v3609 = vunpack.c.l.b16 %v3321
        %v3610 = vunpack.c.l.b16 %v3322
        %v3611 = vunpack.c.l.b16 %v3323
        %v3612 = vunpack.c.l.b16 %v3324
        %v3613 = vunpack.c.l.b16 %v3325
        %v3614 = vunpack.c.l.b16 %v3326
        %v3615 = vunpack.c.l.b16 %v3327
        %v3616 = vunpack.c.l.b16 %v3328
        %v3617 = vunpack.c.l.b16 %v3329
        %v3618 = vunpack.c.l.b16 %v3330
        %v3619 = vunpack.c.l.b16 %v3331
        %v3620 = vunpack.c.l.b16 %v3332
        %v3621 = vunpack.c.l.b16 %v3333
        %v3622 = vunpack.c.l.b16 %v3334
        %v3623 = vunpack.c.l.b16 %v3335
        %v3624 = vunpack.c.l.b16 %v3336
        %v3625 = vunpack.c.l.b16 %v3337
        %v3626 = vunpack.c.l.b16 %v3338
        %v3627 = vunpack.c.l.b16 %v3339
        %v3628 = vunpack.c.l.b16 %v3340
        %v3629 = vunpack.c.l.b16 %v3341
        %v3630 = vunpack.c.l.b16 %v3342
        %v3631 = vunpack.c.l.b16 %v3343
        %v3632 = vunpack.c.l.b16 %v3344
        %v3633 = vunpack.c.l.b16 %v3345
        %v3634 = vunpack.c.l.b16 %v3346
        %v3635 = vunpack.c.l.b16 %v3347
        %v3636 = vunpack.c.l.b16 %v3348
        %v3637 = vunpack.c.l.b16 %v3349
        %v3638 = vunpack.c.l.b16 %v3350
        %v3639 = vunpack.c.l.b16 %v3351
        %v3640 = vunpack.c.l.b16 %v3352
        %v3641 = vunpack.c.l.b16 %v3353
        %v3642 = vunpack.c.l.b16 %v3354
        %v3643 = vunpack.c.l.b16 %v3355
        %v3644 = vunpack.c.l.b16 %v3356
        %v3645 = vunpack.c.l.b16 %v3357
        %v3646 = vunpack.c.l.b16 %v3358
        %v3647 = vunpack.c.l.b16 %v3359
        %v3648 = vunpack.c.l.b16 %v3360
        %v3649 = vunpack.c.l.b16 %v3361
        %v3650 = vunpack.c.l.b16 %v3362
        %v3651 = vunpack.c.l.b16 %v3363
        %v3652 = vunpack.c.l.b16 %v3364
        %v3653 = vunpack.c.l.b16 %v3365
        %v3654 = vunpack.c.l.b16 %v3366
        %v3655 = vunpack.c.l.b16 %v3367
        %v3656 = vunpack.c.l.b16 %v3368
        %v3657 = vunpack.c.l.b16 %v3369
        %v3658 = vunpack.c.l.b16 %v3370
        %v3659 = vunpack.c.l.b16 %v3371
        %v3660 = vunpack.c.l.b16 %v3372
        %v3661 = vunpack.c.l.b16 %v3373
        %v3662 = vunpack.c.l.b16 %v3374
        %v3663 = vunpack.c.l.b16 %v3375
        %v3664 = vunpack.c.l.b16 %v3376
        %v3665 = vunpack.c.l.b16 %v3377
        %v3666 = vunpack.c.l.b16 %v3378
        %v3667 = vunpack.c.l.b16 %v3379
        %v3668 = vunpack.c.l.b16 %v3380
        %v3669 = vunpack.c.l.b16 %v3381
        %v3670 = vunpack.c.l.b16 %v3382
        %v3671 = vunpack.c.l.b16 %v3383
        %v3672 = vunpack.c.l.b16 %v3384
        %v3673 = vunpack.c.l.b16 %v3385
        %v3674 = vunpack.c.l.b16 %v3386
        %v3675 = vunpack.c.l.b16 %v3387
        %v3676 = vunpack.c.l.b16 %v3388
        %v3677 = vunpack.c.l.b16 %v3389
        %v3678 = vunpack.c.l.b16 %v3390
        %v3679 = vpack.c.b16 %v3536, %v3535
        %v3680 = vpack.c.b16 %v3538, %v3537
        %v3681 = vpack.c.b16 %v3540, %v3539
        %v3682 = vpack.c.b16 %v3542, %v3541
        %v3683 = vpack.c.b16 %v3544, %v3543
        %v3684 = vpack.c.b16 %v3546, %v3545
        %v3685 = vpack.c.b16 %v3548, %v3547
        %v3686 = vpack.c.b16 %v3550, %v3549
        %v3687 = vpack.c.b16 %v3552, %v3551
        %v3688 = vpack.c.b16 %v3554, %v3553
        %v3689 = vpack.c.b16 %v3556, %v3555
        %v3690 = vpack.c.b16 %v3558, %v3557
        %v3691 = vpack.c.b16 %v3560, %v3559
        %v3692 = vpack.c.b16 %v3562, %v3561
        %v3693 = vpack.c.b16 %v3564, %v3563
        %v3694 = vpack.c.b16 %v3566, %v3565
        %v3695 = vpack.c.b16 %v3568, %v3567
        %v3696 = vpack.c.b16 %v3570, %v3569
        %v3697 = vpack.c.b16 %v3572, %v3571
        %v3698 = vpack.c.b16 %v3574, %v3573
        %v3699 = vpack.c.b16 %v3576, %v3575
        %v3700 = vpack.c.b16 %v3578, %v3577
        %v3701 = vpack.c.b16 %v3580, %v3579
        %v3702 = vpack.c.b16 %v3582, %v3581
        %v3703 = vpack.c.b16 %v3584, %v3583
        %v3704 = vpack.c.b16 %v3586, %v3585
        %v3705 = vpack.c.b16 %v3588, %v3587
        %v3706 = vpack.c.b16 %v3590, %v3589
        %v3707 = vpack.c.b16 %v3592, %v3591
        %v3708 = vpack.c.b16 %v3594, %v3593
        %v3709 = vpack.c.b16 %v3596, %v3595
        %v3710 = vpack.c.b16 %v3598, %v3597
        %v3711 = vpack.c.b16 %v3600, %v3599
        %v3712 = vpack.c.b16 %v3602, %v3601
        %v3713 = vpack.c.b16 %v3604, %v3603
        %v3714 = vpack.c.b16 %v3606, %v3605
        %v3715 = vpack.c.b16 %v3608, %v3607
        %v3716 = vpack.c.b16 %v3610, %v3609
        %v3717 = vpack.c.b16 %v3612, %v3611
        %v3718 = vpack.c.b16 %v3614, %v3613
        %v3719 = vpack.c.b16 %v3616, %v3615
        %v3720 = vpack.c.b16 %v3618, %v3617
        %v3721 = vpack.c.b16 %v3620, %v3619
        %v3722 = vpack.c.b16 %v3622, %v3621
        %v3723 = vpack.c.b16 %v3624, %v3623
        %v3724 = vpack.c.b16 %v3626, %v3625
        %v3725 = vpack.c.b16 %v3628, %v3627
        %v3726 = vpack.c.b16 %v3630, %v3629
        %v3727 = vpack.c.b16 %v3632, %v3631
        %v3728 = vpack.c.b16 %v3634, %v3633
        %v3729 = vpack.c.b16 %v3636, %v3635
        %v3730 = vpack.c.b16 %v3638, %v3637
        %v3731 = vpack.c.b16 %v3640, %v3639
        %v3732 = vpack.c.b16 %v3642, %v3641
        %v3733 = vpack.c.b16 %v3644, %v3643
        %v3734 = vpack.c.b16 %v3646, %v3645
        %v3735 = vpack.c.b16 %v3648, %v3647
        %v3736 = vpack.c.b16 %v3650, %v3649
        %v3737 = vpack.c.b16 %v3652, %v3651
        %v3738 = vpack.c.b16 %v3654, %v3653
        %v3739 = vpack.c.b16 %v3656, %v3655
        %v3740 = vpack.c.b16 %v3658, %v3657
        %v3741 = vpack.c.b16 %v3660, %v3659
        %v3742 = vpack.c.b16 %v3662, %v3661
        %v3743 = vpack.c.b16 %v3664, %v3663
        %v3744 = vpack.c.b16 %v3666, %v3665
        %v3745 = vpack.c.b16 %v3668, %v3667
        %v3746 = vpack.c.b16 %v3670, %v3669
        %v3747 = vpack.c.b16 %v3672, %v3671
        %v3748 = vpack.c.b16 %v3674, %v3673
        %v3749 = vpack.c.b16 %v3676, %v3675
        %v3750 = vpack.c.b16 %v3678, %v3677
        %3823 = vmatprep.subr.bf16.mxu0 0
        %3824 = vmatpush1.bf16.msra.mxu0 %v3679
        %3825 = vmatprep.subr.bf16.mxu0 0
        %3826 = vmatpush1.bf16.msra.mxu0 %v3680
        %3827 = vmatprep.subr.bf16.mxu0 0
        %3828 = vmatpush1.bf16.msra.mxu0 %v3681
        %3829 = vmatprep.subr.bf16.mxu0 0
        %3830 = vmatpush1.bf16.msra.mxu0 %v3682
        %3831 = vmatprep.subr.bf16.mxu0 0
        %3832 = vmatpush1.bf16.msra.mxu0 %v3683
        %3833 = vmatprep.subr.bf16.mxu0 0
        %3834 = vmatpush1.bf16.msra.mxu0 %v3684
        %3835 = vmatprep.subr.bf16.mxu0 0
        %3836 = vmatpush1.bf16.msra.mxu0 %v3685
        %3837 = vmatprep.subr.bf16.mxu0 0
        %3838 = vmatpush1.bf16.msra.mxu0 %v3686
        %3839 = vmatprep.subr.bf16.mxu0 0
        %3840 = vmatpush1.bf16.msra.mxu0 %v3687
        %3841 = vmatprep.subr.bf16.mxu0 0
        %3842 = vmatpush1.bf16.msra.mxu0 %v3688
        %3843 = vmatprep.subr.bf16.mxu0 0
        %3844 = vmatpush1.bf16.msra.mxu0 %v3689
        %3845 = vmatprep.subr.bf16.mxu0 0
        %3846 = vmatpush1.bf16.msra.mxu0 %v3690
        %3847 = vmatprep.subr.bf16.mxu0 0
        %3848 = vmatpush1.bf16.msra.mxu0 %v3691
        %3849 = vmatprep.subr.bf16.mxu0 0
        %3850 = vmatpush1.bf16.msra.mxu0 %v3692
        %3851 = vmatprep.subr.bf16.mxu0 0
        %3852 = vmatpush1.bf16.msra.mxu0 %v3693
        %3853 = vmatprep.subr.bf16.mxu0 0
        %3854 = vmatpush1.bf16.msra.mxu0 %v3694
        %3855 = vmatprep.mubr.bf16.mxu0 %v3232
        %3856 = vmatmul.mubr.bf16.gmra.mrb[0].mxu0 %v3230
        %v3857 = vpop.f32.mrb[0].mxu0
        %v3858 = vadd.f32 0.0, %v3857
        %v3859 = vpop.f32.mrb[0].mxu0
        %v3860 = vpop.f32.mrb[0].mxu0
        %v3861 = vpop.f32.mrb[0].mxu0
        %3862 = vdwg.mxu0
        %3863 = vmatprep.subr.bf16.mxu0 0
        %3864 = vmatpush1.bf16.msra.mxu0 %v3695
        %3865 = vmatprep.subr.bf16.mxu0 0
        %3866 = vmatpush1.bf16.msra.mxu0 %v3696
        %3867 = vmatprep.subr.bf16.mxu0 0
        %3868 = vmatpush1.bf16.msra.mxu0 %v3697
        %3869 = vmatprep.subr.bf16.mxu0 0
        %3870 = vmatpush1.bf16.msra.mxu0 %v3698
        %3871 = vmatprep.subr.bf16.mxu0 0
        %3872 = vmatpush1.bf16.msra.mxu0 %v3699
        %3873 = vmatprep.subr.bf16.mxu0 0
        %3874 = vmatpush1.bf16.msra.mxu0 %v3700
        %3875 = vmatprep.subr.bf16.mxu0 0
        %3876 = vmatpush1.bf16.msra.mxu0 %v3701
        %3877 = vmatprep.subr.bf16.mxu0 0
        %3878 = vmatpush1.bf16.msra.mxu0 %v3702
        %3879 = vmatprep.subr.bf16.mxu0 0
        %3880 = vmatpush1.bf16.msra.mxu0 %v3703
        %3881 = vmatprep.subr.bf16.mxu0 0
        %3882 = vmatpush1.bf16.msra.mxu0 %v3704
        %3883 = vmatprep.subr.bf16.mxu0 0
        %3884 = vmatpush1.bf16.msra.mxu0 %v3705
        %3885 = vmatprep.subr.bf16.mxu0 0
        %3886 = vmatpush1.bf16.msra.mxu0 %v3706
        %3887 = vmatprep.subr.bf16.mxu0 0
        %3888 = vmatpush1.bf16.msra.mxu0 %v3707
        %3889 = vmatprep.subr.bf16.mxu0 0
        %3890 = vmatpush1.bf16.msra.mxu0 %v3708
        %3891 = vmatprep.subr.bf16.mxu0 0
        %3892 = vmatpush1.bf16.msra.mxu0 %v3709
        %3893 = vmatprep.subr.bf16.mxu0 0
        %3894 = vmatpush1.bf16.msra.mxu0 %v3710
        %3895 = vmatprep.mubr.bf16.mxu0 %v3236
        %3896 = vmatmul.mubr.bf16.gmra.mrb[0].mxu0 %v3234
        %v3897 = vpop.f32.mrb[0].mxu0
        %v3898 = vadd.f32 %v3858, %v3897
        %v3899 = vpop.f32.mrb[0].mxu0
        %v3900 = vpop.f32.mrb[0].mxu0
        %v3901 = vpop.f32.mrb[0].mxu0
        %3902 = vdwg.mxu0
        %3903 = vmatprep.subr.bf16.mxu0 0
        %3904 = vmatpush1.bf16.msra.mxu0 %v3711
        %3905 = vmatprep.subr.bf16.mxu0 0
        %3906 = vmatpush1.bf16.msra.mxu0 %v3712
        %3907 = vmatprep.subr.bf16.mxu0 0
        %3908 = vmatpush1.bf16.msra.mxu0 %v3713
        %3909 = vmatprep.subr.bf16.mxu0 0
        %3910 = vmatpush1.bf16.msra.mxu0 %v3714
        %3911 = vmatprep.subr.bf16.mxu0 0
        %3912 = vmatpush1.bf16.msra.mxu0 %v3715
        %3913 = vmatprep.subr.bf16.mxu0 0
        %3914 = vmatpush1.bf16.msra.mxu0 %v3716
        %3915 = vmatprep.subr.bf16.mxu0 0
        %3916 = vmatpush1.bf16.msra.mxu0 %v3717
        %3917 = vmatprep.subr.bf16.mxu0 0
        %3918 = vmatpush1.bf16.msra.mxu0 %v3718
        %3919 = vmatprep.subr.bf16.mxu0 0
        %3920 = vmatpush1.bf16.msra.mxu0 %v3719
        %3921 = vmatprep.subr.bf16.mxu0 0
        %3922 = vmatpush1.bf16.msra.mxu0 %v3720
        %3923 = vmatprep.subr.bf16.mxu0 0
        %3924 = vmatpush1.bf16.msra.mxu0 %v3721
        %3925 = vmatprep.subr.bf16.mxu0 0
        %3926 = vmatpush1.bf16.msra.mxu0 %v3722
        %3927 = vmatprep.subr.bf16.mxu0 0
        %3928 = vmatpush1.bf16.msra.mxu0 %v3723
        %3929 = vmatprep.subr.bf16.mxu0 0
        %3930 = vmatpush1.bf16.msra.mxu0 %v3724
        %3931 = vmatprep.subr.bf16.mxu0 0
        %3932 = vmatpush1.bf16.msra.mxu0 %v3725
        %3933 = vmatprep.subr.bf16.mxu0 0
        %3934 = vmatpush1.bf16.msra.mxu0 %v3726
        %3935 = vmatprep.mubr.bf16.mxu0 %v3240
        %3936 = vmatmul.mubr.bf16.gmra.mrb[0].mxu0 %v3238
        %v3937 = vpop.f32.mrb[0].mxu0
        %v3938 = vadd.f32 %v3898, %v3937
        %v3939 = vpop.f32.mrb[0].mxu0
        %v3940 = vpop.f32.mrb[0].mxu0
        %v3941 = vpop.f32.mrb[0].mxu0
        %3942 = vdwg.mxu0
        %3943 = vmatprep.subr.bf16.mxu0 0
        %3944 = vmatpush1.bf16.msra.mxu0 %v3727
        %3945 = vmatprep.subr.bf16.mxu0 0
        %3946 = vmatpush1.bf16.msra.mxu0 %v3728
        %3947 = vmatprep.subr.bf16.mxu0 0
        %3948 = vmatpush1.bf16.msra.mxu0 %v3729
        %3949 = vmatprep.subr.bf16.mxu0 0
        %3950 = vmatpush1.bf16.msra.mxu0 %v3730
        %3951 = vmatprep.subr.bf16.mxu0 0
        %3952 = vmatpush1.bf16.msra.mxu0 %v3731
        %3953 = vmatprep.subr.bf16.mxu0 0
        %3954 = vmatpush1.bf16.msra.mxu0 %v3732
        %3955 = vmatprep.subr.bf16.mxu0 0
        %3956 = vmatpush1.bf16.msra.mxu0 %v3733
        %3957 = vmatprep.subr.bf16.mxu0 0
        %3958 = vmatpush1.bf16.msra.mxu0 %v3734
        %3959 = vmatprep.subr.bf16.mxu0 0
        %3960 = vmatpush1.bf16.msra.mxu0 %v3735
        %3961 = vmatprep.subr.bf16.mxu0 0
        %3962 = vmatpush1.bf16.msra.mxu0 %v3736
        %3963 = vmatprep.subr.bf16.mxu0 0
        %3964 = vmatpush1.bf16.msra.mxu0 %v3737
        %3965 = vmatprep.subr.bf16.mxu0 0
        %3966 = vmatpush1.bf16.msra.mxu0 %v3738
        %3967 = vmatprep.subr.bf16.mxu0 0
        %3968 = vmatpush1.bf16.msra.mxu0 %v3739
        %3969 = vmatprep.subr.bf16.mxu0 0
        %3970 = vmatpush1.bf16.msra.mxu0 %v3740
        %3971 = vmatprep.subr.bf16.mxu0 0
        %3972 = vmatpush1.bf16.msra.mxu0 %v3741
        %3973 = vmatprep.subr.bf16.mxu0 0
        %3974 = vmatpush1.bf16.msra.mxu0 %v3742
        %3975 = vmatprep.mubr.bf16.mxu0 %v3244
        %3976 = vmatmul.mubr.bf16.gmra.mrb[0].mxu0 %v3242
        %v3977 = vpop.f32.mrb[0].mxu0
        %v3978 = vadd.f32 %v3938, %v3977
        %v3979 = vpop.f32.mrb[0].mxu0
        %v3980 = vpop.f32.mrb[0].mxu0
        %v3981 = vpop.f32.mrb[0].mxu0
        %3982 = vdwg.mxu0
        %3983 = vmatprep.subr.bf16.mxu0 0
        %3984 = vmatpush1.bf16.msra.mxu0 %v3743
        %3985 = vmatprep.subr.bf16.mxu0 0
        %3986 = vmatpush1.bf16.msra.mxu0 %v3744
        %3987 = vmatprep.subr.bf16.mxu0 0
        %3988 = vmatpush1.bf16.msra.mxu0 %v3745
        %3989 = vmatprep.subr.bf16.mxu0 0
        %3990 = vmatpush1.bf16.msra.mxu0 %v3746
        %3991 = vmatprep.subr.bf16.mxu0 0
        %3992 = vmatpush1.bf16.msra.mxu0 %v3747
        %3993 = vmatprep.subr.bf16.mxu0 0
        %3994 = vmatpush1.bf16.msra.mxu0 %v3748
        %3995 = vmatprep.subr.bf16.mxu0 0
        %3996 = vmatpush1.bf16.msra.mxu0 %v3749
        %3997 = vmatprep.subr.bf16.mxu0 0
        %3998 = vmatpush1.bf16.msra.mxu0 %v3750
        %3999 = vmatprep.subr.bf16.mxu0 0
        %4000 = vmatpush1.bf16.msra.mxu0 0
        %4001 = vmatprep.subr.bf16.mxu0 0
        %4002 = vmatpush1.bf16.msra.mxu0 0
        %4003 = vmatprep.subr.bf16.mxu0 0
        %4004 = vmatpush1.bf16.msra.mxu0 0
        %4005 = vmatprep.subr.bf16.mxu0 0
        %4006 = vmatpush1.bf16.msra.mxu0 0
        %4007 = vmatprep.subr.bf16.mxu0 0
        %4008 = vmatpush1.bf16.msra.mxu0 0
        %4009 = vmatprep.subr.bf16.mxu0 0
        %4010 = vmatpush1.bf16.msra.mxu0 0
        %4011 = vmatprep.subr.bf16.mxu0 0
        %4012 = vmatpush1.bf16.msra.mxu0 0
        %4013 = vmatprep.subr.bf16.mxu0 0
        %4014 = vmatpush1.bf16.msra.mxu0 0
        %4015 = vmatprep.mubr.bf16.mxu0 0
        %4016 = vmatmul.mubr.bf16.gmra.mrb[0].mxu0 %v3246
        %v4017 = vpop.f32.mrb[0].mxu0
        %v4018 = vadd.f32 %v3978, %v4017
        %v4019 = vpop.f32.mrb[0].mxu0
        %v4020 = vpop.f32.mrb[0].mxu0
        %v4021 = vpop.f32.mrb[0].mxu0
        %4022 = vdwg.mxu0
        %v4023 = vld [vmem:[%s5 + $0x3] sm:$0x1]
        %v4024 = vlaneseq
        %v4025 = vshrl.u32 %v4024, 7
        %v4026 = vsub.s32 0, %v4025
        %v4027 = vrot.slane %v4023, %v4026
        %v4028 = vmul.f32 %v4018, %v4027
        %v4029 = vld [vmem:[%s6 + $0x3] sm:$0x1]
        %v4030 = vlaneseq
        %v4031 = vshrl.u32 %v4030, 7
        %v4032 = vsub.s32 0, %v4031
        %v4033 = vrot.slane %v4029, %v4032
        %v4034 = vadd.f32 %v4028, %v4033
        %v4035 = vmax.f32 %v4034, 0.0
        %4036 = vst [vmem:[%s403] sm:$0xff] %v4035
        %s4037 = sand.u32 %s193, 1
        %s4038 = scalar_lea.sflag [#allocation8], %s4037
        %s4039 = sand.u32 %s193, 1
        %s4040 = smul.addr %s4039, 8
        %s4041 = scalar_lea.vmem [#allocation12], %s4040
        %s4042 = sand.u32 %s33, 1
        %s4043 = scalar_lea.sflag [#allocation14], %s4042
        %s4044 = sand.u32 %s219, 1
        %s4045 = smul.addr %s4044, 64
        %s4046 = scalar_lea.vmem [#allocation13], %s4045
        %s4047 = sand.u32 %s33, 1
        %s4048 = scalar_lea.sflag [#allocation14], %s4047
        %s4049 = sand.u32 %s245, 1
        %s4050 = smul.addr %s4049, 16
        %s4051 = scalar_lea.vmem [#allocation15], %s4050
        %s4052 = sand.u32 %s271, 1
        %s4053 = scalar_lea.sflag [#allocation17], %s4052
        %s4054 = sand.u32 %s271, 1
        %s4055 = smul.addr %s4054, 4
        %s4056 = scalar_lea.vmem [#allocation16], %s4055
        // Predicated region
        $region61: #{tpu_custom_call.1} parent=47 // pred_check
          %p4057 = pneg %p203
        $region62: #{tpu_custom_call.1} parent=47 // pred_check_branch
          %4059 = sbr.rel (%p4057) target = $region64
        $region63: #{tpu_custom_call.1} parent=47 // pred_region
          %s4061 = ssub.s32 128, 128
          %4062 = vsyncadd %s4038, %s4061
          %s4063 = smul.addr %s33, 128
          %s4064 = scalar_lea.hbm %s7, %s4063
          %s4066 = sshll.u32 %s4041, 4
          %s4067 = int_to_ptr.vmem [resolvable:$true] %s4066
          %4069 = dma.vmem_to_hbm [thread:$0]  %s4067, 128, %s4064, %s4038
        $region64: #{tpu_custom_call.1} parent=47 // pred_fallthru
          _
        // Predicated region
        $region65: #{tpu_custom_call.1} parent=47 // pred_check
          %p4070 = pneg %p229
        $region66: #{tpu_custom_call.1} parent=47 // pred_check_branch
          %4072 = sbr.rel (%p4070) target = $region68
        $region67: #{tpu_custom_call.1} parent=47 // pred_region
          %s4074 = ssub.s32 1024, 1024
          %4075 = vsyncadd %s4043, %s4074
          %s4076 = smul.addr %s33, 8
          %s4077 = smul.addr %s4076, 128
          %s4078 = scalar_lea.hbm %s8, %s4077
          %s4079 = sshll.u32 %s4046, 4
          %s4080 = int_to_ptr.vmem [resolvable:$true] %s4079
          %4085 = dma.vmem_to_hbm [thread:$0]  %s4080, 1024, %s4078, %s4043, 128, 128, 8
        $region68: #{tpu_custom_call.1} parent=47 // pred_fallthru
          _
        // Predicated region
        $region69: #{tpu_custom_call.1} parent=47 // pred_check
          %p4086 = pneg %p255
        $region70: #{tpu_custom_call.1} parent=47 // pred_check_branch
          %4088 = sbr.rel (%p4086) target = $region72
        $region71: #{tpu_custom_call.1} parent=47 // pred_region
          %s4090 = ssub.s32 256, 256
          %4091 = vsyncadd %s4048, %s4090
          %s4092 = smul.addr %s33, 2
          %s4093 = smul.addr %s4092, 128
          %s4094 = scalar_lea.hbm %s9, %s4093
          %s4095 = sshll.u32 %s4051, 4
          %s4096 = int_to_ptr.vmem [resolvable:$true] %s4095
          %4101 = dma.vmem_to_hbm [thread:$0]  %s4096, 256, %s4094, %s4048, 128, 128, 8
        $region72: #{tpu_custom_call.1} parent=47 // pred_fallthru
          _
        // Predicated region
        $region73: #{tpu_custom_call.1} parent=47 // pred_check
          %p4102 = pneg %p281
        $region74: #{tpu_custom_call.1} parent=47 // pred_check_branch
          %4104 = sbr.rel (%p4102) target = $region76
        $region75: #{tpu_custom_call.1} parent=47 // pred_region
          %s4106 = ssub.s32 64, 64
          %4107 = vsyncadd %s4053, %s4106
          %s4108 = smul.addr %s33, 64
          %s4109 = scalar_lea.hbm %s10, %s4108
          %s4111 = sshll.u32 %s4056, 4
          %s4112 = int_to_ptr.vmem [resolvable:$true] %s4111
          %4114 = dma.vmem_to_hbm [thread:$0]  %s4112, 64, %s4109, %s4053
        $region76: #{tpu_custom_call.1} parent=47 // pred_fallthru
          _
      $region48: #{tpu_custom_call.1} parent=5 // pred_fallthru
        _
      %p4115 = scmp.le.s32.totalorder 2, %s28
      // Predicated region
      $region77: #{tpu_custom_call.1} parent=5 // pred_check
        %p4116 = pneg %p4115
      $region78: #{tpu_custom_call.1} parent=5 // pred_check_branch
        %4118 = sbr.rel (%p4116) target = $region80
      $region79: #{tpu_custom_call.1} parent=5 // pred_region
        %s4119 = ssub.s32 %s28, 2
        // Predicated region
        $region81: #{tpu_custom_call.1} parent=79 // pred_check
          %p4120 = pneg %p209
        $region82: #{tpu_custom_call.1} parent=79 // pred_check_branch
          %4122 = sbr.rel (%p4120) target = $region84
        $region83: #{tpu_custom_call.1} parent=79 // pred_region
          %s4123 = sand.u32 %s194, 1
          %s4124 = scalar_lea.sflag [#allocation8], %s4123
          %s4125 = sand.u32 %s194, 1
          %s4126 = smul.addr %s4125, 8
          %s4127 = scalar_lea.vmem [#allocation12], %s4126
          %4128 = dma.done %s4124, 128
        $region84: #{tpu_custom_call.1} parent=79 // pred_fallthru
          _
        // Predicated region
        $region85: #{tpu_custom_call.1} parent=79 // pred_check
          %p4129 = pneg %p235
        $region86: #{tpu_custom_call.1} parent=79 // pred_check_branch
          %4131 = sbr.rel (%p4129) target = $region88
        $region87: #{tpu_custom_call.1} parent=79 // pred_region
          %s4132 = sand.u32 %s34, 1
          %s4133 = scalar_lea.sflag [#allocation14], %s4132
          %s4134 = sand.u32 %s220, 1
          %s4135 = smul.addr %s4134, 64
          %s4136 = scalar_lea.vmem [#allocation13], %s4135
          %4137 = dma.done %s4133, 1024
        $region88: #{tpu_custom_call.1} parent=79 // pred_fallthru
          _
        // Predicated region
        $region89: #{tpu_custom_call.1} parent=79 // pred_check
          %p4138 = pneg %p261
        $region90: #{tpu_custom_call.1} parent=79 // pred_check_branch
          %4140 = sbr.rel (%p4138) target = $region92
        $region91: #{tpu_custom_call.1} parent=79 // pred_region
          %s4141 = sand.u32 %s34, 1
          %s4142 = scalar_lea.sflag [#allocation14], %s4141
          %s4143 = sand.u32 %s246, 1
          %s4144 = smul.addr %s4143, 16
          %s4145 = scalar_lea.vmem [#allocation15], %s4144
          %4146 = dma.done %s4142, 256
        $region92: #{tpu_custom_call.1} parent=79 // pred_fallthru
          _
        // Predicated region
        $region93: #{tpu_custom_call.1} parent=79 // pred_check
          %p4147 = pneg %p287
        $region94: #{tpu_custom_call.1} parent=79 // pred_check_branch
          %4149 = sbr.rel (%p4147) target = $region96
        $region95: #{tpu_custom_call.1} parent=79 // pred_region
          %s4150 = sand.u32 %s272, 1
          %s4151 = scalar_lea.sflag [#allocation17], %s4150
          %s4152 = sand.u32 %s272, 1
          %s4153 = smul.addr %s4152, 4
          %s4154 = scalar_lea.vmem [#allocation16], %s4153
          %4155 = dma.done %s4151, 64
        $region96: #{tpu_custom_call.1} parent=79 // pred_fallthru
          _
      $region80: #{tpu_custom_call.1} parent=5 // pred_fallthru
        _
    $region6: #{tpu_custom_call.1} parent=1 // loop_footer
      %s32 = sadd.s32 1, %s28
    $region7: #{tpu_custom_call.1} parent=1 // loop_footer_branch
      %27 = sbr.rel target = $region3
    $region8: #{tpu_custom_call.1} parent=1 // loop_exit
      _
    %4156 = vsyncpa [#allocation7], 1
    %s4157 = scalar_lea.sflag [#allocation7], 1
    %4158 = vsyncpa %s4157, 1
    %4159 = vsyncpa [#allocation10], 1
    %4160 = vsyncpa [#allocation8], 1
    %s4161 = scalar_lea.sflag [#allocation8], 1
    %4162 = vsyncpa %s4161, 1
    %4163 = vsyncpa [#allocation14], 1
    %s4164 = scalar_lea.sflag [#allocation14], 1
    %4165 = vsyncpa %s4164, 1
    %4166 = vsyncpa [#allocation17], 1
    %s4167 = scalar_lea.sflag [#allocation17], 1
    %4168 = vsyncpa %s4167, 1

</llo_original>
